<compile_context>
chip_gen: v6e
topology: v6e:2x2x1
jax: 0.10.0
libtpu: 0.0.40
codegen_flags: <defaults>
</compile_context>

<pallas_src>
import jax
import jax.numpy as jnp
from jax import lax
from jax.experimental import pallas as pl
from jax.experimental.pallas import tpu as pltpu

HIDDEN_SIZE = 256  # RnnModel.HIDDEN_SIZE


def _lstm_last_step_kernel(
    x_ref,       # (T*B, D)  bf16  flattened input sequence (dropout = identity in eval)
    h0_ref,      # (B, H)    f32   initial hidden state
    c0_ref,      # (B, H)    f32   initial cell state
    wih_t_ref,   # (D, 4H)   bf16  W_ih^T
    whh_t_ref,   # (H, 4H)   bf16  W_hh^T
    b_ref,       # (1, 4H)   f32   b_ih + b_hh
    wout_t_ref,  # (H, O)    bf16  W_out^T
    bout_ref,    # (1, O)    f32   b_out
    score_ref,   # (B, O)    f32   output = Linear(h_T)
):
    B, H = h0_ref.shape
    TB = x_ref.shape[0]
    T = TB // B

    # ---- prologue: input projection hoisted out of the serial recurrence ----
    # xg[t*B:(t+1)*B] = x_t @ W_ih^T + (b_ih + b_hh), computed for all t in one GEMM.
    xg = (
        jnp.dot(x_ref[...], wih_t_ref[...], preferred_element_type=jnp.float32)
        + b_ref[...]
    )  # (T*B, 4H) f32

    whh_t = whh_t_ref[...]  # hoisted: RHS is identical every timestep
    # TODO(synk): could keep W_hh^T staged in MXU weight regs via
    # pltpu.matmul_push_rhs / matmul_acc_lhs to skip the per-step RHS push.

    h = h0_ref[...]  # f32 carries
    c = c0_ref[...]

    # ---- serial recurrence, fully unrolled (T static, per-step state is tiny) ----
    for t in range(T):
        gates = xg[t * B:(t + 1) * B, :] + jnp.dot(
            h.astype(jnp.bfloat16), whh_t, preferred_element_type=jnp.float32
        )  # (B, 4H) f32

        # PyTorch LSTM gate order: i, f, g, o — elementwise math stays in f32.
        i_g = jax.nn.sigmoid(gates[:, 0 * H:1 * H])
        f_g = jax.nn.sigmoid(gates[:, 1 * H:2 * H])
        g_g = jnp.tanh(gates[:, 2 * H:3 * H])
        o_g = jax.nn.sigmoid(gates[:, 3 * H:4 * H])

        c = f_g * c + i_g * g_g
        h = o_g * jnp.tanh(c)

    # ---- epilogue: score_seq = Linear(encoder_outputs[-1, :, :]) ----
    score_ref[...] = (
        jnp.dot(h.astype(jnp.bfloat16), wout_t_ref[...],
                preferred_element_type=jnp.float32)
        + bout_ref[...]
    )


def rnn_model_forward(input_seq, hidden_state, params):
    """Pallas implementation of RnnModel.forward (dropout in eval mode = identity).

    input_seq:    (T, B, D) float
    hidden_state: tuple (h0, c0), each (1, B, H)
    params: dict with w_ih (4H, D), w_hh (4H, H), b_ih (4H,), b_hh (4H,),
            w_out (O, H), b_out (O,)
    returns: (score_seq (B, O), dummy_attn_weights (B, T))
    """
    T, B, D = input_seq.shape
    H = params["w_hh"].shape[1]
    O = params["w_out"].shape[0]

    h0 = hidden_state[0].reshape(B, H).astype(jnp.float32)
    c0 = hidden_state[1].reshape(B, H).astype(jnp.float32)

    # TODO(synk): torch.nn.Dropout(0.2) is active only in train mode; this forward is
    # the deterministic (eval) path, so dropout is the identity.
    x_flat = input_seq.reshape(T * B, D).astype(jnp.bfloat16)       # bf16 MXU operand

    wih_t = params["w_ih"].T.astype(jnp.bfloat16)                   # (D, 4H)
    whh_t = params["w_hh"].T.astype(jnp.bfloat16)                   # (H, 4H)
    b = (params["b_ih"] + params["b_hh"]).reshape(1, 4 * H).astype(jnp.float32)
    wout_t = params["w_out"].T.astype(jnp.bfloat16)                 # (H, O)
    bout = params["b_out"].reshape(1, O).astype(jnp.float32)

    def _vmem():
        return pl.BlockSpec(memory_space=pltpu.MemorySpace.VMEM)

    score = pl.pallas_call(
        _lstm_last_step_kernel,
        out_shape=jax.ShapeDtypeStruct((B, O), jnp.float32),
        in_specs=[_vmem() for _ in range(8)],   # full arrays resident in VMEM, no grid
        out_specs=_vmem(),
    )(x_flat, h0, c0, wih_t, whh_t, b, wout_t, bout)

    dummy_attn_weights = jnp.zeros((B, T), dtype=jnp.float32)
    return score, dummy_attn_weights


def _reference_forward(input_seq, hidden_state, params):
    """Pure-JAX f32 reference (lax.scan LSTM) for correctness checking."""
    T, B, D = input_seq.shape
    H = params["w_hh"].shape[1]
    h0 = hidden_state[0].reshape(B, H)
    c0 = hidden_state[1].reshape(B, H)
    w_ih, w_hh = params["w_ih"], params["w_hh"]
    b = params["b_ih"] + params["b_hh"]

    def step(carry, x_t):
        h, c = carry
        gates = x_t @ w_ih.T + h @ w_hh.T + b
        i = jax.nn.sigmoid(gates[:, 0 * H:1 * H])
        f = jax.nn.sigmoid(gates[:, 1 * H:2 * H])
        g = jnp.tanh(gates[:, 2 * H:3 * H])
        o = jax.nn.sigmoid(gates[:, 3 * H:4 * H])
        c_new = f * c + i * g
        h_new = o * jnp.tanh(c_new)
        return (h_new, c_new), None

    (h_T, _), _ = lax.scan(step, (h0, c0), input_seq)
    score = h_T @ params["w_out"].T + params["b_out"]
    return score, jnp.zeros((B, T), jnp.float32)


def init_params(key, input_dim, hidden, output_dim):
    """Deterministic init matching torch.nn.LSTM / Linear shapes (uniform +/- 1/sqrt(H))."""
    ks = jax.random.split(key, 6)
    s = 1.0 / jnp.sqrt(hidden)
    return {
        "w_ih": jax.random.uniform(ks[0], (4 * hidden, input_dim), jnp.float32, -s, s),
        "w_hh": jax.random.uniform(ks[1], (4 * hidden, hidden), jnp.float32, -s, s),
        "b_ih": jax.random.uniform(ks[2], (4 * hidden,), jnp.float32, -s, s),
        "b_hh": jax.random.uniform(ks[3], (4 * hidden,), jnp.float32, -s, s),
        "w_out": jax.random.uniform(ks[4], (output_dim, hidden), jnp.float32, -s, s),
        "b_out": jax.random.uniform(ks[5], (output_dim,), jnp.float32, -s, s),
    }


if __name__ == "__main__":
    T, B, D, O = 8, 8, 16, 8
    H = HIDDEN_SIZE

    key = jax.random.PRNGKey(0)
    k_x, k_p = jax.random.split(key)
    x = jax.random.normal(k_x, (T, B, D), dtype=jnp.float32)
    params = init_params(k_p, D, H, O)

    # init_hidden(batch_size): zeros (1, B, H)
    h0 = jnp.zeros((1, B, H), jnp.float32)
    c0 = jnp.zeros((1, B, H), jnp.float32)

    score, attn = rnn_model_forward(x, (h0, c0), params)
    score = jax.block_until_ready(score)
    attn = jax.block_until_ready(attn)

    ref_score, ref_attn = _reference_forward(x, (h0, c0), params)
    assert score.shape == (B, O) and attn.shape == (B, T)
    # bf16 matmul operands + f32 accumulation vs. the pure-f32 reference: loosen tolerance.
    assert jnp.allclose(score, ref_score, atol=3e-2, rtol=3e-2)
    assert jnp.allclose(attn, ref_attn)

    print("KERNEL_OK")
</pallas_src>

<mosaic_0001>
module attributes {stable_mosaic.version = 11 : i64} {
  func.func @_lstm_last_step_kernel(%arg0: memref<64x16xbf16, #tpu.memory_space<vmem>>, %arg1: memref<8x256xf32, #tpu.memory_space<vmem>>, %arg2: memref<8x256xf32, #tpu.memory_space<vmem>>, %arg3: memref<16x1024xbf16, #tpu.memory_space<vmem>>, %arg4: memref<256x1024xbf16, #tpu.memory_space<vmem>>, %arg5: memref<1x1024xf32, #tpu.memory_space<vmem>>, %arg6: memref<256x8xbf16, #tpu.memory_space<vmem>>, %arg7: memref<1x8xf32, #tpu.memory_space<vmem>>, %arg8: memref<8x8xf32, #tpu.memory_space<vmem>>) attributes {dimension_semantics = [], scalar_prefetch = 0 : i64, scratch_operands = 0 : i64, tpu.core_type = #tpu.core_type<tc>} {
    %c0 = arith.constant 0 : index
    %c0_0 = arith.constant 0 : index
    %0 = vector.load %arg0[%c0, %c0_0] : memref<64x16xbf16, #tpu.memory_space<vmem>>, vector<64x16xbf16>
    %c0_1 = arith.constant 0 : index
    %c0_2 = arith.constant 0 : index
    %1 = vector.load %arg3[%c0_1, %c0_2] : memref<16x1024xbf16, #tpu.memory_space<vmem>>, vector<16x1024xbf16>
    %cst = arith.constant dense<0.000000e+00> : vector<64x1024xf32>
    %2 = tpu.matmul %0, %1, %cst {dimension_numbers = #tpu.dot_dimension_numbers<[1], [0], [0], [1], [0, 0, 1, 1], [], []>} : vector<64x16xbf16>, vector<16x1024xbf16>, vector<64x1024xf32> -> vector<64x1024xf32>
    %c0_3 = arith.constant 0 : index
    %c0_4 = arith.constant 0 : index
    %3 = vector.load %arg5[%c0_3, %c0_4] : memref<1x1024xf32, #tpu.memory_space<vmem>>, vector<1x1024xf32>
    %4 = vector.broadcast %3 : vector<1x1024xf32> to vector<64x1024xf32>
    %5 = arith.addf %2, %4 : vector<64x1024xf32>
    %c0_5 = arith.constant 0 : index
    %c0_6 = arith.constant 0 : index
    %6 = vector.load %arg4[%c0_5, %c0_6] : memref<256x1024xbf16, #tpu.memory_space<vmem>>, vector<256x1024xbf16>
    %c0_7 = arith.constant 0 : index
    %c0_8 = arith.constant 0 : index
    %7 = vector.load %arg1[%c0_7, %c0_8] : memref<8x256xf32, #tpu.memory_space<vmem>>, vector<8x256xf32>
    %c0_9 = arith.constant 0 : index
    %c0_10 = arith.constant 0 : index
    %8 = vector.load %arg2[%c0_9, %c0_10] : memref<8x256xf32, #tpu.memory_space<vmem>>, vector<8x256xf32>
    %9 = vector.extract_strided_slice %5 {offsets = [0, 0], sizes = [8, 1024], strides = [1, 1]} : vector<64x1024xf32> to vector<8x1024xf32>
    %10 = arith.truncf %7 : vector<8x256xf32> to vector<8x256xbf16>
    %cst_11 = arith.constant dense<0.000000e+00> : vector<8x1024xf32>
    %11 = tpu.matmul %10, %6, %cst_11 {dimension_numbers = #tpu.dot_dimension_numbers<[1], [0], [0], [1], [0, 0, 1, 1], [], []>} : vector<8x256xbf16>, vector<256x1024xbf16>, vector<8x1024xf32> -> vector<8x1024xf32>
    %12 = arith.addf %9, %11 : vector<8x1024xf32>
    %13 = vector.extract_strided_slice %12 {offsets = [0, 0], sizes = [8, 256], strides = [1, 1]} : vector<8x1024xf32> to vector<8x256xf32>
    %14 = arith.negf %13 : vector<8x256xf32>
    %15 = math.exp %14 : vector<8x256xf32>
    %cst_12 = arith.constant 1.000000e+00 : f32
    %16 = vector.broadcast %cst_12 : f32 to vector<8x256xf32>
    %17 = arith.addf %16, %15 : vector<8x256xf32>
    %18 = arith.divf %16, %17 : vector<8x256xf32>
    %19 = vector.extract_strided_slice %12 {offsets = [0, 256], sizes = [8, 256], strides = [1, 1]} : vector<8x1024xf32> to vector<8x256xf32>
    %20 = arith.negf %19 : vector<8x256xf32>
    %21 = math.exp %20 : vector<8x256xf32>
    %cst_13 = arith.constant 1.000000e+00 : f32
    %22 = vector.broadcast %cst_13 : f32 to vector<8x256xf32>
    %23 = arith.addf %22, %21 : vector<8x256xf32>
    %24 = arith.divf %22, %23 : vector<8x256xf32>
    %25 = vector.extract_strided_slice %12 {offsets = [0, 512], sizes = [8, 256], strides = [1, 1]} : vector<8x1024xf32> to vector<8x256xf32>
    %26 = math.tanh %25 : vector<8x256xf32>
    %27 = vector.extract_strided_slice %12 {offsets = [0, 768], sizes = [8, 256], strides = [1, 1]} : vector<8x1024xf32> to vector<8x256xf32>
    %28 = arith.negf %27 : vector<8x256xf32>
    %29 = math.exp %28 : vector<8x256xf32>
    %cst_14 = arith.constant 1.000000e+00 : f32
    %30 = vector.broadcast %cst_14 : f32 to vector<8x256xf32>
    %31 = arith.addf %30, %29 : vector<8x256xf32>
    %32 = arith.divf %30, %31 : vector<8x256xf32>
    %33 = arith.mulf %24, %8 : vector<8x256xf32>
    %34 = arith.mulf %18, %26 : vector<8x256xf32>
    %35 = arith.addf %33, %34 : vector<8x256xf32>
    %36 = math.tanh %35 : vector<8x256xf32>
    %37 = arith.mulf %32, %36 : vector<8x256xf32>
    %38 = vector.extract_strided_slice %5 {offsets = [8, 0], sizes = [8, 1024], strides = [1, 1]} : vector<64x1024xf32> to vector<8x1024xf32>
    %39 = arith.truncf %37 : vector<8x256xf32> to vector<8x256xbf16>
    %cst_15 = arith.constant dense<0.000000e+00> : vector<8x1024xf32>
    %40 = tpu.matmul %39, %6, %cst_15 {dimension_numbers = #tpu.dot_dimension_numbers<[1], [0], [0], [1], [0, 0, 1, 1], [], []>} : vector<8x256xbf16>, vector<256x1024xbf16>, vector<8x1024xf32> -> vector<8x1024xf32>
    %41 = arith.addf %38, %40 : vector<8x1024xf32>
    %42 = vector.extract_strided_slice %41 {offsets = [0, 0], sizes = [8, 256], strides = [1, 1]} : vector<8x1024xf32> to vector<8x256xf32>
    %43 = arith.negf %42 : vector<8x256xf32>
    %44 = math.exp %43 : vector<8x256xf32>
    %cst_16 = arith.constant 1.000000e+00 : f32
    %45 = vector.broadcast %cst_16 : f32 to vector<8x256xf32>
    %46 = arith.addf %45, %44 : vector<8x256xf32>
    %47 = arith.divf %45, %46 : vector<8x256xf32>
    %48 = vector.extract_strided_slice %41 {offsets = [0, 256], sizes = [8, 256], strides = [1, 1]} : vector<8x1024xf32> to vector<8x256xf32>
    %49 = arith.negf %48 : vector<8x256xf32>
    %50 = math.exp %49 : vector<8x256xf32>
    %cst_17 = arith.constant 1.000000e+00 : f32
    %51 = vector.broadcast %cst_17 : f32 to vector<8x256xf32>
    %52 = arith.addf %51, %50 : vector<8x256xf32>
    %53 = arith.divf %51, %52 : vector<8x256xf32>
    %54 = vector.extract_strided_slice %41 {offsets = [0, 512], sizes = [8, 256], strides = [1, 1]} : vector<8x1024xf32> to vector<8x256xf32>
    %55 = math.tanh %54 : vector<8x256xf32>
    %56 = vector.extract_strided_slice %41 {offsets = [0, 768], sizes = [8, 256], strides = [1, 1]} : vector<8x1024xf32> to vector<8x256xf32>
    %57 = arith.negf %56 : vector<8x256xf32>
    %58 = math.exp %57 : vector<8x256xf32>
    %cst_18 = arith.constant 1.000000e+00 : f32
    %59 = vector.broadcast %cst_18 : f32 to vector<8x256xf32>
    %60 = arith.addf %59, %58 : vector<8x256xf32>
    %61 = arith.divf %59, %60 : vector<8x256xf32>
    %62 = arith.mulf %53, %35 : vector<8x256xf32>
    %63 = arith.mulf %47, %55 : vector<8x256xf32>
    %64 = arith.addf %62, %63 : vector<8x256xf32>
    %65 = math.tanh %64 : vector<8x256xf32>
    %66 = arith.mulf %61, %65 : vector<8x256xf32>
    %67 = vector.extract_strided_slice %5 {offsets = [16, 0], sizes = [8, 1024], strides = [1, 1]} : vector<64x1024xf32> to vector<8x1024xf32>
    %68 = arith.truncf %66 : vector<8x256xf32> to vector<8x256xbf16>
    %cst_19 = arith.constant dense<0.000000e+00> : vector<8x1024xf32>
    %69 = tpu.matmul %68, %6, %cst_19 {dimension_numbers = #tpu.dot_dimension_numbers<[1], [0], [0], [1], [0, 0, 1, 1], [], []>} : vector<8x256xbf16>, vector<256x1024xbf16>, vector<8x1024xf32> -> vector<8x1024xf32>
    %70 = arith.addf %67, %69 : vector<8x1024xf32>
    %71 = vector.extract_strided_slice %70 {offsets = [0, 0], sizes = [8, 256], strides = [1, 1]} : vector<8x1024xf32> to vector<8x256xf32>
    %72 = arith.negf %71 : vector<8x256xf32>
    %73 = math.exp %72 : vector<8x256xf32>
    %cst_20 = arith.constant 1.000000e+00 : f32
    %74 = vector.broadcast %cst_20 : f32 to vector<8x256xf32>
    %75 = arith.addf %74, %73 : vector<8x256xf32>
    %76 = arith.divf %74, %75 : vector<8x256xf32>
    %77 = vector.extract_strided_slice %70 {offsets = [0, 256], sizes = [8, 256], strides = [1, 1]} : vector<8x1024xf32> to vector<8x256xf32>
    %78 = arith.negf %77 : vector<8x256xf32>
    %79 = math.exp %78 : vector<8x256xf32>
    %cst_21 = arith.constant 1.000000e+00 : f32
    %80 = vector.broadcast %cst_21 : f32 to vector<8x256xf32>
    %81 = arith.addf %80, %79 : vector<8x256xf32>
    %82 = arith.divf %80, %81 : vector<8x256xf32>
    %83 = vector.extract_strided_slice %70 {offsets = [0, 512], sizes = [8, 256], strides = [1, 1]} : vector<8x1024xf32> to vector<8x256xf32>
    %84 = math.tanh %83 : vector<8x256xf32>
    %85 = vector.extract_strided_slice %70 {offsets = [0, 768], sizes = [8, 256], strides = [1, 1]} : vector<8x1024xf32> to vector<8x256xf32>
    %86 = arith.negf %85 : vector<8x256xf32>
    %87 = math.exp %86 : vector<8x256xf32>
    %cst_22 = arith.constant 1.000000e+00 : f32
    %88 = vector.broadcast %cst_22 : f32 to vector<8x256xf32>
    %89 = arith.addf %88, %87 : vector<8x256xf32>
    %90 = arith.divf %88, %89 : vector<8x256xf32>
    %91 = arith.mulf %82, %64 : vector<8x256xf32>
    %92 = arith.mulf %76, %84 : vector<8x256xf32>
    %93 = arith.addf %91, %92 : vector<8x256xf32>
    %94 = math.tanh %93 : vector<8x256xf32>
    %95 = arith.mulf %90, %94 : vector<8x256xf32>
    %96 = vector.extract_strided_slice %5 {offsets = [24, 0], sizes = [8, 1024], strides = [1, 1]} : vector<64x1024xf32> to vector<8x1024xf32>
    %97 = arith.truncf %95 : vector<8x256xf32> to vector<8x256xbf16>
    %cst_23 = arith.constant dense<0.000000e+00> : vector<8x1024xf32>
    %98 = tpu.matmul %97, %6, %cst_23 {dimension_numbers = #tpu.dot_dimension_numbers<[1], [0], [0], [1], [0, 0, 1, 1], [], []>} : vector<8x256xbf16>, vector<256x1024xbf16>, vector<8x1024xf32> -> vector<8x1024xf32>
    %99 = arith.addf %96, %98 : vector<8x1024xf32>
    %100 = vector.extract_strided_slice %99 {offsets = [0, 0], sizes = [8, 256], strides = [1, 1]} : vector<8x1024xf32> to vector<8x256xf32>
    %101 = arith.negf %100 : vector<8x256xf32>
    %102 = math.exp %101 : vector<8x256xf32>
    %cst_24 = arith.constant 1.000000e+00 : f32
    %103 = vector.broadcast %cst_24 : f32 to vector<8x256xf32>
    %104 = arith.addf %103, %102 : vector<8x256xf32>
    %105 = arith.divf %103, %104 : vector<8x256xf32>
    %106 = vector.extract_strided_slice %99 {offsets = [0, 256], sizes = [8, 256], strides = [1, 1]} : vector<8x1024xf32> to vector<8x256xf32>
    %107 = arith.negf %106 : vector<8x256xf32>
    %108 = math.exp %107 : vector<8x256xf32>
    %cst_25 = arith.constant 1.000000e+00 : f32
    %109 = vector.broadcast %cst_25 : f32 to vector<8x256xf32>
    %110 = arith.addf %109, %108 : vector<8x256xf32>
    %111 = arith.divf %109, %110 : vector<8x256xf32>
    %112 = vector.extract_strided_slice %99 {offsets = [0, 512], sizes = [8, 256], strides = [1, 1]} : vector<8x1024xf32> to vector<8x256xf32>
    %113 = math.tanh %112 : vector<8x256xf32>
    %114 = vector.extract_strided_slice %99 {offsets = [0, 768], sizes = [8, 256], strides = [1, 1]} : vector<8x1024xf32> to vector<8x256xf32>
    %115 = arith.negf %114 : vector<8x256xf32>
    %116 = math.exp %115 : vector<8x256xf32>
    %cst_26 = arith.constant 1.000000e+00 : f32
    %117 = vector.broadcast %cst_26 : f32 to vector<8x256xf32>
    %118 = arith.addf %117, %116 : vector<8x256xf32>
    %119 = arith.divf %117, %118 : vector<8x256xf32>
    %120 = arith.mulf %111, %93 : vector<8x256xf32>
    %121 = arith.mulf %105, %113 : vector<8x256xf32>
    %122 = arith.addf %120, %121 : vector<8x256xf32>
    %123 = math.tanh %122 : vector<8x256xf32>
    %124 = arith.mulf %119, %123 : vector<8x256xf32>
    %125 = vector.extract_strided_slice %5 {offsets = [32, 0], sizes = [8, 1024], strides = [1, 1]} : vector<64x1024xf32> to vector<8x1024xf32>
    %126 = arith.truncf %124 : vector<8x256xf32> to vector<8x256xbf16>
    %cst_27 = arith.constant dense<0.000000e+00> : vector<8x1024xf32>
    %127 = tpu.matmul %126, %6, %cst_27 {dimension_numbers = #tpu.dot_dimension_numbers<[1], [0], [0], [1], [0, 0, 1, 1], [], []>} : vector<8x256xbf16>, vector<256x1024xbf16>, vector<8x1024xf32> -> vector<8x1024xf32>
    %128 = arith.addf %125, %127 : vector<8x1024xf32>
    %129 = vector.extract_strided_slice %128 {offsets = [0, 0], sizes = [8, 256], strides = [1, 1]} : vector<8x1024xf32> to vector<8x256xf32>
    %130 = arith.negf %129 : vector<8x256xf32>
    %131 = math.exp %130 : vector<8x256xf32>
    %cst_28 = arith.constant 1.000000e+00 : f32
    %132 = vector.broadcast %cst_28 : f32 to vector<8x256xf32>
    %133 = arith.addf %132, %131 : vector<8x256xf32>
    %134 = arith.divf %132, %133 : vector<8x256xf32>
    %135 = vector.extract_strided_slice %128 {offsets = [0, 256], sizes = [8, 256], strides = [1, 1]} : vector<8x1024xf32> to vector<8x256xf32>
    %136 = arith.negf %135 : vector<8x256xf32>
    %137 = math.exp %136 : vector<8x256xf32>
    %cst_29 = arith.constant 1.000000e+00 : f32
    %138 = vector.broadcast %cst_29 : f32 to vector<8x256xf32>
    %139 = arith.addf %138, %137 : vector<8x256xf32>
    %140 = arith.divf %138, %139 : vector<8x256xf32>
    %141 = vector.extract_strided_slice %128 {offsets = [0, 512], sizes = [8, 256], strides = [1, 1]} : vector<8x1024xf32> to vector<8x256xf32>
    %142 = math.tanh %141 : vector<8x256xf32>
    %143 = vector.extract_strided_slice %128 {offsets = [0, 768], sizes = [8, 256], strides = [1, 1]} : vector<8x1024xf32> to vector<8x256xf32>
    %144 = arith.negf %143 : vector<8x256xf32>
    %145 = math.exp %144 : vector<8x256xf32>
    %cst_30 = arith.constant 1.000000e+00 : f32
    %146 = vector.broadcast %cst_30 : f32 to vector<8x256xf32>
    %147 = arith.addf %146, %145 : vector<8x256xf32>
    %148 = arith.divf %146, %147 : vector<8x256xf32>
    %149 = arith.mulf %140, %122 : vector<8x256xf32>
    %150 = arith.mulf %134, %142 : vector<8x256xf32>
    %151 = arith.addf %149, %150 : vector<8x256xf32>
    %152 = math.tanh %151 : vector<8x256xf32>
    %153 = arith.mulf %148, %152 : vector<8x256xf32>
    %154 = vector.extract_strided_slice %5 {offsets = [40, 0], sizes = [8, 1024], strides = [1, 1]} : vector<64x1024xf32> to vector<8x1024xf32>
    %155 = arith.truncf %153 : vector<8x256xf32> to vector<8x256xbf16>
    %cst_31 = arith.constant dense<0.000000e+00> : vector<8x1024xf32>
    %156 = tpu.matmul %155, %6, %cst_31 {dimension_numbers = #tpu.dot_dimension_numbers<[1], [0], [0], [1], [0, 0, 1, 1], [], []>} : vector<8x256xbf16>, vector<256x1024xbf16>, vector<8x1024xf32> -> vector<8x1024xf32>
    %157 = arith.addf %154, %156 : vector<8x1024xf32>
    %158 = vector.extract_strided_slice %157 {offsets = [0, 0], sizes = [8, 256], strides = [1, 1]} : vector<8x1024xf32> to vector<8x256xf32>
    %159 = arith.negf %158 : vector<8x256xf32>
    %160 = math.exp %159 : vector<8x256xf32>
    %cst_32 = arith.constant 1.000000e+00 : f32
    %161 = vector.broadcast %cst_32 : f32 to vector<8x256xf32>
    %162 = arith.addf %161, %160 : vector<8x256xf32>
    %163 = arith.divf %161, %162 : vector<8x256xf32>
    %164 = vector.extract_strided_slice %157 {offsets = [0, 256], sizes = [8, 256], strides = [1, 1]} : vector<8x1024xf32> to vector<8x256xf32>
    %165 = arith.negf %164 : vector<8x256xf32>
    %166 = math.exp %165 : vector<8x256xf32>
    %cst_33 = arith.constant 1.000000e+00 : f32
    %167 = vector.broadcast %cst_33 : f32 to vector<8x256xf32>
    %168 = arith.addf %167, %166 : vector<8x256xf32>
    %169 = arith.divf %167, %168 : vector<8x256xf32>
    %170 = vector.extract_strided_slice %157 {offsets = [0, 512], sizes = [8, 256], strides = [1, 1]} : vector<8x1024xf32> to vector<8x256xf32>
    %171 = math.tanh %170 : vector<8x256xf32>
    %172 = vector.extract_strided_slice %157 {offsets = [0, 768], sizes = [8, 256], strides = [1, 1]} : vector<8x1024xf32> to vector<8x256xf32>
    %173 = arith.negf %172 : vector<8x256xf32>
    %174 = math.exp %173 : vector<8x256xf32>
    %cst_34 = arith.constant 1.000000e+00 : f32
    %175 = vector.broadcast %cst_34 : f32 to vector<8x256xf32>
    %176 = arith.addf %175, %174 : vector<8x256xf32>
    %177 = arith.divf %175, %176 : vector<8x256xf32>
    %178 = arith.mulf %169, %151 : vector<8x256xf32>
    %179 = arith.mulf %163, %171 : vector<8x256xf32>
    %180 = arith.addf %178, %179 : vector<8x256xf32>
    %181 = math.tanh %180 : vector<8x256xf32>
    %182 = arith.mulf %177, %181 : vector<8x256xf32>
    %183 = vector.extract_strided_slice %5 {offsets = [48, 0], sizes = [8, 1024], strides = [1, 1]} : vector<64x1024xf32> to vector<8x1024xf32>
    %184 = arith.truncf %182 : vector<8x256xf32> to vector<8x256xbf16>
    %cst_35 = arith.constant dense<0.000000e+00> : vector<8x1024xf32>
    %185 = tpu.matmul %184, %6, %cst_35 {dimension_numbers = #tpu.dot_dimension_numbers<[1], [0], [0], [1], [0, 0, 1, 1], [], []>} : vector<8x256xbf16>, vector<256x1024xbf16>, vector<8x1024xf32> -> vector<8x1024xf32>
    %186 = arith.addf %183, %185 : vector<8x1024xf32>
    %187 = vector.extract_strided_slice %186 {offsets = [0, 0], sizes = [8, 256], strides = [1, 1]} : vector<8x1024xf32> to vector<8x256xf32>
    %188 = arith.negf %187 : vector<8x256xf32>
    %189 = math.exp %188 : vector<8x256xf32>
    %cst_36 = arith.constant 1.000000e+00 : f32
    %190 = vector.broadcast %cst_36 : f32 to vector<8x256xf32>
    %191 = arith.addf %190, %189 : vector<8x256xf32>
    %192 = arith.divf %190, %191 : vector<8x256xf32>
    %193 = vector.extract_strided_slice %186 {offsets = [0, 256], sizes = [8, 256], strides = [1, 1]} : vector<8x1024xf32> to vector<8x256xf32>
    %194 = arith.negf %193 : vector<8x256xf32>
    %195 = math.exp %194 : vector<8x256xf32>
    %cst_37 = arith.constant 1.000000e+00 : f32
    %196 = vector.broadcast %cst_37 : f32 to vector<8x256xf32>
    %197 = arith.addf %196, %195 : vector<8x256xf32>
    %198 = arith.divf %196, %197 : vector<8x256xf32>
    %199 = vector.extract_strided_slice %186 {offsets = [0, 512], sizes = [8, 256], strides = [1, 1]} : vector<8x1024xf32> to vector<8x256xf32>
    %200 = math.tanh %199 : vector<8x256xf32>
    %201 = vector.extract_strided_slice %186 {offsets = [0, 768], sizes = [8, 256], strides = [1, 1]} : vector<8x1024xf32> to vector<8x256xf32>
    %202 = arith.negf %201 : vector<8x256xf32>
    %203 = math.exp %202 : vector<8x256xf32>
    %cst_38 = arith.constant 1.000000e+00 : f32
    %204 = vector.broadcast %cst_38 : f32 to vector<8x256xf32>
    %205 = arith.addf %204, %203 : vector<8x256xf32>
    %206 = arith.divf %204, %205 : vector<8x256xf32>
    %207 = arith.mulf %198, %180 : vector<8x256xf32>
    %208 = arith.mulf %192, %200 : vector<8x256xf32>
    %209 = arith.addf %207, %208 : vector<8x256xf32>
    %210 = math.tanh %209 : vector<8x256xf32>
    %211 = arith.mulf %206, %210 : vector<8x256xf32>
    %212 = vector.extract_strided_slice %5 {offsets = [56, 0], sizes = [8, 1024], strides = [1, 1]} : vector<64x1024xf32> to vector<8x1024xf32>
    %213 = arith.truncf %211 : vector<8x256xf32> to vector<8x256xbf16>
    %cst_39 = arith.constant dense<0.000000e+00> : vector<8x1024xf32>
    %214 = tpu.matmul %213, %6, %cst_39 {dimension_numbers = #tpu.dot_dimension_numbers<[1], [0], [0], [1], [0, 0, 1, 1], [], []>} : vector<8x256xbf16>, vector<256x1024xbf16>, vector<8x1024xf32> -> vector<8x1024xf32>
    %215 = arith.addf %212, %214 : vector<8x1024xf32>
    %216 = vector.extract_strided_slice %215 {offsets = [0, 0], sizes = [8, 256], strides = [1, 1]} : vector<8x1024xf32> to vector<8x256xf32>
    %217 = arith.negf %216 : vector<8x256xf32>
    %218 = math.exp %217 : vector<8x256xf32>
    %cst_40 = arith.constant 1.000000e+00 : f32
    %219 = vector.broadcast %cst_40 : f32 to vector<8x256xf32>
    %220 = arith.addf %219, %218 : vector<8x256xf32>
    %221 = arith.divf %219, %220 : vector<8x256xf32>
    %222 = vector.extract_strided_slice %215 {offsets = [0, 256], sizes = [8, 256], strides = [1, 1]} : vector<8x1024xf32> to vector<8x256xf32>
    %223 = arith.negf %222 : vector<8x256xf32>
    %224 = math.exp %223 : vector<8x256xf32>
    %cst_41 = arith.constant 1.000000e+00 : f32
    %225 = vector.broadcast %cst_41 : f32 to vector<8x256xf32>
    %226 = arith.addf %225, %224 : vector<8x256xf32>
    %227 = arith.divf %225, %226 : vector<8x256xf32>
    %228 = vector.extract_strided_slice %215 {offsets = [0, 512], sizes = [8, 256], strides = [1, 1]} : vector<8x1024xf32> to vector<8x256xf32>
    %229 = math.tanh %228 : vector<8x256xf32>
    %230 = vector.extract_strided_slice %215 {offsets = [0, 768], sizes = [8, 256], strides = [1, 1]} : vector<8x1024xf32> to vector<8x256xf32>
    %231 = arith.negf %230 : vector<8x256xf32>
    %232 = math.exp %231 : vector<8x256xf32>
    %cst_42 = arith.constant 1.000000e+00 : f32
    %233 = vector.broadcast %cst_42 : f32 to vector<8x256xf32>
    %234 = arith.addf %233, %232 : vector<8x256xf32>
    %235 = arith.divf %233, %234 : vector<8x256xf32>
    %236 = arith.mulf %227, %209 : vector<8x256xf32>
    %237 = arith.mulf %221, %229 : vector<8x256xf32>
    %238 = arith.addf %236, %237 : vector<8x256xf32>
    %239 = math.tanh %238 : vector<8x256xf32>
    %240 = arith.mulf %235, %239 : vector<8x256xf32>
    %241 = arith.truncf %240 : vector<8x256xf32> to vector<8x256xbf16>
    %c0_43 = arith.constant 0 : index
    %c0_44 = arith.constant 0 : index
    %242 = vector.load %arg6[%c0_43, %c0_44] : memref<256x8xbf16, #tpu.memory_space<vmem>>, vector<256x8xbf16>
    %cst_45 = arith.constant dense<0.000000e+00> : vector<8x8xf32>
    %243 = tpu.matmul %241, %242, %cst_45 {dimension_numbers = #tpu.dot_dimension_numbers<[1], [0], [0], [1], [0, 0, 1, 1], [], []>} : vector<8x256xbf16>, vector<256x8xbf16>, vector<8x8xf32> -> vector<8x8xf32>
    %c0_46 = arith.constant 0 : index
    %c0_47 = arith.constant 0 : index
    %244 = vector.load %arg7[%c0_46, %c0_47] : memref<1x8xf32, #tpu.memory_space<vmem>>, vector<1x8xf32>
    %245 = vector.broadcast %244 : vector<1x8xf32> to vector<8x8xf32>
    %246 = arith.addf %243, %245 : vector<8x8xf32>
    %c0_48 = arith.constant 0 : index
    %c0_49 = arith.constant 0 : index
    %247 = vector.load %arg8[%c0_48, %c0_49] : memref<8x8xf32, #tpu.memory_space<vmem>>, vector<8x8xf32>
    tpu.vector_store %arg8[%c0_48, %c0_49], %246 {strides = array<i32>} : memref<8x8xf32, #tpu.memory_space<vmem>>, vector<8x8xf32>,
    return
  }
}

</mosaic_0001>

<llo_original>
// kernel: tpu_custom_call.1
$region0: #{tpu_custom_call.1}
  #allocation0 [shape = 'u32[]', space=smem, size = 0x4, offset = 0x4, fixed_abs, tag = 'smem constant byte address 0x4 - core index']
  #allocation1 [shape = 'u32[144,128]{1,0:T(1,128)}', space=vmem, size = 0x12000, scoped, tag = 'internal scratch']
  %s0 = inlined_call_operand.vmem [shape: bf16[64,16], index: 0, kind: input, shape index: {}]
  %s1 = inlined_call_operand.vmem [shape: f32[8,256], index: 1, kind: input, shape index: {}]
  %s2 = inlined_call_operand.vmem [shape: f32[8,256], index: 2, kind: input, shape index: {}]
  %s3 = inlined_call_operand.vmem [shape: bf16[16,1024], index: 3, kind: input, shape index: {}]
  %s4 = inlined_call_operand.hbm [shape: bf16[256,1024], index: 4, kind: input, shape index: {}]
  %s5 = inlined_call_operand.vmem [shape: f32[1,1024], index: 5, kind: input, shape index: {}]
  %s6 = inlined_call_operand.vmem [shape: bf16[256,8], index: 6, kind: input, shape index: {}]
  %s7 = inlined_call_operand.vmem [shape: f32[1,8], index: 7, kind: input, shape index: {}]
  %s8 = inlined_call_operand.hbm [shape: f32[8,8], index: 8, kind: output, shape index: {}]
  %s9 = sld [smem:[#allocation0]]
  $region46: #{tpu_custom_call.1} parent=0
    _
  %s11 = ssub.s32 1, %s9
  %s12 = scalar_select 0, %s11, %s9
  $region1: #{tpu_custom_call.1} parent=0
    #allocation2 [shape = 'u8[524288]{0}', space=vmem, size = 0x80000, scoped, tag = 'input window, operand 4, single buffered']
    #allocation3 [shape = 's32[1]{0}', space=sflag, size = 0x4, scoped, tag = 'scoped memory for tpu_custom_call.1']
    #allocation4 [shape = 's32[1]{0}', space=sflag, size = 0x4, scoped, tag = 'scoped memory for tpu_custom_call.1']
    #allocation5 [shape = 'u8[4096]{0}', space=vmem, size = 0x1000, scoped, tag = 'output window, operand 0, single buffered']
    %13 = vsyncpa [#allocation3], 0
    %14 = vsyncpa [#allocation4], 0
    // Predicated region
    $region2: #{tpu_custom_call.1} parent=1 // pred_check
      _
    $region3: #{tpu_custom_call.1} parent=1 // pred_check_branch
      %16 = sbr.rel (0) target = $region5
    $region4: #{tpu_custom_call.1} parent=1 // pred_region
      _
    $region5: #{tpu_custom_call.1} parent=1 // pred_fallthru
      _
    // Predicated region
    $region6: #{tpu_custom_call.1} parent=1 // pred_check
      _
    $region7: #{tpu_custom_call.1} parent=1 // pred_check_branch
      %18 = sbr.rel (0) target = $region9
    $region8: #{tpu_custom_call.1} parent=1 // pred_region
      _
    $region9: #{tpu_custom_call.1} parent=1 // pred_fallthru
      _
    // Predicated region
    $region10: #{tpu_custom_call.1} parent=1 // pred_check
      _
    $region11: #{tpu_custom_call.1} parent=1 // pred_check_branch
      %20 = sbr.rel (0) target = $region13
    $region12: #{tpu_custom_call.1} parent=1 // pred_region
      _
    $region13: #{tpu_custom_call.1} parent=1 // pred_fallthru
      _
    // Predicated region
    $region14: #{tpu_custom_call.1} parent=1 // pred_check
      _
    $region15: #{tpu_custom_call.1} parent=1 // pred_check_branch
      %22 = sbr.rel (0) target = $region17
    $region16: #{tpu_custom_call.1} parent=1 // pred_region
      _
    $region17: #{tpu_custom_call.1} parent=1 // pred_fallthru
      _
    // Predicated region
    $region18: #{tpu_custom_call.1} parent=1 // pred_check
      _
    $region19: #{tpu_custom_call.1} parent=1 // pred_check_branch
      %24 = sbr.rel (0) target = $region21
    $region20: #{tpu_custom_call.1} parent=1 // pred_region
      %s26 = ssub.s32 16384, 16384
      %27 = vsyncadd [#allocation3], %s26
      %s28 = sshll.u32 [#allocation2], 4
      %s29 = int_to_ptr.vmem [resolvable:$true] %s28
      %34 = dma.hbm_to_vmem [thread:$0]  %s4, 16384, %s29, [#allocation3], 512, 512, 32
    $region21: #{tpu_custom_call.1} parent=1 // pred_fallthru
      _
    // Predicated region
    $region22: #{tpu_custom_call.1} parent=1 // pred_check
      _
    $region23: #{tpu_custom_call.1} parent=1 // pred_check_branch
      %36 = sbr.rel (0) target = $region25
    $region24: #{tpu_custom_call.1} parent=1 // pred_region
      _
    $region25: #{tpu_custom_call.1} parent=1 // pred_fallthru
      _
    // Predicated region
    $region26: #{tpu_custom_call.1} parent=1 // pred_check
      _
    $region27: #{tpu_custom_call.1} parent=1 // pred_check_branch
      %38 = sbr.rel (0) target = $region29
    $region28: #{tpu_custom_call.1} parent=1 // pred_region
      _
    $region29: #{tpu_custom_call.1} parent=1 // pred_fallthru
      _
    // Predicated region
    $region30: #{tpu_custom_call.1} parent=1 // pred_check
      _
    $region31: #{tpu_custom_call.1} parent=1 // pred_check_branch
      %40 = sbr.rel (0) target = $region33
    $region32: #{tpu_custom_call.1} parent=1 // pred_region
      _
    $region33: #{tpu_custom_call.1} parent=1 // pred_fallthru
      _
    // Predicated region
    $region34: #{tpu_custom_call.1} parent=1 // pred_check
      _
    $region35: #{tpu_custom_call.1} parent=1 // pred_check_branch
      %42 = sbr.rel (0) target = $region37
    $region36: #{tpu_custom_call.1} parent=1 // pred_region
      %43 = dma.done [#allocation3], 16384
    $region37: #{tpu_custom_call.1} parent=1 // pred_fallthru
      _
    %v45 = vld [vmem:[%s0] sm:$0xf]
    %v46 = vld [vmem:[%s0 + $0x4] sm:$0xf]
    %v47 = vld [vmem:[%s0 + $0x8] sm:$0xf]
    %v48 = vld [vmem:[%s0 + $0xc] sm:$0xf]
    %v49 = vld [vmem:[%s0 + $0x10] sm:$0xf]
    %v50 = vld [vmem:[%s0 + $0x14] sm:$0xf]
    %v51 = vld [vmem:[%s0 + $0x18] sm:$0xf]
    %v52 = vld [vmem:[%s0 + $0x1c] sm:$0xf]
    %v53 = vld [vmem:[%s3] sm:$0xff]
    %v54 = vld [vmem:[%s3 + $0x8] sm:$0xff]
    %v55 = vld [vmem:[%s3 + $0x10] sm:$0xff]
    %v56 = vld [vmem:[%s3 + $0x18] sm:$0xff]
    %v57 = vld [vmem:[%s3 + $0x20] sm:$0xff]
    %v58 = vld [vmem:[%s3 + $0x28] sm:$0xff]
    %v59 = vld [vmem:[%s3 + $0x30] sm:$0xff]
    %v60 = vld [vmem:[%s3 + $0x38] sm:$0xff]
    %v61 = vld [vmem:[%s5] sm:$0xff]
    %v63 = vlaneseq
    %v64 = vshrl.u32 %v63, 7
    %v65 = vsub.s32 0, %v64
    %v66 = vrot.slane %v61, %v65
    %v67 = vlaneseq
    %v68 = vshrl.u32 %v67, 7
    %v69 = vsub.s32 1, %v68
    %v70 = vrot.slane %v61, %v69
    %v71 = vlaneseq
    %v72 = vshrl.u32 %v71, 7
    %v73 = vsub.s32 2, %v72
    %v74 = vrot.slane %v61, %v73
    %v75 = vlaneseq
    %v76 = vshrl.u32 %v75, 7
    %v77 = vsub.s32 3, %v76
    %v78 = vrot.slane %v61, %v77
    %v79 = vlaneseq
    %v80 = vshrl.u32 %v79, 7
    %v81 = vsub.s32 4, %v80
    %v82 = vrot.slane %v61, %v81
    %v83 = vlaneseq
    %v84 = vshrl.u32 %v83, 7
    %v85 = vsub.s32 5, %v84
    %v86 = vrot.slane %v61, %v85
    %v87 = vlaneseq
    %v88 = vshrl.u32 %v87, 7
    %v89 = vsub.s32 6, %v88
    %v90 = vrot.slane %v61, %v89
    %v91 = vlaneseq
    %v92 = vshrl.u32 %v91, 7
    %v93 = vsub.s32 7, %v92
    %v94 = vrot.slane %v61, %v93
    %v111 = vunpack.c.l.b16 %v45
    %v112 = vunpack.c.l.b16 %v46
    %v113 = vunpack.c.l.b16 %v47
    %v114 = vunpack.c.l.b16 %v48
    %v115 = vunpack.c.l.b16 %v49
    %v116 = vunpack.c.l.b16 %v50
    %v117 = vunpack.c.l.b16 %v51
    %v118 = vunpack.c.l.b16 %v52
    %v119 = vpack.c.b16 %v112, %v111
    %v120 = vpack.c.b16 %v114, %v113
    %v121 = vpack.c.b16 %v116, %v115
    %v122 = vpack.c.b16 %v118, %v117
    %v131 = vunpack.c.l.b16 %v53
    %v132 = vunpack.c.h.b16 %v53
    %v133 = vunpack.c.l.b16 %v54
    %v134 = vunpack.c.h.b16 %v54
    %v135 = vunpack.c.l.b16 %v55
    %v136 = vunpack.c.h.b16 %v55
    %v137 = vunpack.c.l.b16 %v56
    %v138 = vunpack.c.h.b16 %v56
    %v139 = vunpack.c.l.b16 %v57
    %v140 = vunpack.c.h.b16 %v57
    %v141 = vunpack.c.l.b16 %v58
    %v142 = vunpack.c.h.b16 %v58
    %v143 = vunpack.c.l.b16 %v59
    %v144 = vunpack.c.h.b16 %v59
    %v145 = vunpack.c.l.b16 %v60
    %v146 = vunpack.c.h.b16 %v60
    %v147 = vpack.c.b16 %v139, %v131
    %v148 = vpack.c.b16 %v140, %v132
    %v149 = vpack.c.b16 %v141, %v133
    %v150 = vpack.c.b16 %v142, %v134
    %v151 = vpack.c.b16 %v143, %v135
    %v152 = vpack.c.b16 %v144, %v136
    %v153 = vpack.c.b16 %v145, %v137
    %v154 = vpack.c.b16 %v146, %v138
    %vm163 = vcmask 130048
    %v165 = vsel %vm163, %v119, 0
    %v168 = vsel %vm163, %v120, 0
    %v171 = vsel %vm163, %v121, 0
    %v174 = vsel %vm163, %v122, 0
    %176 = vmatprep.subr.bf16.mxu0 0
    %177 = vmatpush1.bf16.msra.mxu0 0
    %178 = vmatprep.subr.bf16.mxu0 0
    %179 = vmatpush1.bf16.msra.mxu0 0
    %180 = vmatprep.subr.bf16.mxu0 0
    %181 = vmatpush1.bf16.msra.mxu0 0
    %182 = vmatprep.subr.bf16.mxu0 0
    %183 = vmatpush1.bf16.msra.mxu0 0
    %184 = vmatprep.subr.bf16.mxu0 0
    %185 = vmatpush1.bf16.msra.mxu0 0
    %186 = vmatprep.subr.bf16.mxu0 0
    %187 = vmatpush1.bf16.msra.mxu0 0
    %188 = vmatprep.subr.bf16.mxu0 0
    %189 = vmatpush1.bf16.msra.mxu0 0
    %190 = vmatprep.subr.bf16.mxu0 %v148
    %191 = vmatpush1.bf16.msra.mxu0 %v147
    %192 = vmatprep.subr.bf16.mxu0 0
    %193 = vmatpush2.bf16.msra.mxu0 0
    %194 = vmatprep.subr.bf16.mxu0 0
    %195 = vmatpush2.bf16.msra.mxu0 0
    %196 = vmatprep.subr.bf16.mxu0 0
    %197 = vmatpush2.bf16.msra.mxu0 0
    %198 = vmatprep.subr.bf16.mxu0 0
    %199 = vmatpush2.bf16.msra.mxu0 0
    %200 = vmatprep.subr.bf16.mxu0 0
    %201 = vmatpush2.bf16.msra.mxu0 0
    %202 = vmatprep.subr.bf16.mxu0 0
    %203 = vmatpush2.bf16.msra.mxu0 0
    %204 = vmatprep.subr.bf16.mxu0 0
    %205 = vmatpush2.bf16.msra.mxu0 0
    %206 = vmatprep.subr.bf16.mxu0 0
    %207 = vmatpush2.bf16.msra.mxu0 0
    %208 = vmatprep.mubr.bf16.mxu0 0
    %209 = vmatmul.mubr.bf16.gmra.mxu0 %v165
    %v210 = vpop.f32.mrf.mxu0
    %v211 = vadd.f32 %v66, %v210
    %v212 = vpop.f32.mrf.mxu0
    %v213 = vadd.f32 %v70, %v212
    %v214 = vpop.f32.mrf.mxu0
    %v215 = vadd.f32 %v66, %v214
    %v216 = vpop.f32.mrf.mxu0
    %v217 = vadd.f32 %v70, %v216
    %218 = vmatprep.mubr.bf16.mxu0 0
    %219 = vmatmul.mubr.bf16.gmra.mxu0 %v168
    %v220 = vpop.f32.mrf.mxu0
    %v221 = vadd.f32 %v66, %v220
    %v222 = vpop.f32.mrf.mxu0
    %v223 = vadd.f32 %v70, %v222
    %v224 = vpop.f32.mrf.mxu0
    %v225 = vadd.f32 %v66, %v224
    %v226 = vpop.f32.mrf.mxu0
    %v227 = vadd.f32 %v70, %v226
    %228 = vmatprep.mubr.bf16.mxu0 0
    %229 = vmatmul.mubr.bf16.gmra.mxu0 %v171
    %v230 = vpop.f32.mrf.mxu0
    %v231 = vadd.f32 %v66, %v230
    %v232 = vpop.f32.mrf.mxu0
    %v233 = vadd.f32 %v70, %v232
    %v234 = vpop.f32.mrf.mxu0
    %v235 = vadd.f32 %v66, %v234
    %v236 = vpop.f32.mrf.mxu0
    %v237 = vadd.f32 %v70, %v236
    %238 = vmatprep.mubr.bf16.mxu0 0
    %239 = vmatmul.mubr.bf16.gmra.mxu0 %v174
    %v240 = vpop.f32.mrf.mxu0
    %v241 = vadd.f32 %v66, %v240
    %v242 = vpop.f32.mrf.mxu0
    %v243 = vadd.f32 %v70, %v242
    %v244 = vpop.f32.mrf.mxu0
    %v245 = vadd.f32 %v66, %v244
    %v246 = vpop.f32.mrf.mxu0
    %v247 = vadd.f32 %v70, %v246
    %248 = vdwg.mxu0
    %249 = vmatprep.subr.bf16.mxu0 0
    %250 = vmatpush1.bf16.msra.mxu0 0
    %251 = vmatprep.subr.bf16.mxu0 0
    %252 = vmatpush1.bf16.msra.mxu0 0
    %253 = vmatprep.subr.bf16.mxu0 0
    %254 = vmatpush1.bf16.msra.mxu0 0
    %255 = vmatprep.subr.bf16.mxu0 0
    %256 = vmatpush1.bf16.msra.mxu0 0
    %257 = vmatprep.subr.bf16.mxu0 0
    %258 = vmatpush1.bf16.msra.mxu0 0
    %259 = vmatprep.subr.bf16.mxu0 0
    %260 = vmatpush1.bf16.msra.mxu0 0
    %261 = vmatprep.subr.bf16.mxu0 0
    %262 = vmatpush1.bf16.msra.mxu0 0
    %263 = vmatprep.subr.bf16.mxu0 %v150
    %264 = vmatpush1.bf16.msra.mxu0 %v149
    %265 = vmatprep.subr.bf16.mxu0 0
    %266 = vmatpush2.bf16.msra.mxu0 0
    %267 = vmatprep.subr.bf16.mxu0 0
    %268 = vmatpush2.bf16.msra.mxu0 0
    %269 = vmatprep.subr.bf16.mxu0 0
    %270 = vmatpush2.bf16.msra.mxu0 0
    %271 = vmatprep.subr.bf16.mxu0 0
    %272 = vmatpush2.bf16.msra.mxu0 0
    %273 = vmatprep.subr.bf16.mxu0 0
    %274 = vmatpush2.bf16.msra.mxu0 0
    %275 = vmatprep.subr.bf16.mxu0 0
    %276 = vmatpush2.bf16.msra.mxu0 0
    %277 = vmatprep.subr.bf16.mxu0 0
    %278 = vmatpush2.bf16.msra.mxu0 0
    %279 = vmatprep.subr.bf16.mxu0 0
    %280 = vmatpush2.bf16.msra.mxu0 0
    %281 = vmatprep.mubr.bf16.mxu0 0
    %282 = vmatmul.mubr.bf16.gmra.mxu0 %v165
    %v283 = vpop.f32.mrf.mxu0
    %v284 = vadd.f32 %v74, %v283
    %v285 = vpop.f32.mrf.mxu0
    %v286 = vadd.f32 %v78, %v285
    %v287 = vpop.f32.mrf.mxu0
    %v288 = vadd.f32 %v74, %v287
    %v289 = vpop.f32.mrf.mxu0
    %v290 = vadd.f32 %v78, %v289
    %291 = vmatprep.mubr.bf16.mxu0 0
    %292 = vmatmul.mubr.bf16.gmra.mxu0 %v168
    %v293 = vpop.f32.mrf.mxu0
    %v294 = vadd.f32 %v74, %v293
    %v295 = vpop.f32.mrf.mxu0
    %v296 = vadd.f32 %v78, %v295
    %v297 = vpop.f32.mrf.mxu0
    %v298 = vadd.f32 %v74, %v297
    %v299 = vpop.f32.mrf.mxu0
    %v300 = vadd.f32 %v78, %v299
    %301 = vmatprep.mubr.bf16.mxu0 0
    %302 = vmatmul.mubr.bf16.gmra.mxu0 %v171
    %v303 = vpop.f32.mrf.mxu0
    %v304 = vadd.f32 %v74, %v303
    %v305 = vpop.f32.mrf.mxu0
    %v306 = vadd.f32 %v78, %v305
    %v307 = vpop.f32.mrf.mxu0
    %v308 = vadd.f32 %v74, %v307
    %v309 = vpop.f32.mrf.mxu0
    %v310 = vadd.f32 %v78, %v309
    %311 = vmatprep.mubr.bf16.mxu0 0
    %312 = vmatmul.mubr.bf16.gmra.mxu0 %v174
    %v313 = vpop.f32.mrf.mxu0
    %v314 = vadd.f32 %v74, %v313
    %v315 = vpop.f32.mrf.mxu0
    %v316 = vadd.f32 %v78, %v315
    %v317 = vpop.f32.mrf.mxu0
    %v318 = vadd.f32 %v74, %v317
    %v319 = vpop.f32.mrf.mxu0
    %v320 = vadd.f32 %v78, %v319
    %321 = vdwg.mxu0
    %322 = vmatprep.subr.bf16.mxu0 0
    %323 = vmatpush1.bf16.msra.mxu0 0
    %324 = vmatprep.subr.bf16.mxu0 0
    %325 = vmatpush1.bf16.msra.mxu0 0
    %326 = vmatprep.subr.bf16.mxu0 0
    %327 = vmatpush1.bf16.msra.mxu0 0
    %328 = vmatprep.subr.bf16.mxu0 0
    %329 = vmatpush1.bf16.msra.mxu0 0
    %330 = vmatprep.subr.bf16.mxu0 0
    %331 = vmatpush1.bf16.msra.mxu0 0
    %332 = vmatprep.subr.bf16.mxu0 0
    %333 = vmatpush1.bf16.msra.mxu0 0
    %334 = vmatprep.subr.bf16.mxu0 0
    %335 = vmatpush1.bf16.msra.mxu0 0
    %336 = vmatprep.subr.bf16.mxu0 %v152
    %337 = vmatpush1.bf16.msra.mxu0 %v151
    %338 = vmatprep.subr.bf16.mxu0 0
    %339 = vmatpush2.bf16.msra.mxu0 0
    %340 = vmatprep.subr.bf16.mxu0 0
    %341 = vmatpush2.bf16.msra.mxu0 0
    %342 = vmatprep.subr.bf16.mxu0 0
    %343 = vmatpush2.bf16.msra.mxu0 0
    %344 = vmatprep.subr.bf16.mxu0 0
    %345 = vmatpush2.bf16.msra.mxu0 0
    %346 = vmatprep.subr.bf16.mxu0 0
    %347 = vmatpush2.bf16.msra.mxu0 0
    %348 = vmatprep.subr.bf16.mxu0 0
    %349 = vmatpush2.bf16.msra.mxu0 0
    %350 = vmatprep.subr.bf16.mxu0 0
    %351 = vmatpush2.bf16.msra.mxu0 0
    %352 = vmatprep.subr.bf16.mxu0 0
    %353 = vmatpush2.bf16.msra.mxu0 0
    %354 = vmatprep.mubr.bf16.mxu0 0
    %355 = vmatmul.mubr.bf16.gmra.mxu0 %v165
    %v356 = vpop.f32.mrf.mxu0
    %v357 = vadd.f32 %v82, %v356
    %v358 = vpop.f32.mrf.mxu0
    %v359 = vadd.f32 %v86, %v358
    %v360 = vpop.f32.mrf.mxu0
    %v361 = vadd.f32 %v82, %v360
    %v362 = vpop.f32.mrf.mxu0
    %v363 = vadd.f32 %v86, %v362
    %364 = vmatprep.mubr.bf16.mxu0 0
    %365 = vmatmul.mubr.bf16.gmra.mxu0 %v168
    %v366 = vpop.f32.mrf.mxu0
    %v367 = vadd.f32 %v82, %v366
    %v368 = vpop.f32.mrf.mxu0
    %v369 = vadd.f32 %v86, %v368
    %v370 = vpop.f32.mrf.mxu0
    %v371 = vadd.f32 %v82, %v370
    %v372 = vpop.f32.mrf.mxu0
    %v373 = vadd.f32 %v86, %v372
    %374 = vmatprep.mubr.bf16.mxu0 0
    %375 = vmatmul.mubr.bf16.gmra.mxu0 %v171
    %v376 = vpop.f32.mrf.mxu0
    %v377 = vadd.f32 %v82, %v376
    %v378 = vpop.f32.mrf.mxu0
    %v379 = vadd.f32 %v86, %v378
    %v380 = vpop.f32.mrf.mxu0
    %v381 = vadd.f32 %v82, %v380
    %v382 = vpop.f32.mrf.mxu0
    %v383 = vadd.f32 %v86, %v382
    %384 = vmatprep.mubr.bf16.mxu0 0
    %385 = vmatmul.mubr.bf16.gmra.mxu0 %v174
    %v386 = vpop.f32.mrf.mxu0
    %v387 = vadd.f32 %v82, %v386
    %v388 = vpop.f32.mrf.mxu0
    %v389 = vadd.f32 %v86, %v388
    %v390 = vpop.f32.mrf.mxu0
    %v391 = vadd.f32 %v82, %v390
    %v392 = vpop.f32.mrf.mxu0
    %v393 = vadd.f32 %v86, %v392
    %394 = vdwg.mxu0
    %395 = vmatprep.subr.bf16.mxu0 0
    %396 = vmatpush1.bf16.msra.mxu0 0
    %397 = vmatprep.subr.bf16.mxu0 0
    %398 = vmatpush1.bf16.msra.mxu0 0
    %399 = vmatprep.subr.bf16.mxu0 0
    %400 = vmatpush1.bf16.msra.mxu0 0
    %401 = vmatprep.subr.bf16.mxu0 0
    %402 = vmatpush1.bf16.msra.mxu0 0
    %403 = vmatprep.subr.bf16.mxu0 0
    %404 = vmatpush1.bf16.msra.mxu0 0
    %405 = vmatprep.subr.bf16.mxu0 0
    %406 = vmatpush1.bf16.msra.mxu0 0
    %407 = vmatprep.subr.bf16.mxu0 0
    %408 = vmatpush1.bf16.msra.mxu0 0
    %409 = vmatprep.subr.bf16.mxu0 %v154
    %410 = vmatpush1.bf16.msra.mxu0 %v153
    %411 = vmatprep.subr.bf16.mxu0 0
    %412 = vmatpush2.bf16.msra.mxu0 0
    %413 = vmatprep.subr.bf16.mxu0 0
    %414 = vmatpush2.bf16.msra.mxu0 0
    %415 = vmatprep.subr.bf16.mxu0 0
    %416 = vmatpush2.bf16.msra.mxu0 0
    %417 = vmatprep.subr.bf16.mxu0 0
    %418 = vmatpush2.bf16.msra.mxu0 0
    %419 = vmatprep.subr.bf16.mxu0 0
    %420 = vmatpush2.bf16.msra.mxu0 0
    %421 = vmatprep.subr.bf16.mxu0 0
    %422 = vmatpush2.bf16.msra.mxu0 0
    %423 = vmatprep.subr.bf16.mxu0 0
    %424 = vmatpush2.bf16.msra.mxu0 0
    %425 = vmatprep.subr.bf16.mxu0 0
    %426 = vmatpush2.bf16.msra.mxu0 0
    %427 = vmatprep.mubr.bf16.mxu0 0
    %428 = vmatmul.mubr.bf16.gmra.mxu0 %v165
    %v429 = vpop.f32.mrf.mxu0
    %v430 = vadd.f32 %v90, %v429
    %v431 = vpop.f32.mrf.mxu0
    %v432 = vadd.f32 %v94, %v431
    %v433 = vpop.f32.mrf.mxu0
    %v434 = vadd.f32 %v90, %v433
    %v435 = vpop.f32.mrf.mxu0
    %v436 = vadd.f32 %v94, %v435
    %437 = vmatprep.mubr.bf16.mxu0 0
    %438 = vmatmul.mubr.bf16.gmra.mxu0 %v168
    %v439 = vpop.f32.mrf.mxu0
    %v440 = vadd.f32 %v90, %v439
    %v441 = vpop.f32.mrf.mxu0
    %v442 = vadd.f32 %v94, %v441
    %v443 = vpop.f32.mrf.mxu0
    %v444 = vadd.f32 %v90, %v443
    %v445 = vpop.f32.mrf.mxu0
    %v446 = vadd.f32 %v94, %v445
    %447 = vmatprep.mubr.bf16.mxu0 0
    %448 = vmatmul.mubr.bf16.gmra.mxu0 %v171
    %v449 = vpop.f32.mrf.mxu0
    %v450 = vadd.f32 %v90, %v449
    %v451 = vpop.f32.mrf.mxu0
    %v452 = vadd.f32 %v94, %v451
    %v453 = vpop.f32.mrf.mxu0
    %v454 = vadd.f32 %v90, %v453
    %v455 = vpop.f32.mrf.mxu0
    %v456 = vadd.f32 %v94, %v455
    %457 = vmatprep.mubr.bf16.mxu0 0
    %458 = vmatmul.mubr.bf16.gmra.mxu0 %v174
    %v459 = vpop.f32.mrf.mxu0
    %v460 = vadd.f32 %v90, %v459
    %v461 = vpop.f32.mrf.mxu0
    %v462 = vadd.f32 %v94, %v461
    %v463 = vpop.f32.mrf.mxu0
    %v464 = vadd.f32 %v90, %v463
    %v465 = vpop.f32.mrf.mxu0
    %v466 = vadd.f32 %v94, %v465
    %467 = vdwg.mxu0
    %v468 = vld [vmem:[#allocation2] sm:$0xff]
    %v469 = vld [vmem:[#allocation2 + $0x8] sm:$0xff]
    %v470 = vld [vmem:[#allocation2 + $0x10] sm:$0xff]
    %v471 = vld [vmem:[#allocation2 + $0x18] sm:$0xff]
    %v472 = vld [vmem:[#allocation2 + $0x20] sm:$0xff]
    %v473 = vld [vmem:[#allocation2 + $0x28] sm:$0xff]
    %v474 = vld [vmem:[#allocation2 + $0x30] sm:$0xff]
    %v475 = vld [vmem:[#allocation2 + $0x38] sm:$0xff]
    %v476 = vld [vmem:[#allocation2 + $0x40] sm:$0xff]
    %v477 = vld [vmem:[#allocation2 + $0x48] sm:$0xff]
    %v478 = vld [vmem:[#allocation2 + $0x50] sm:$0xff]
    %v479 = vld [vmem:[#allocation2 + $0x58] sm:$0xff]
    %v480 = vld [vmem:[#allocation2 + $0x60] sm:$0xff]
    %v481 = vld [vmem:[#allocation2 + $0x68] sm:$0xff]
    %v482 = vld [vmem:[#allocation2 + $0x70] sm:$0xff]
    %v483 = vld [vmem:[#allocation2 + $0x78] sm:$0xff]
    %v484 = vld [vmem:[#allocation2 + $0x80] sm:$0xff]
    %v485 = vld [vmem:[#allocation2 + $0x88] sm:$0xff]
    %v486 = vld [vmem:[#allocation2 + $0x90] sm:$0xff]
    %v487 = vld [vmem:[#allocation2 + $0x98] sm:$0xff]
    %v488 = vld [vmem:[#allocation2 + $0xa0] sm:$0xff]
    %v489 = vld [vmem:[#allocation2 + $0xa8] sm:$0xff]
    %v490 = vld [vmem:[#allocation2 + $0xb0] sm:$0xff]
    %v491 = vld [vmem:[#allocation2 + $0xb8] sm:$0xff]
    %v492 = vld [vmem:[#allocation2 + $0xc0] sm:$0xff]
    %v493 = vld [vmem:[#allocation2 + $0xc8] sm:$0xff]
    %v494 = vld [vmem:[#allocation2 + $0xd0] sm:$0xff]
    %v495 = vld [vmem:[#allocation2 + $0xd8] sm:$0xff]
    %v496 = vld [vmem:[#allocation2 + $0xe0] sm:$0xff]
    %v497 = vld [vmem:[#allocation2 + $0xe8] sm:$0xff]
    %v498 = vld [vmem:[#allocation2 + $0xf0] sm:$0xff]
    %v499 = vld [vmem:[#allocation2 + $0xf8] sm:$0xff]
    %v500 = vld [vmem:[#allocation2 + $0x100] sm:$0xff]
    %v501 = vld [vmem:[#allocation2 + $0x108] sm:$0xff]
    %v502 = vld [vmem:[#allocation2 + $0x110] sm:$0xff]
    %v503 = vld [vmem:[#allocation2 + $0x118] sm:$0xff]
    %v504 = vld [vmem:[#allocation2 + $0x120] sm:$0xff]
    %v505 = vld [vmem:[#allocation2 + $0x128] sm:$0xff]
    %v506 = vld [vmem:[#allocation2 + $0x130] sm:$0xff]
    %v507 = vld [vmem:[#allocation2 + $0x138] sm:$0xff]
    %v508 = vld [vmem:[#allocation2 + $0x140] sm:$0xff]
    %v509 = vld [vmem:[#allocation2 + $0x148] sm:$0xff]
    %v510 = vld [vmem:[#allocation2 + $0x150] sm:$0xff]
    %v511 = vld [vmem:[#allocation2 + $0x158] sm:$0xff]
    %v512 = vld [vmem:[#allocation2 + $0x160] sm:$0xff]
    %v513 = vld [vmem:[#allocation2 + $0x168] sm:$0xff]
    %v514 = vld [vmem:[#allocation2 + $0x170] sm:$0xff]
    %v515 = vld [vmem:[#allocation2 + $0x178] sm:$0xff]
    %v516 = vld [vmem:[#allocation2 + $0x180] sm:$0xff]
    %v517 = vld [vmem:[#allocation2 + $0x188] sm:$0xff]
    %v518 = vld [vmem:[#allocation2 + $0x190] sm:$0xff]
    %v519 = vld [vmem:[#allocation2 + $0x198] sm:$0xff]
    %v520 = vld [vmem:[#allocation2 + $0x1a0] sm:$0xff]
    %v521 = vld [vmem:[#allocation2 + $0x1a8] sm:$0xff]
    %v522 = vld [vmem:[#allocation2 + $0x1b0] sm:$0xff]
    %v523 = vld [vmem:[#allocation2 + $0x1b8] sm:$0xff]
    %v524 = vld [vmem:[#allocation2 + $0x1c0] sm:$0xff]
    %v525 = vld [vmem:[#allocation2 + $0x1c8] sm:$0xff]
    %v526 = vld [vmem:[#allocation2 + $0x1d0] sm:$0xff]
    %v527 = vld [vmem:[#allocation2 + $0x1d8] sm:$0xff]
    %v528 = vld [vmem:[#allocation2 + $0x1e0] sm:$0xff]
    %v529 = vld [vmem:[#allocation2 + $0x1e8] sm:$0xff]
    %v530 = vld [vmem:[#allocation2 + $0x1f0] sm:$0xff]
    %v531 = vld [vmem:[#allocation2 + $0x1f8] sm:$0xff]
    %v532 = vld [vmem:[#allocation2 + $0x200] sm:$0xff]
    %v533 = vld [vmem:[#allocation2 + $0x208] sm:$0xff]
    %v534 = vld [vmem:[#allocation2 + $0x210] sm:$0xff]
    %v535 = vld [vmem:[#allocation2 + $0x218] sm:$0xff]
    %v536 = vld [vmem:[#allocation2 + $0x220] sm:$0xff]
    %v537 = vld [vmem:[#allocation2 + $0x228] sm:$0xff]
    %v538 = vld [vmem:[#allocation2 + $0x230] sm:$0xff]
    %v539 = vld [vmem:[#allocation2 + $0x238] sm:$0xff]
    %v540 = vld [vmem:[#allocation2 + $0x240] sm:$0xff]
    %v541 = vld [vmem:[#allocation2 + $0x248] sm:$0xff]
    %v542 = vld [vmem:[#allocation2 + $0x250] sm:$0xff]
    %v543 = vld [vmem:[#allocation2 + $0x258] sm:$0xff]
    %v544 = vld [vmem:[#allocation2 + $0x260] sm:$0xff]
    %v545 = vld [vmem:[#allocation2 + $0x268] sm:$0xff]
    %v546 = vld [vmem:[#allocation2 + $0x270] sm:$0xff]
    %v547 = vld [vmem:[#allocation2 + $0x278] sm:$0xff]
    %v548 = vld [vmem:[#allocation2 + $0x280] sm:$0xff]
    %v549 = vld [vmem:[#allocation2 + $0x288] sm:$0xff]
    %v550 = vld [vmem:[#allocation2 + $0x290] sm:$0xff]
    %v551 = vld [vmem:[#allocation2 + $0x298] sm:$0xff]
    %v552 = vld [vmem:[#allocation2 + $0x2a0] sm:$0xff]
    %v553 = vld [vmem:[#allocation2 + $0x2a8] sm:$0xff]
    %v554 = vld [vmem:[#allocation2 + $0x2b0] sm:$0xff]
    %v555 = vld [vmem:[#allocation2 + $0x2b8] sm:$0xff]
    %v556 = vld [vmem:[#allocation2 + $0x2c0] sm:$0xff]
    %v557 = vld [vmem:[#allocation2 + $0x2c8] sm:$0xff]
    %v558 = vld [vmem:[#allocation2 + $0x2d0] sm:$0xff]
    %v559 = vld [vmem:[#allocation2 + $0x2d8] sm:$0xff]
    %v560 = vld [vmem:[#allocation2 + $0x2e0] sm:$0xff]
    %v561 = vld [vmem:[#allocation2 + $0x2e8] sm:$0xff]
    %v562 = vld [vmem:[#allocation2 + $0x2f0] sm:$0xff]
    %v563 = vld [vmem:[#allocation2 + $0x2f8] sm:$0xff]
    %v564 = vld [vmem:[#allocation2 + $0x300] sm:$0xff]
    %v565 = vld [vmem:[#allocation2 + $0x308] sm:$0xff]
    %v566 = vld [vmem:[#allocation2 + $0x310] sm:$0xff]
    %v567 = vld [vmem:[#allocation2 + $0x318] sm:$0xff]
    %v568 = vld [vmem:[#allocation2 + $0x320] sm:$0xff]
    %v569 = vld [vmem:[#allocation2 + $0x328] sm:$0xff]
    %v570 = vld [vmem:[#allocation2 + $0x330] sm:$0xff]
    %v571 = vld [vmem:[#allocation2 + $0x338] sm:$0xff]
    %v572 = vld [vmem:[#allocation2 + $0x340] sm:$0xff]
    %v573 = vld [vmem:[#allocation2 + $0x348] sm:$0xff]
    %v574 = vld [vmem:[#allocation2 + $0x350] sm:$0xff]
    %v575 = vld [vmem:[#allocation2 + $0x358] sm:$0xff]
    %v576 = vld [vmem:[#allocation2 + $0x360] sm:$0xff]
    %v577 = vld [vmem:[#allocation2 + $0x368] sm:$0xff]
    %v578 = vld [vmem:[#allocation2 + $0x370] sm:$0xff]
    %v579 = vld [vmem:[#allocation2 + $0x378] sm:$0xff]
    %v580 = vld [vmem:[#allocation2 + $0x380] sm:$0xff]
    %v581 = vld [vmem:[#allocation2 + $0x388] sm:$0xff]
    %v582 = vld [vmem:[#allocation2 + $0x390] sm:$0xff]
    %v583 = vld [vmem:[#allocation2 + $0x398] sm:$0xff]
    %v584 = vld [vmem:[#allocation2 + $0x3a0] sm:$0xff]
    %v585 = vld [vmem:[#allocation2 + $0x3a8] sm:$0xff]
    %v586 = vld [vmem:[#allocation2 + $0x3b0] sm:$0xff]
    %v587 = vld [vmem:[#allocation2 + $0x3b8] sm:$0xff]
    %v588 = vld [vmem:[#allocation2 + $0x3c0] sm:$0xff]
    %v589 = vld [vmem:[#allocation2 + $0x3c8] sm:$0xff]
    %v590 = vld [vmem:[#allocation2 + $0x3d0] sm:$0xff]
    %v591 = vld [vmem:[#allocation2 + $0x3d8] sm:$0xff]
    %v592 = vld [vmem:[#allocation2 + $0x3e0] sm:$0xff]
    %v593 = vld [vmem:[#allocation2 + $0x3e8] sm:$0xff]
    %v594 = vld [vmem:[#allocation2 + $0x3f0] sm:$0xff]
    %v595 = vld [vmem:[#allocation2 + $0x3f8] sm:$0xff]
    %v596 = vld [vmem:[%s1] sm:$0xff]
    %v597 = vld [vmem:[%s1 + $0x8] sm:$0xff]
    %v598 = vld [vmem:[%s2] sm:$0xff]
    %v599 = vld [vmem:[%s2 + $0x8] sm:$0xff]
    %v600 = vpack.c.bf16 %v596, %v596
    %v601 = vpack.c.bf16 %v597, %v597
    %v730 = vunpack.c.l.b16 %v468
    %v731 = vunpack.c.h.b16 %v468
    %v732 = vunpack.c.l.b16 %v469
    %v733 = vunpack.c.h.b16 %v469
    %v734 = vunpack.c.l.b16 %v470
    %v735 = vunpack.c.h.b16 %v470
    %v736 = vunpack.c.l.b16 %v471
    %v737 = vunpack.c.h.b16 %v471
    %v738 = vunpack.c.l.b16 %v472
    %v739 = vunpack.c.h.b16 %v472
    %v740 = vunpack.c.l.b16 %v473
    %v741 = vunpack.c.h.b16 %v473
    %v742 = vunpack.c.l.b16 %v474
    %v743 = vunpack.c.h.b16 %v474
    %v744 = vunpack.c.l.b16 %v475
    %v745 = vunpack.c.h.b16 %v475
    %v746 = vunpack.c.l.b16 %v476
    %v747 = vunpack.c.h.b16 %v476
    %v748 = vunpack.c.l.b16 %v477
    %v749 = vunpack.c.h.b16 %v477
    %v750 = vunpack.c.l.b16 %v478
    %v751 = vunpack.c.h.b16 %v478
    %v752 = vunpack.c.l.b16 %v479
    %v753 = vunpack.c.h.b16 %v479
    %v754 = vunpack.c.l.b16 %v480
    %v755 = vunpack.c.h.b16 %v480
    %v756 = vunpack.c.l.b16 %v481
    %v757 = vunpack.c.h.b16 %v481
    %v758 = vunpack.c.l.b16 %v482
    %v759 = vunpack.c.h.b16 %v482
    %v760 = vunpack.c.l.b16 %v483
    %v761 = vunpack.c.h.b16 %v483
    %v762 = vunpack.c.l.b16 %v484
    %v763 = vunpack.c.h.b16 %v484
    %v764 = vunpack.c.l.b16 %v485
    %v765 = vunpack.c.h.b16 %v485
    %v766 = vunpack.c.l.b16 %v486
    %v767 = vunpack.c.h.b16 %v486
    %v768 = vunpack.c.l.b16 %v487
    %v769 = vunpack.c.h.b16 %v487
    %v770 = vunpack.c.l.b16 %v488
    %v771 = vunpack.c.h.b16 %v488
    %v772 = vunpack.c.l.b16 %v489
    %v773 = vunpack.c.h.b16 %v489
    %v774 = vunpack.c.l.b16 %v490
    %v775 = vunpack.c.h.b16 %v490
    %v776 = vunpack.c.l.b16 %v491
    %v777 = vunpack.c.h.b16 %v491
    %v778 = vunpack.c.l.b16 %v492
    %v779 = vunpack.c.h.b16 %v492
    %v780 = vunpack.c.l.b16 %v493
    %v781 = vunpack.c.h.b16 %v493
    %v782 = vunpack.c.l.b16 %v494
    %v783 = vunpack.c.h.b16 %v494
    %v784 = vunpack.c.l.b16 %v495
    %v785 = vunpack.c.h.b16 %v495
    %v786 = vunpack.c.l.b16 %v496
    %v787 = vunpack.c.h.b16 %v496
    %v788 = vunpack.c.l.b16 %v497
    %v789 = vunpack.c.h.b16 %v497
    %v790 = vunpack.c.l.b16 %v498
    %v791 = vunpack.c.h.b16 %v498
    %v792 = vunpack.c.l.b16 %v499
    %v793 = vunpack.c.h.b16 %v499
    %v794 = vunpack.c.l.b16 %v500
    %v795 = vunpack.c.h.b16 %v500
    %v796 = vunpack.c.l.b16 %v501
    %v797 = vunpack.c.h.b16 %v501
    %v798 = vunpack.c.l.b16 %v502
    %v799 = vunpack.c.h.b16 %v502
    %v800 = vunpack.c.l.b16 %v503
    %v801 = vunpack.c.h.b16 %v503
    %v802 = vunpack.c.l.b16 %v504
    %v803 = vunpack.c.h.b16 %v504
    %v804 = vunpack.c.l.b16 %v505
    %v805 = vunpack.c.h.b16 %v505
    %v806 = vunpack.c.l.b16 %v506
    %v807 = vunpack.c.h.b16 %v506
    %v808 = vunpack.c.l.b16 %v507
    %v809 = vunpack.c.h.b16 %v507
    %v810 = vunpack.c.l.b16 %v508
    %v811 = vunpack.c.h.b16 %v508
    %v812 = vunpack.c.l.b16 %v509
    %v813 = vunpack.c.h.b16 %v509
    %v814 = vunpack.c.l.b16 %v510
    %v815 = vunpack.c.h.b16 %v510
    %v816 = vunpack.c.l.b16 %v511
    %v817 = vunpack.c.h.b16 %v511
    %v818 = vunpack.c.l.b16 %v512
    %v819 = vunpack.c.h.b16 %v512
    %v820 = vunpack.c.l.b16 %v513
    %v821 = vunpack.c.h.b16 %v513
    %v822 = vunpack.c.l.b16 %v514
    %v823 = vunpack.c.h.b16 %v514
    %v824 = vunpack.c.l.b16 %v515
    %v825 = vunpack.c.h.b16 %v515
    %v826 = vunpack.c.l.b16 %v516
    %v827 = vunpack.c.h.b16 %v516
    %v828 = vunpack.c.l.b16 %v517
    %v829 = vunpack.c.h.b16 %v517
    %v830 = vunpack.c.l.b16 %v518
    %v831 = vunpack.c.h.b16 %v518
    %v832 = vunpack.c.l.b16 %v519
    %v833 = vunpack.c.h.b16 %v519
    %v834 = vunpack.c.l.b16 %v520
    %v835 = vunpack.c.h.b16 %v520
    %v836 = vunpack.c.l.b16 %v521
    %v837 = vunpack.c.h.b16 %v521
    %v838 = vunpack.c.l.b16 %v522
    %v839 = vunpack.c.h.b16 %v522
    %v840 = vunpack.c.l.b16 %v523
    %v841 = vunpack.c.h.b16 %v523
    %v842 = vunpack.c.l.b16 %v524
    %v843 = vunpack.c.h.b16 %v524
    %v844 = vunpack.c.l.b16 %v525
    %v845 = vunpack.c.h.b16 %v525
    %v846 = vunpack.c.l.b16 %v526
    %v847 = vunpack.c.h.b16 %v526
    %v848 = vunpack.c.l.b16 %v527
    %v849 = vunpack.c.h.b16 %v527
    %v850 = vunpack.c.l.b16 %v528
    %v851 = vunpack.c.h.b16 %v528
    %v852 = vunpack.c.l.b16 %v529
    %v853 = vunpack.c.h.b16 %v529
    %v854 = vunpack.c.l.b16 %v530
    %v855 = vunpack.c.h.b16 %v530
    %v856 = vunpack.c.l.b16 %v531
    %v857 = vunpack.c.h.b16 %v531
    %v858 = vunpack.c.l.b16 %v532
    %v859 = vunpack.c.h.b16 %v532
    %v860 = vunpack.c.l.b16 %v533
    %v861 = vunpack.c.h.b16 %v533
    %v862 = vunpack.c.l.b16 %v534
    %v863 = vunpack.c.h.b16 %v534
    %v864 = vunpack.c.l.b16 %v535
    %v865 = vunpack.c.h.b16 %v535
    %v866 = vunpack.c.l.b16 %v536
    %v867 = vunpack.c.h.b16 %v536
    %v868 = vunpack.c.l.b16 %v537
    %v869 = vunpack.c.h.b16 %v537
    %v870 = vunpack.c.l.b16 %v538
    %v871 = vunpack.c.h.b16 %v538
    %v872 = vunpack.c.l.b16 %v539
    %v873 = vunpack.c.h.b16 %v539
    %v874 = vunpack.c.l.b16 %v540
    %v875 = vunpack.c.h.b16 %v540
    %v876 = vunpack.c.l.b16 %v541
    %v877 = vunpack.c.h.b16 %v541
    %v878 = vunpack.c.l.b16 %v542
    %v879 = vunpack.c.h.b16 %v542
    %v880 = vunpack.c.l.b16 %v543
    %v881 = vunpack.c.h.b16 %v543
    %v882 = vunpack.c.l.b16 %v544
    %v883 = vunpack.c.h.b16 %v544
    %v884 = vunpack.c.l.b16 %v545
    %v885 = vunpack.c.h.b16 %v545
    %v886 = vunpack.c.l.b16 %v546
    %v887 = vunpack.c.h.b16 %v546
    %v888 = vunpack.c.l.b16 %v547
    %v889 = vunpack.c.h.b16 %v547
    %v890 = vunpack.c.l.b16 %v548
    %v891 = vunpack.c.h.b16 %v548
    %v892 = vunpack.c.l.b16 %v549
    %v893 = vunpack.c.h.b16 %v549
    %v894 = vunpack.c.l.b16 %v550
    %v895 = vunpack.c.h.b16 %v550
    %v896 = vunpack.c.l.b16 %v551
    %v897 = vunpack.c.h.b16 %v551
    %v898 = vunpack.c.l.b16 %v552
    %v899 = vunpack.c.h.b16 %v552
    %v900 = vunpack.c.l.b16 %v553
    %v901 = vunpack.c.h.b16 %v553
    %v902 = vunpack.c.l.b16 %v554
    %v903 = vunpack.c.h.b16 %v554
    %v904 = vunpack.c.l.b16 %v555
    %v905 = vunpack.c.h.b16 %v555
    %v906 = vunpack.c.l.b16 %v556
    %v907 = vunpack.c.h.b16 %v556
    %v908 = vunpack.c.l.b16 %v557
    %v909 = vunpack.c.h.b16 %v557
    %v910 = vunpack.c.l.b16 %v558
    %v911 = vunpack.c.h.b16 %v558
    %v912 = vunpack.c.l.b16 %v559
    %v913 = vunpack.c.h.b16 %v559
    %v914 = vunpack.c.l.b16 %v560
    %v915 = vunpack.c.h.b16 %v560
    %v916 = vunpack.c.l.b16 %v561
    %v917 = vunpack.c.h.b16 %v561
    %v918 = vunpack.c.l.b16 %v562
    %v919 = vunpack.c.h.b16 %v562
    %v920 = vunpack.c.l.b16 %v563
    %v921 = vunpack.c.h.b16 %v563
    %v922 = vunpack.c.l.b16 %v564
    %v923 = vunpack.c.h.b16 %v564
    %v924 = vunpack.c.l.b16 %v565
    %v925 = vunpack.c.h.b16 %v565
    %v926 = vunpack.c.l.b16 %v566
    %v927 = vunpack.c.h.b16 %v566
    %v928 = vunpack.c.l.b16 %v567
    %v929 = vunpack.c.h.b16 %v567
    %v930 = vunpack.c.l.b16 %v568
    %v931 = vunpack.c.h.b16 %v568
    %v932 = vunpack.c.l.b16 %v569
    %v933 = vunpack.c.h.b16 %v569
    %v934 = vunpack.c.l.b16 %v570
    %v935 = vunpack.c.h.b16 %v570
    %v936 = vunpack.c.l.b16 %v571
    %v937 = vunpack.c.h.b16 %v571
    %v938 = vunpack.c.l.b16 %v572
    %v939 = vunpack.c.h.b16 %v572
    %v940 = vunpack.c.l.b16 %v573
    %v941 = vunpack.c.h.b16 %v573
    %v942 = vunpack.c.l.b16 %v574
    %v943 = vunpack.c.h.b16 %v574
    %v944 = vunpack.c.l.b16 %v575
    %v945 = vunpack.c.h.b16 %v575
    %v946 = vunpack.c.l.b16 %v576
    %v947 = vunpack.c.h.b16 %v576
    %v948 = vunpack.c.l.b16 %v577
    %v949 = vunpack.c.h.b16 %v577
    %v950 = vunpack.c.l.b16 %v578
    %v951 = vunpack.c.h.b16 %v578
    %v952 = vunpack.c.l.b16 %v579
    %v953 = vunpack.c.h.b16 %v579
    %v954 = vunpack.c.l.b16 %v580
    %v955 = vunpack.c.h.b16 %v580
    %v956 = vunpack.c.l.b16 %v581
    %v957 = vunpack.c.h.b16 %v581
    %v958 = vunpack.c.l.b16 %v582
    %v959 = vunpack.c.h.b16 %v582
    %v960 = vunpack.c.l.b16 %v583
    %v961 = vunpack.c.h.b16 %v583
    %v962 = vunpack.c.l.b16 %v584
    %v963 = vunpack.c.h.b16 %v584
    %v964 = vunpack.c.l.b16 %v585
    %v965 = vunpack.c.h.b16 %v585
    %v966 = vunpack.c.l.b16 %v586
    %v967 = vunpack.c.h.b16 %v586
    %v968 = vunpack.c.l.b16 %v587
    %v969 = vunpack.c.h.b16 %v587
    %v970 = vunpack.c.l.b16 %v588
    %v971 = vunpack.c.h.b16 %v588
    %v972 = vunpack.c.l.b16 %v589
    %v973 = vunpack.c.h.b16 %v589
    %v974 = vunpack.c.l.b16 %v590
    %v975 = vunpack.c.h.b16 %v590
    %v976 = vunpack.c.l.b16 %v591
    %v977 = vunpack.c.h.b16 %v591
    %v978 = vunpack.c.l.b16 %v592
    %v979 = vunpack.c.h.b16 %v592
    %v980 = vunpack.c.l.b16 %v593
    %v981 = vunpack.c.h.b16 %v593
    %v982 = vunpack.c.l.b16 %v594
    %v983 = vunpack.c.h.b16 %v594
    %v984 = vunpack.c.l.b16 %v595
    %v985 = vunpack.c.h.b16 %v595
    %v986 = vpack.c.b16 %v738, %v730
    %v987 = vpack.c.b16 %v739, %v731
    %v988 = vpack.c.b16 %v740, %v732
    %v989 = vpack.c.b16 %v741, %v733
    %v990 = vpack.c.b16 %v742, %v734
    %v991 = vpack.c.b16 %v743, %v735
    %v992 = vpack.c.b16 %v744, %v736
    %v993 = vpack.c.b16 %v745, %v737
    %v994 = vpack.c.b16 %v754, %v746
    %v995 = vpack.c.b16 %v755, %v747
    %v996 = vpack.c.b16 %v756, %v748
    %v997 = vpack.c.b16 %v757, %v749
    %v998 = vpack.c.b16 %v758, %v750
    %v999 = vpack.c.b16 %v759, %v751
    %v1000 = vpack.c.b16 %v760, %v752
    %v1001 = vpack.c.b16 %v761, %v753
    %v1002 = vpack.c.b16 %v770, %v762
    %v1003 = vpack.c.b16 %v771, %v763
    %v1004 = vpack.c.b16 %v772, %v764
    %v1005 = vpack.c.b16 %v773, %v765
    %v1006 = vpack.c.b16 %v774, %v766
    %v1007 = vpack.c.b16 %v775, %v767
    %v1008 = vpack.c.b16 %v776, %v768
    %v1009 = vpack.c.b16 %v777, %v769
    %v1010 = vpack.c.b16 %v786, %v778
    %v1011 = vpack.c.b16 %v787, %v779
    %v1012 = vpack.c.b16 %v788, %v780
    %v1013 = vpack.c.b16 %v789, %v781
    %v1014 = vpack.c.b16 %v790, %v782
    %v1015 = vpack.c.b16 %v791, %v783
    %v1016 = vpack.c.b16 %v792, %v784
    %v1017 = vpack.c.b16 %v793, %v785
    %v1018 = vpack.c.b16 %v802, %v794
    %v1019 = vpack.c.b16 %v803, %v795
    %v1020 = vpack.c.b16 %v804, %v796
    %v1021 = vpack.c.b16 %v805, %v797
    %v1022 = vpack.c.b16 %v806, %v798
    %v1023 = vpack.c.b16 %v807, %v799
    %v1024 = vpack.c.b16 %v808, %v800
    %v1025 = vpack.c.b16 %v809, %v801
    %v1026 = vpack.c.b16 %v818, %v810
    %v1027 = vpack.c.b16 %v819, %v811
    %v1028 = vpack.c.b16 %v820, %v812
    %v1029 = vpack.c.b16 %v821, %v813
    %v1030 = vpack.c.b16 %v822, %v814
    %v1031 = vpack.c.b16 %v823, %v815
    %v1032 = vpack.c.b16 %v824, %v816
    %v1033 = vpack.c.b16 %v825, %v817
    %v1034 = vpack.c.b16 %v834, %v826
    %v1035 = vpack.c.b16 %v835, %v827
    %v1036 = vpack.c.b16 %v836, %v828
    %v1037 = vpack.c.b16 %v837, %v829
    %v1038 = vpack.c.b16 %v838, %v830
    %v1039 = vpack.c.b16 %v839, %v831
    %v1040 = vpack.c.b16 %v840, %v832
    %v1041 = vpack.c.b16 %v841, %v833
    %v1042 = vpack.c.b16 %v850, %v842
    %v1043 = vpack.c.b16 %v851, %v843
    %v1044 = vpack.c.b16 %v852, %v844
    %v1045 = vpack.c.b16 %v853, %v845
    %v1046 = vpack.c.b16 %v854, %v846
    %v1047 = vpack.c.b16 %v855, %v847
    %v1048 = vpack.c.b16 %v856, %v848
    %v1049 = vpack.c.b16 %v857, %v849
    %v1050 = vpack.c.b16 %v866, %v858
    %v1051 = vpack.c.b16 %v867, %v859
    %v1052 = vpack.c.b16 %v868, %v860
    %v1053 = vpack.c.b16 %v869, %v861
    %v1054 = vpack.c.b16 %v870, %v862
    %v1055 = vpack.c.b16 %v871, %v863
    %v1056 = vpack.c.b16 %v872, %v864
    %v1057 = vpack.c.b16 %v873, %v865
    %v1058 = vpack.c.b16 %v882, %v874
    %v1059 = vpack.c.b16 %v883, %v875
    %v1060 = vpack.c.b16 %v884, %v876
    %v1061 = vpack.c.b16 %v885, %v877
    %v1062 = vpack.c.b16 %v886, %v878
    %v1063 = vpack.c.b16 %v887, %v879
    %v1064 = vpack.c.b16 %v888, %v880
    %v1065 = vpack.c.b16 %v889, %v881
    %v1066 = vpack.c.b16 %v898, %v890
    %v1067 = vpack.c.b16 %v899, %v891
    %v1068 = vpack.c.b16 %v900, %v892
    %v1069 = vpack.c.b16 %v901, %v893
    %v1070 = vpack.c.b16 %v902, %v894
    %v1071 = vpack.c.b16 %v903, %v895
    %v1072 = vpack.c.b16 %v904, %v896
    %v1073 = vpack.c.b16 %v905, %v897
    %v1074 = vpack.c.b16 %v914, %v906
    %v1075 = vpack.c.b16 %v915, %v907
    %v1076 = vpack.c.b16 %v916, %v908
    %v1077 = vpack.c.b16 %v917, %v909
    %v1078 = vpack.c.b16 %v918, %v910
    %v1079 = vpack.c.b16 %v919, %v911
    %v1080 = vpack.c.b16 %v920, %v912
    %v1081 = vpack.c.b16 %v921, %v913
    %v1082 = vpack.c.b16 %v930, %v922
    %v1083 = vpack.c.b16 %v931, %v923
    %v1084 = vpack.c.b16 %v932, %v924
    %v1085 = vpack.c.b16 %v933, %v925
    %v1086 = vpack.c.b16 %v934, %v926
    %v1087 = vpack.c.b16 %v935, %v927
    %v1088 = vpack.c.b16 %v936, %v928
    %v1089 = vpack.c.b16 %v937, %v929
    %v1090 = vpack.c.b16 %v946, %v938
    %v1091 = vpack.c.b16 %v947, %v939
    %v1092 = vpack.c.b16 %v948, %v940
    %v1093 = vpack.c.b16 %v949, %v941
    %v1094 = vpack.c.b16 %v950, %v942
    %v1095 = vpack.c.b16 %v951, %v943
    %v1096 = vpack.c.b16 %v952, %v944
    %v1097 = vpack.c.b16 %v953, %v945
    %v1098 = vpack.c.b16 %v962, %v954
    %v1099 = vpack.c.b16 %v963, %v955
    %v1100 = vpack.c.b16 %v964, %v956
    %v1101 = vpack.c.b16 %v965, %v957
    %v1102 = vpack.c.b16 %v966, %v958
    %v1103 = vpack.c.b16 %v967, %v959
    %v1104 = vpack.c.b16 %v968, %v960
    %v1105 = vpack.c.b16 %v969, %v961
    %v1106 = vpack.c.b16 %v978, %v970
    %v1107 = vpack.c.b16 %v979, %v971
    %v1108 = vpack.c.b16 %v980, %v972
    %v1109 = vpack.c.b16 %v981, %v973
    %v1110 = vpack.c.b16 %v982, %v974
    %v1111 = vpack.c.b16 %v983, %v975
    %v1112 = vpack.c.b16 %v984, %v976
    %v1113 = vpack.c.b16 %v985, %v977
    %1242 = vmatprep.subr.bf16.mxu0 %v1043
    %1243 = vmatpush1.bf16.msra.mxu0 %v1042
    %1244 = vmatprep.subr.bf16.mxu0 %v1035
    %1245 = vmatpush1.bf16.msra.mxu0 %v1034
    %1246 = vmatprep.subr.bf16.mxu0 %v1027
    %1247 = vmatpush1.bf16.msra.mxu0 %v1026
    %1248 = vmatprep.subr.bf16.mxu0 %v1019
    %1249 = vmatpush1.bf16.msra.mxu0 %v1018
    %1250 = vmatprep.subr.bf16.mxu0 %v1011
    %1251 = vmatpush1.bf16.msra.mxu0 %v1010
    %1252 = vmatprep.subr.bf16.mxu0 %v1003
    %1253 = vmatpush1.bf16.msra.mxu0 %v1002
    %1254 = vmatprep.subr.bf16.mxu0 %v995
    %1255 = vmatpush1.bf16.msra.mxu0 %v994
    %1256 = vmatprep.subr.bf16.mxu0 %v987
    %1257 = vmatpush1.bf16.msra.mxu0 %v986
    %1258 = vmatprep.subr.bf16.mxu0 %v1107
    %1259 = vmatpush2.bf16.msra.mxu0 %v1106
    %1260 = vmatprep.subr.bf16.mxu0 %v1099
    %1261 = vmatpush2.bf16.msra.mxu0 %v1098
    %1262 = vmatprep.subr.bf16.mxu0 %v1091
    %1263 = vmatpush2.bf16.msra.mxu0 %v1090
    %1264 = vmatprep.subr.bf16.mxu0 %v1083
    %1265 = vmatpush2.bf16.msra.mxu0 %v1082
    %1266 = vmatprep.subr.bf16.mxu0 %v1075
    %1267 = vmatpush2.bf16.msra.mxu0 %v1074
    %1268 = vmatprep.subr.bf16.mxu0 %v1067
    %1269 = vmatpush2.bf16.msra.mxu0 %v1066
    %1270 = vmatprep.subr.bf16.mxu0 %v1059
    %1271 = vmatpush2.bf16.msra.mxu0 %v1058
    %1272 = vmatprep.subr.bf16.mxu0 %v1051
    %1273 = vmatpush2.bf16.msra.mxu0 %v1050
    %1274 = vmatprep.mubr.bf16.mxu0 %v601
    %1275 = vmatmul.mubr.bf16.gmra.mxu0 %v600
    %v1276 = vpop.f32.mrf.mxu0
    %v1277 = vadd.f32 0.0, %v1276
    %v1278 = vpop.f32.mrf.mxu0
    %v1279 = vadd.f32 0.0, %v1278
    %v1280 = vpop.f32.mrf.mxu0
    %v1281 = vpop.f32.mrf.mxu0
    %1282 = vdwg.mxu0
    %1283 = vmatprep.subr.bf16.mxu0 %v1045
    %1284 = vmatpush1.bf16.msra.mxu0 %v1044
    %1285 = vmatprep.subr.bf16.mxu0 %v1037
    %1286 = vmatpush1.bf16.msra.mxu0 %v1036
    %1287 = vmatprep.subr.bf16.mxu0 %v1029
    %1288 = vmatpush1.bf16.msra.mxu0 %v1028
    %1289 = vmatprep.subr.bf16.mxu0 %v1021
    %1290 = vmatpush1.bf16.msra.mxu0 %v1020
    %1291 = vmatprep.subr.bf16.mxu0 %v1013
    %1292 = vmatpush1.bf16.msra.mxu0 %v1012
    %1293 = vmatprep.subr.bf16.mxu0 %v1005
    %1294 = vmatpush1.bf16.msra.mxu0 %v1004
    %1295 = vmatprep.subr.bf16.mxu0 %v997
    %1296 = vmatpush1.bf16.msra.mxu0 %v996
    %1297 = vmatprep.subr.bf16.mxu0 %v989
    %1298 = vmatpush1.bf16.msra.mxu0 %v988
    %1299 = vmatprep.subr.bf16.mxu0 %v1109
    %1300 = vmatpush2.bf16.msra.mxu0 %v1108
    %1301 = vmatprep.subr.bf16.mxu0 %v1101
    %1302 = vmatpush2.bf16.msra.mxu0 %v1100
    %1303 = vmatprep.subr.bf16.mxu0 %v1093
    %1304 = vmatpush2.bf16.msra.mxu0 %v1092
    %1305 = vmatprep.subr.bf16.mxu0 %v1085
    %1306 = vmatpush2.bf16.msra.mxu0 %v1084
    %1307 = vmatprep.subr.bf16.mxu0 %v1077
    %1308 = vmatpush2.bf16.msra.mxu0 %v1076
    %1309 = vmatprep.subr.bf16.mxu0 %v1069
    %1310 = vmatpush2.bf16.msra.mxu0 %v1068
    %1311 = vmatprep.subr.bf16.mxu0 %v1061
    %1312 = vmatpush2.bf16.msra.mxu0 %v1060
    %1313 = vmatprep.subr.bf16.mxu0 %v1053
    %1314 = vmatpush2.bf16.msra.mxu0 %v1052
    %1315 = vmatprep.mubr.bf16.mxu0 %v601
    %1316 = vmatmul.mubr.bf16.gmra.mxu0 %v600
    %v1317 = vpop.f32.mrf.mxu0
    %v1318 = vadd.f32 0.0, %v1317
    %v1319 = vpop.f32.mrf.mxu0
    %v1320 = vadd.f32 0.0, %v1319
    %v1321 = vpop.f32.mrf.mxu0
    %v1322 = vpop.f32.mrf.mxu0
    %1323 = vdwg.mxu0
    %1324 = vmatprep.subr.bf16.mxu0 %v1047
    %1325 = vmatpush1.bf16.msra.mxu0 %v1046
    %1326 = vmatprep.subr.bf16.mxu0 %v1039
    %1327 = vmatpush1.bf16.msra.mxu0 %v1038
    %1328 = vmatprep.subr.bf16.mxu0 %v1031
    %1329 = vmatpush1.bf16.msra.mxu0 %v1030
    %1330 = vmatprep.subr.bf16.mxu0 %v1023
    %1331 = vmatpush1.bf16.msra.mxu0 %v1022
    %1332 = vmatprep.subr.bf16.mxu0 %v1015
    %1333 = vmatpush1.bf16.msra.mxu0 %v1014
    %1334 = vmatprep.subr.bf16.mxu0 %v1007
    %1335 = vmatpush1.bf16.msra.mxu0 %v1006
    %1336 = vmatprep.subr.bf16.mxu0 %v999
    %1337 = vmatpush1.bf16.msra.mxu0 %v998
    %1338 = vmatprep.subr.bf16.mxu0 %v991
    %1339 = vmatpush1.bf16.msra.mxu0 %v990
    %1340 = vmatprep.subr.bf16.mxu0 %v1111
    %1341 = vmatpush2.bf16.msra.mxu0 %v1110
    %1342 = vmatprep.subr.bf16.mxu0 %v1103
    %1343 = vmatpush2.bf16.msra.mxu0 %v1102
    %1344 = vmatprep.subr.bf16.mxu0 %v1095
    %1345 = vmatpush2.bf16.msra.mxu0 %v1094
    %1346 = vmatprep.subr.bf16.mxu0 %v1087
    %1347 = vmatpush2.bf16.msra.mxu0 %v1086
    %1348 = vmatprep.subr.bf16.mxu0 %v1079
    %1349 = vmatpush2.bf16.msra.mxu0 %v1078
    %1350 = vmatprep.subr.bf16.mxu0 %v1071
    %1351 = vmatpush2.bf16.msra.mxu0 %v1070
    %1352 = vmatprep.subr.bf16.mxu0 %v1063
    %1353 = vmatpush2.bf16.msra.mxu0 %v1062
    %1354 = vmatprep.subr.bf16.mxu0 %v1055
    %1355 = vmatpush2.bf16.msra.mxu0 %v1054
    %1356 = vmatprep.mubr.bf16.mxu0 %v601
    %1357 = vmatmul.mubr.bf16.gmra.mxu0 %v600
    %v1358 = vpop.f32.mrf.mxu0
    %v1359 = vadd.f32 0.0, %v1358
    %v1360 = vpop.f32.mrf.mxu0
    %v1361 = vadd.f32 0.0, %v1360
    %v1362 = vpop.f32.mrf.mxu0
    %v1363 = vpop.f32.mrf.mxu0
    %1364 = vdwg.mxu0
    %1365 = vmatprep.subr.bf16.mxu0 %v1049
    %1366 = vmatpush1.bf16.msra.mxu0 %v1048
    %1367 = vmatprep.subr.bf16.mxu0 %v1041
    %1368 = vmatpush1.bf16.msra.mxu0 %v1040
    %1369 = vmatprep.subr.bf16.mxu0 %v1033
    %1370 = vmatpush1.bf16.msra.mxu0 %v1032
    %1371 = vmatprep.subr.bf16.mxu0 %v1025
    %1372 = vmatpush1.bf16.msra.mxu0 %v1024
    %1373 = vmatprep.subr.bf16.mxu0 %v1017
    %1374 = vmatpush1.bf16.msra.mxu0 %v1016
    %1375 = vmatprep.subr.bf16.mxu0 %v1009
    %1376 = vmatpush1.bf16.msra.mxu0 %v1008
    %1377 = vmatprep.subr.bf16.mxu0 %v1001
    %1378 = vmatpush1.bf16.msra.mxu0 %v1000
    %1379 = vmatprep.subr.bf16.mxu0 %v993
    %1380 = vmatpush1.bf16.msra.mxu0 %v992
    %1381 = vmatprep.subr.bf16.mxu0 %v1113
    %1382 = vmatpush2.bf16.msra.mxu0 %v1112
    %1383 = vmatprep.subr.bf16.mxu0 %v1105
    %1384 = vmatpush2.bf16.msra.mxu0 %v1104
    %1385 = vmatprep.subr.bf16.mxu0 %v1097
    %1386 = vmatpush2.bf16.msra.mxu0 %v1096
    %1387 = vmatprep.subr.bf16.mxu0 %v1089
    %1388 = vmatpush2.bf16.msra.mxu0 %v1088
    %1389 = vmatprep.subr.bf16.mxu0 %v1081
    %1390 = vmatpush2.bf16.msra.mxu0 %v1080
    %1391 = vmatprep.subr.bf16.mxu0 %v1073
    %1392 = vmatpush2.bf16.msra.mxu0 %v1072
    %1393 = vmatprep.subr.bf16.mxu0 %v1065
    %1394 = vmatpush2.bf16.msra.mxu0 %v1064
    %1395 = vmatprep.subr.bf16.mxu0 %v1057
    %1396 = vmatpush2.bf16.msra.mxu0 %v1056
    %1397 = vmatprep.mubr.bf16.mxu0 %v601
    %1398 = vmatmul.mubr.bf16.gmra.mxu0 %v600
    %v1399 = vpop.f32.mrf.mxu0
    %v1400 = vadd.f32 0.0, %v1399
    %v1401 = vpop.f32.mrf.mxu0
    %v1402 = vadd.f32 0.0, %v1401
    %v1403 = vpop.f32.mrf.mxu0
    %v1404 = vpop.f32.mrf.mxu0
    %1405 = vdwg.mxu0
    %v1406 = vadd.f32 %v211, %v1277
    %v1407 = vadd.f32 %v213, %v1279
    %v1408 = vadd.f32 %v284, %v1318
    %v1409 = vadd.f32 %v286, %v1320
    %v1410 = vadd.f32 %v357, %v1359
    %v1411 = vadd.f32 %v359, %v1361
    %v1412 = vadd.f32 %v430, %v1400
    %v1413 = vadd.f32 %v432, %v1402
    %v1414 = vxor.u32 %v1406, 2147483648
    %v1415 = vxor.u32 %v1407, 2147483648
    %v1416 = vmul.f32 %v1414, 1.442695
    %v1417 = vpow.pop %v1416
    %v1418 = vmul.f32 %v1415, 1.442695
    %v1419 = vpow.pop %v1418
    %v1420 = vadd.f32 %v1417, 1.0
    %v1421 = vadd.f32 %v1419, 1.0
    %v1422 = vrcp.pop %v1420
    %v1423 = vmul.f32 1.0, %v1422
    %v1424 = vrcp.pop %v1421
    %v1425 = vmul.f32 1.0, %v1424
    %v1426 = vxor.u32 %v1408, 2147483648
    %v1427 = vxor.u32 %v1409, 2147483648
    %v1428 = vmul.f32 %v1426, 1.442695
    %v1429 = vpow.pop %v1428
    %v1430 = vmul.f32 %v1427, 1.442695
    %v1431 = vpow.pop %v1430
    %v1432 = vadd.f32 %v1429, 1.0
    %v1433 = vadd.f32 %v1431, 1.0
    %v1434 = vrcp.pop %v1432
    %v1435 = vmul.f32 1.0, %v1434
    %v1436 = vrcp.pop %v1433
    %v1437 = vmul.f32 1.0, %v1436
    %v1438 = vtanh.pop %v1410
    %v1439 = vtanh.pop %v1411
    %v1440 = vxor.u32 %v1412, 2147483648
    %v1441 = vxor.u32 %v1413, 2147483648
    %v1442 = vmul.f32 %v1440, 1.442695
    %v1443 = vpow.pop %v1442
    %v1444 = vmul.f32 %v1441, 1.442695
    %v1445 = vpow.pop %v1444
    %v1446 = vadd.f32 %v1443, 1.0
    %v1447 = vadd.f32 %v1445, 1.0
    %v1448 = vrcp.pop %v1446
    %v1449 = vmul.f32 1.0, %v1448
    %v1450 = vrcp.pop %v1447
    %v1451 = vmul.f32 1.0, %v1450
    %v1452 = vmul.f32 %v1435, %v598
    %v1453 = vmul.f32 %v1437, %v599
    %v1454 = vmul.f32 %v1423, %v1438
    %v1455 = vmul.f32 %v1425, %v1439
    %v1456 = vadd.f32 %v1452, %v1454
    %v1457 = vadd.f32 %v1453, %v1455
    %v1458 = vtanh.pop %v1456
    %v1459 = vtanh.pop %v1457
    %v1460 = vmul.f32 %v1449, %v1458
    %v1461 = vmul.f32 %v1451, %v1459
    %v1462 = vpack.c.bf16 %v1460, %v1460
    %v1463 = vpack.c.bf16 %v1461, %v1461
    %1464 = vmatprep.subr.bf16.mxu0 %v1043
    %1465 = vmatpush1.bf16.msra.mxu0 %v1042
    %1466 = vmatprep.subr.bf16.mxu0 %v1035
    %1467 = vmatpush1.bf16.msra.mxu0 %v1034
    %1468 = vmatprep.subr.bf16.mxu0 %v1027
    %1469 = vmatpush1.bf16.msra.mxu0 %v1026
    %1470 = vmatprep.subr.bf16.mxu0 %v1019
    %1471 = vmatpush1.bf16.msra.mxu0 %v1018
    %1472 = vmatprep.subr.bf16.mxu0 %v1011
    %1473 = vmatpush1.bf16.msra.mxu0 %v1010
    %1474 = vmatprep.subr.bf16.mxu0 %v1003
    %1475 = vmatpush1.bf16.msra.mxu0 %v1002
    %1476 = vmatprep.subr.bf16.mxu0 %v995
    %1477 = vmatpush1.bf16.msra.mxu0 %v994
    %1478 = vmatprep.subr.bf16.mxu0 %v987
    %1479 = vmatpush1.bf16.msra.mxu0 %v986
    %1480 = vmatprep.subr.bf16.mxu0 %v1107
    %1481 = vmatpush2.bf16.msra.mxu0 %v1106
    %1482 = vmatprep.subr.bf16.mxu0 %v1099
    %1483 = vmatpush2.bf16.msra.mxu0 %v1098
    %1484 = vmatprep.subr.bf16.mxu0 %v1091
    %1485 = vmatpush2.bf16.msra.mxu0 %v1090
    %1486 = vmatprep.subr.bf16.mxu0 %v1083
    %1487 = vmatpush2.bf16.msra.mxu0 %v1082
    %1488 = vmatprep.subr.bf16.mxu0 %v1075
    %1489 = vmatpush2.bf16.msra.mxu0 %v1074
    %1490 = vmatprep.subr.bf16.mxu0 %v1067
    %1491 = vmatpush2.bf16.msra.mxu0 %v1066
    %1492 = vmatprep.subr.bf16.mxu0 %v1059
    %1493 = vmatpush2.bf16.msra.mxu0 %v1058
    %1494 = vmatprep.subr.bf16.mxu0 %v1051
    %1495 = vmatpush2.bf16.msra.mxu0 %v1050
    %1496 = vmatprep.mubr.bf16.mxu0 %v1463
    %1497 = vmatmul.mubr.bf16.gmra.mxu0 %v1462
    %v1498 = vpop.f32.mrf.mxu0
    %v1499 = vadd.f32 0.0, %v1498
    %v1500 = vpop.f32.mrf.mxu0
    %v1501 = vadd.f32 0.0, %v1500
    %v1502 = vpop.f32.mrf.mxu0
    %v1503 = vpop.f32.mrf.mxu0
    %1504 = vdwg.mxu0
    %1505 = vmatprep.subr.bf16.mxu0 %v1045
    %1506 = vmatpush1.bf16.msra.mxu0 %v1044
    %1507 = vmatprep.subr.bf16.mxu0 %v1037
    %1508 = vmatpush1.bf16.msra.mxu0 %v1036
    %1509 = vmatprep.subr.bf16.mxu0 %v1029
    %1510 = vmatpush1.bf16.msra.mxu0 %v1028
    %1511 = vmatprep.subr.bf16.mxu0 %v1021
    %1512 = vmatpush1.bf16.msra.mxu0 %v1020
    %1513 = vmatprep.subr.bf16.mxu0 %v1013
    %1514 = vmatpush1.bf16.msra.mxu0 %v1012
    %1515 = vmatprep.subr.bf16.mxu0 %v1005
    %1516 = vmatpush1.bf16.msra.mxu0 %v1004
    %1517 = vmatprep.subr.bf16.mxu0 %v997
    %1518 = vmatpush1.bf16.msra.mxu0 %v996
    %1519 = vmatprep.subr.bf16.mxu0 %v989
    %1520 = vmatpush1.bf16.msra.mxu0 %v988
    %1521 = vmatprep.subr.bf16.mxu0 %v1109
    %1522 = vmatpush2.bf16.msra.mxu0 %v1108
    %1523 = vmatprep.subr.bf16.mxu0 %v1101
    %1524 = vmatpush2.bf16.msra.mxu0 %v1100
    %1525 = vmatprep.subr.bf16.mxu0 %v1093
    %1526 = vmatpush2.bf16.msra.mxu0 %v1092
    %1527 = vmatprep.subr.bf16.mxu0 %v1085
    %1528 = vmatpush2.bf16.msra.mxu0 %v1084
    %1529 = vmatprep.subr.bf16.mxu0 %v1077
    %1530 = vmatpush2.bf16.msra.mxu0 %v1076
    %1531 = vmatprep.subr.bf16.mxu0 %v1069
    %1532 = vmatpush2.bf16.msra.mxu0 %v1068
    %1533 = vmatprep.subr.bf16.mxu0 %v1061
    %1534 = vmatpush2.bf16.msra.mxu0 %v1060
    %1535 = vmatprep.subr.bf16.mxu0 %v1053
    %1536 = vmatpush2.bf16.msra.mxu0 %v1052
    %1537 = vmatprep.mubr.bf16.mxu0 %v1463
    %1538 = vmatmul.mubr.bf16.gmra.mxu0 %v1462
    %v1539 = vpop.f32.mrf.mxu0
    %v1540 = vadd.f32 0.0, %v1539
    %v1541 = vpop.f32.mrf.mxu0
    %v1542 = vadd.f32 0.0, %v1541
    %v1543 = vpop.f32.mrf.mxu0
    %v1544 = vpop.f32.mrf.mxu0
    %1545 = vdwg.mxu0
    %1546 = vmatprep.subr.bf16.mxu0 %v1047
    %1547 = vmatpush1.bf16.msra.mxu0 %v1046
    %1548 = vmatprep.subr.bf16.mxu0 %v1039
    %1549 = vmatpush1.bf16.msra.mxu0 %v1038
    %1550 = vmatprep.subr.bf16.mxu0 %v1031
    %1551 = vmatpush1.bf16.msra.mxu0 %v1030
    %1552 = vmatprep.subr.bf16.mxu0 %v1023
    %1553 = vmatpush1.bf16.msra.mxu0 %v1022
    %1554 = vmatprep.subr.bf16.mxu0 %v1015
    %1555 = vmatpush1.bf16.msra.mxu0 %v1014
    %1556 = vmatprep.subr.bf16.mxu0 %v1007
    %1557 = vmatpush1.bf16.msra.mxu0 %v1006
    %1558 = vmatprep.subr.bf16.mxu0 %v999
    %1559 = vmatpush1.bf16.msra.mxu0 %v998
    %1560 = vmatprep.subr.bf16.mxu0 %v991
    %1561 = vmatpush1.bf16.msra.mxu0 %v990
    %1562 = vmatprep.subr.bf16.mxu0 %v1111
    %1563 = vmatpush2.bf16.msra.mxu0 %v1110
    %1564 = vmatprep.subr.bf16.mxu0 %v1103
    %1565 = vmatpush2.bf16.msra.mxu0 %v1102
    %1566 = vmatprep.subr.bf16.mxu0 %v1095
    %1567 = vmatpush2.bf16.msra.mxu0 %v1094
    %1568 = vmatprep.subr.bf16.mxu0 %v1087
    %1569 = vmatpush2.bf16.msra.mxu0 %v1086
    %1570 = vmatprep.subr.bf16.mxu0 %v1079
    %1571 = vmatpush2.bf16.msra.mxu0 %v1078
    %1572 = vmatprep.subr.bf16.mxu0 %v1071
    %1573 = vmatpush2.bf16.msra.mxu0 %v1070
    %1574 = vmatprep.subr.bf16.mxu0 %v1063
    %1575 = vmatpush2.bf16.msra.mxu0 %v1062
    %1576 = vmatprep.subr.bf16.mxu0 %v1055
    %1577 = vmatpush2.bf16.msra.mxu0 %v1054
    %1578 = vmatprep.mubr.bf16.mxu0 %v1463
    %1579 = vmatmul.mubr.bf16.gmra.mxu0 %v1462
    %v1580 = vpop.f32.mrf.mxu0
    %v1581 = vadd.f32 0.0, %v1580
    %v1582 = vpop.f32.mrf.mxu0
    %v1583 = vadd.f32 0.0, %v1582
    %v1584 = vpop.f32.mrf.mxu0
    %v1585 = vpop.f32.mrf.mxu0
    %1586 = vdwg.mxu0
    %1587 = vmatprep.subr.bf16.mxu0 %v1049
    %1588 = vmatpush1.bf16.msra.mxu0 %v1048
    %1589 = vmatprep.subr.bf16.mxu0 %v1041
    %1590 = vmatpush1.bf16.msra.mxu0 %v1040
    %1591 = vmatprep.subr.bf16.mxu0 %v1033
    %1592 = vmatpush1.bf16.msra.mxu0 %v1032
    %1593 = vmatprep.subr.bf16.mxu0 %v1025
    %1594 = vmatpush1.bf16.msra.mxu0 %v1024
    %1595 = vmatprep.subr.bf16.mxu0 %v1017
    %1596 = vmatpush1.bf16.msra.mxu0 %v1016
    %1597 = vmatprep.subr.bf16.mxu0 %v1009
    %1598 = vmatpush1.bf16.msra.mxu0 %v1008
    %1599 = vmatprep.subr.bf16.mxu0 %v1001
    %1600 = vmatpush1.bf16.msra.mxu0 %v1000
    %1601 = vmatprep.subr.bf16.mxu0 %v993
    %1602 = vmatpush1.bf16.msra.mxu0 %v992
    %1603 = vmatprep.subr.bf16.mxu0 %v1113
    %1604 = vmatpush2.bf16.msra.mxu0 %v1112
    %1605 = vmatprep.subr.bf16.mxu0 %v1105
    %1606 = vmatpush2.bf16.msra.mxu0 %v1104
    %1607 = vmatprep.subr.bf16.mxu0 %v1097
    %1608 = vmatpush2.bf16.msra.mxu0 %v1096
    %1609 = vmatprep.subr.bf16.mxu0 %v1089
    %1610 = vmatpush2.bf16.msra.mxu0 %v1088
    %1611 = vmatprep.subr.bf16.mxu0 %v1081
    %1612 = vmatpush2.bf16.msra.mxu0 %v1080
    %1613 = vmatprep.subr.bf16.mxu0 %v1073
    %1614 = vmatpush2.bf16.msra.mxu0 %v1072
    %1615 = vmatprep.subr.bf16.mxu0 %v1065
    %1616 = vmatpush2.bf16.msra.mxu0 %v1064
    %1617 = vmatprep.subr.bf16.mxu0 %v1057
    %1618 = vmatpush2.bf16.msra.mxu0 %v1056
    %1619 = vmatprep.mubr.bf16.mxu0 %v1463
    %1620 = vmatmul.mubr.bf16.gmra.mxu0 %v1462
    %v1621 = vpop.f32.mrf.mxu0
    %v1622 = vadd.f32 0.0, %v1621
    %v1623 = vpop.f32.mrf.mxu0
    %v1624 = vadd.f32 0.0, %v1623
    %v1625 = vpop.f32.mrf.mxu0
    %v1626 = vpop.f32.mrf.mxu0
    %1627 = vdwg.mxu0
    %v1628 = vadd.f32 %v215, %v1499
    %v1629 = vadd.f32 %v217, %v1501
    %v1630 = vadd.f32 %v288, %v1540
    %v1631 = vadd.f32 %v290, %v1542
    %v1632 = vadd.f32 %v361, %v1581
    %v1633 = vadd.f32 %v363, %v1583
    %v1634 = vadd.f32 %v434, %v1622
    %v1635 = vadd.f32 %v436, %v1624
    %v1636 = vxor.u32 %v1628, 2147483648
    %v1637 = vxor.u32 %v1629, 2147483648
    %v1638 = vmul.f32 %v1636, 1.442695
    %v1639 = vpow.pop %v1638
    %v1640 = vmul.f32 %v1637, 1.442695
    %v1641 = vpow.pop %v1640
    %v1642 = vadd.f32 %v1639, 1.0
    %v1643 = vadd.f32 %v1641, 1.0
    %v1644 = vrcp.pop %v1642
    %v1645 = vmul.f32 1.0, %v1644
    %v1646 = vrcp.pop %v1643
    %v1647 = vmul.f32 1.0, %v1646
    %v1648 = vxor.u32 %v1630, 2147483648
    %v1649 = vxor.u32 %v1631, 2147483648
    %v1650 = vmul.f32 %v1648, 1.442695
    %v1651 = vpow.pop %v1650
    %v1652 = vmul.f32 %v1649, 1.442695
    %v1653 = vpow.pop %v1652
    %v1654 = vadd.f32 %v1651, 1.0
    %v1655 = vadd.f32 %v1653, 1.0
    %v1656 = vrcp.pop %v1654
    %v1657 = vmul.f32 1.0, %v1656
    %v1658 = vrcp.pop %v1655
    %v1659 = vmul.f32 1.0, %v1658
    %v1660 = vtanh.pop %v1632
    %v1661 = vtanh.pop %v1633
    %v1662 = vxor.u32 %v1634, 2147483648
    %v1663 = vxor.u32 %v1635, 2147483648
    %v1664 = vmul.f32 %v1662, 1.442695
    %v1665 = vpow.pop %v1664
    %v1666 = vmul.f32 %v1663, 1.442695
    %v1667 = vpow.pop %v1666
    %v1668 = vadd.f32 %v1665, 1.0
    %v1669 = vadd.f32 %v1667, 1.0
    %v1670 = vrcp.pop %v1668
    %v1671 = vmul.f32 1.0, %v1670
    %v1672 = vrcp.pop %v1669
    %v1673 = vmul.f32 1.0, %v1672
    %v1674 = vmul.f32 %v1657, %v1456
    %v1675 = vmul.f32 %v1659, %v1457
    %v1676 = vmul.f32 %v1645, %v1660
    %v1677 = vmul.f32 %v1647, %v1661
    %v1678 = vadd.f32 %v1674, %v1676
    %v1679 = vadd.f32 %v1675, %v1677
    %v1680 = vtanh.pop %v1678
    %v1681 = vtanh.pop %v1679
    %v1682 = vmul.f32 %v1671, %v1680
    %v1683 = vmul.f32 %v1673, %v1681
    %v1684 = vpack.c.bf16 %v1682, %v1682
    %v1685 = vpack.c.bf16 %v1683, %v1683
    %1686 = vmatprep.subr.bf16.mxu0 %v1043
    %1687 = vmatpush1.bf16.msra.mxu0 %v1042
    %1688 = vmatprep.subr.bf16.mxu0 %v1035
    %1689 = vmatpush1.bf16.msra.mxu0 %v1034
    %1690 = vmatprep.subr.bf16.mxu0 %v1027
    %1691 = vmatpush1.bf16.msra.mxu0 %v1026
    %1692 = vmatprep.subr.bf16.mxu0 %v1019
    %1693 = vmatpush1.bf16.msra.mxu0 %v1018
    %1694 = vmatprep.subr.bf16.mxu0 %v1011
    %1695 = vmatpush1.bf16.msra.mxu0 %v1010
    %1696 = vmatprep.subr.bf16.mxu0 %v1003
    %1697 = vmatpush1.bf16.msra.mxu0 %v1002
    %1698 = vmatprep.subr.bf16.mxu0 %v995
    %1699 = vmatpush1.bf16.msra.mxu0 %v994
    %1700 = vmatprep.subr.bf16.mxu0 %v987
    %1701 = vmatpush1.bf16.msra.mxu0 %v986
    %1702 = vmatprep.subr.bf16.mxu0 %v1107
    %1703 = vmatpush2.bf16.msra.mxu0 %v1106
    %1704 = vmatprep.subr.bf16.mxu0 %v1099
    %1705 = vmatpush2.bf16.msra.mxu0 %v1098
    %1706 = vmatprep.subr.bf16.mxu0 %v1091
    %1707 = vmatpush2.bf16.msra.mxu0 %v1090
    %1708 = vmatprep.subr.bf16.mxu0 %v1083
    %1709 = vmatpush2.bf16.msra.mxu0 %v1082
    %1710 = vmatprep.subr.bf16.mxu0 %v1075
    %1711 = vmatpush2.bf16.msra.mxu0 %v1074
    %1712 = vmatprep.subr.bf16.mxu0 %v1067
    %1713 = vmatpush2.bf16.msra.mxu0 %v1066
    %1714 = vmatprep.subr.bf16.mxu0 %v1059
    %1715 = vmatpush2.bf16.msra.mxu0 %v1058
    %1716 = vmatprep.subr.bf16.mxu0 %v1051
    %1717 = vmatpush2.bf16.msra.mxu0 %v1050
    %1718 = vmatprep.mubr.bf16.mxu0 %v1685
    %1719 = vmatmul.mubr.bf16.gmra.mxu0 %v1684
    %v1720 = vpop.f32.mrf.mxu0
    %v1721 = vadd.f32 0.0, %v1720
    %v1722 = vpop.f32.mrf.mxu0
    %v1723 = vadd.f32 0.0, %v1722
    %v1724 = vpop.f32.mrf.mxu0
    %v1725 = vpop.f32.mrf.mxu0
    %1726 = vdwg.mxu0
    %1727 = vmatprep.subr.bf16.mxu0 %v1045
    %1728 = vmatpush1.bf16.msra.mxu0 %v1044
    %1729 = vmatprep.subr.bf16.mxu0 %v1037
    %1730 = vmatpush1.bf16.msra.mxu0 %v1036
    %1731 = vmatprep.subr.bf16.mxu0 %v1029
    %1732 = vmatpush1.bf16.msra.mxu0 %v1028
    %1733 = vmatprep.subr.bf16.mxu0 %v1021
    %1734 = vmatpush1.bf16.msra.mxu0 %v1020
    %1735 = vmatprep.subr.bf16.mxu0 %v1013
    %1736 = vmatpush1.bf16.msra.mxu0 %v1012
    %1737 = vmatprep.subr.bf16.mxu0 %v1005
    %1738 = vmatpush1.bf16.msra.mxu0 %v1004
    %1739 = vmatprep.subr.bf16.mxu0 %v997
    %1740 = vmatpush1.bf16.msra.mxu0 %v996
    %1741 = vmatprep.subr.bf16.mxu0 %v989
    %1742 = vmatpush1.bf16.msra.mxu0 %v988
    %1743 = vmatprep.subr.bf16.mxu0 %v1109
    %1744 = vmatpush2.bf16.msra.mxu0 %v1108
    %1745 = vmatprep.subr.bf16.mxu0 %v1101
    %1746 = vmatpush2.bf16.msra.mxu0 %v1100
    %1747 = vmatprep.subr.bf16.mxu0 %v1093
    %1748 = vmatpush2.bf16.msra.mxu0 %v1092
    %1749 = vmatprep.subr.bf16.mxu0 %v1085
    %1750 = vmatpush2.bf16.msra.mxu0 %v1084
    %1751 = vmatprep.subr.bf16.mxu0 %v1077
    %1752 = vmatpush2.bf16.msra.mxu0 %v1076
    %1753 = vmatprep.subr.bf16.mxu0 %v1069
    %1754 = vmatpush2.bf16.msra.mxu0 %v1068
    %1755 = vmatprep.subr.bf16.mxu0 %v1061
    %1756 = vmatpush2.bf16.msra.mxu0 %v1060
    %1757 = vmatprep.subr.bf16.mxu0 %v1053
    %1758 = vmatpush2.bf16.msra.mxu0 %v1052
    %1759 = vmatprep.mubr.bf16.mxu0 %v1685
    %1760 = vmatmul.mubr.bf16.gmra.mxu0 %v1684
    %v1761 = vpop.f32.mrf.mxu0
    %v1762 = vadd.f32 0.0, %v1761
    %v1763 = vpop.f32.mrf.mxu0
    %v1764 = vadd.f32 0.0, %v1763
    %v1765 = vpop.f32.mrf.mxu0
    %v1766 = vpop.f32.mrf.mxu0
    %1767 = vdwg.mxu0
    %1768 = vmatprep.subr.bf16.mxu0 %v1047
    %1769 = vmatpush1.bf16.msra.mxu0 %v1046
    %1770 = vmatprep.subr.bf16.mxu0 %v1039
    %1771 = vmatpush1.bf16.msra.mxu0 %v1038
    %1772 = vmatprep.subr.bf16.mxu0 %v1031
    %1773 = vmatpush1.bf16.msra.mxu0 %v1030
    %1774 = vmatprep.subr.bf16.mxu0 %v1023
    %1775 = vmatpush1.bf16.msra.mxu0 %v1022
    %1776 = vmatprep.subr.bf16.mxu0 %v1015
    %1777 = vmatpush1.bf16.msra.mxu0 %v1014
    %1778 = vmatprep.subr.bf16.mxu0 %v1007
    %1779 = vmatpush1.bf16.msra.mxu0 %v1006
    %1780 = vmatprep.subr.bf16.mxu0 %v999
    %1781 = vmatpush1.bf16.msra.mxu0 %v998
    %1782 = vmatprep.subr.bf16.mxu0 %v991
    %1783 = vmatpush1.bf16.msra.mxu0 %v990
    %1784 = vmatprep.subr.bf16.mxu0 %v1111
    %1785 = vmatpush2.bf16.msra.mxu0 %v1110
    %1786 = vmatprep.subr.bf16.mxu0 %v1103
    %1787 = vmatpush2.bf16.msra.mxu0 %v1102
    %1788 = vmatprep.subr.bf16.mxu0 %v1095
    %1789 = vmatpush2.bf16.msra.mxu0 %v1094
    %1790 = vmatprep.subr.bf16.mxu0 %v1087
    %1791 = vmatpush2.bf16.msra.mxu0 %v1086
    %1792 = vmatprep.subr.bf16.mxu0 %v1079
    %1793 = vmatpush2.bf16.msra.mxu0 %v1078
    %1794 = vmatprep.subr.bf16.mxu0 %v1071
    %1795 = vmatpush2.bf16.msra.mxu0 %v1070
    %1796 = vmatprep.subr.bf16.mxu0 %v1063
    %1797 = vmatpush2.bf16.msra.mxu0 %v1062
    %1798 = vmatprep.subr.bf16.mxu0 %v1055
    %1799 = vmatpush2.bf16.msra.mxu0 %v1054
    %1800 = vmatprep.mubr.bf16.mxu0 %v1685
    %1801 = vmatmul.mubr.bf16.gmra.mxu0 %v1684
    %v1802 = vpop.f32.mrf.mxu0
    %v1803 = vadd.f32 0.0, %v1802
    %v1804 = vpop.f32.mrf.mxu0
    %v1805 = vadd.f32 0.0, %v1804
    %v1806 = vpop.f32.mrf.mxu0
    %v1807 = vpop.f32.mrf.mxu0
    %1808 = vdwg.mxu0
    %1809 = vmatprep.subr.bf16.mxu0 %v1049
    %1810 = vmatpush1.bf16.msra.mxu0 %v1048
    %1811 = vmatprep.subr.bf16.mxu0 %v1041
    %1812 = vmatpush1.bf16.msra.mxu0 %v1040
    %1813 = vmatprep.subr.bf16.mxu0 %v1033
    %1814 = vmatpush1.bf16.msra.mxu0 %v1032
    %1815 = vmatprep.subr.bf16.mxu0 %v1025
    %1816 = vmatpush1.bf16.msra.mxu0 %v1024
    %1817 = vmatprep.subr.bf16.mxu0 %v1017
    %1818 = vmatpush1.bf16.msra.mxu0 %v1016
    %1819 = vmatprep.subr.bf16.mxu0 %v1009
    %1820 = vmatpush1.bf16.msra.mxu0 %v1008
    %1821 = vmatprep.subr.bf16.mxu0 %v1001
    %1822 = vmatpush1.bf16.msra.mxu0 %v1000
    %1823 = vmatprep.subr.bf16.mxu0 %v993
    %1824 = vmatpush1.bf16.msra.mxu0 %v992
    %1825 = vmatprep.subr.bf16.mxu0 %v1113
    %1826 = vmatpush2.bf16.msra.mxu0 %v1112
    %1827 = vmatprep.subr.bf16.mxu0 %v1105
    %1828 = vmatpush2.bf16.msra.mxu0 %v1104
    %1829 = vmatprep.subr.bf16.mxu0 %v1097
    %1830 = vmatpush2.bf16.msra.mxu0 %v1096
    %1831 = vmatprep.subr.bf16.mxu0 %v1089
    %1832 = vmatpush2.bf16.msra.mxu0 %v1088
    %1833 = vmatprep.subr.bf16.mxu0 %v1081
    %1834 = vmatpush2.bf16.msra.mxu0 %v1080
    %1835 = vmatprep.subr.bf16.mxu0 %v1073
    %1836 = vmatpush2.bf16.msra.mxu0 %v1072
    %1837 = vmatprep.subr.bf16.mxu0 %v1065
    %1838 = vmatpush2.bf16.msra.mxu0 %v1064
    %1839 = vmatprep.subr.bf16.mxu0 %v1057
    %1840 = vmatpush2.bf16.msra.mxu0 %v1056
    %1841 = vmatprep.mubr.bf16.mxu0 %v1685
    %1842 = vmatmul.mubr.bf16.gmra.mxu0 %v1684
    %v1843 = vpop.f32.mrf.mxu0
    %v1844 = vadd.f32 0.0, %v1843
    %v1845 = vpop.f32.mrf.mxu0
    %v1846 = vadd.f32 0.0, %v1845
    %v1847 = vpop.f32.mrf.mxu0
    %v1848 = vpop.f32.mrf.mxu0
    %1849 = vdwg.mxu0
    %v1850 = vadd.f32 %v221, %v1721
    %v1851 = vadd.f32 %v223, %v1723
    %v1852 = vadd.f32 %v294, %v1762
    %v1853 = vadd.f32 %v296, %v1764
    %v1854 = vadd.f32 %v367, %v1803
    %v1855 = vadd.f32 %v369, %v1805
    %v1856 = vadd.f32 %v440, %v1844
    %v1857 = vadd.f32 %v442, %v1846
    %v1858 = vxor.u32 %v1850, 2147483648
    %v1859 = vxor.u32 %v1851, 2147483648
    %v1860 = vmul.f32 %v1858, 1.442695
    %v1861 = vpow.pop %v1860
    %v1862 = vmul.f32 %v1859, 1.442695
    %v1863 = vpow.pop %v1862
    %v1864 = vadd.f32 %v1861, 1.0
    %v1865 = vadd.f32 %v1863, 1.0
    %v1866 = vrcp.pop %v1864
    %v1867 = vmul.f32 1.0, %v1866
    %v1868 = vrcp.pop %v1865
    %v1869 = vmul.f32 1.0, %v1868
    %v1870 = vxor.u32 %v1852, 2147483648
    %v1871 = vxor.u32 %v1853, 2147483648
    %v1872 = vmul.f32 %v1870, 1.442695
    %v1873 = vpow.pop %v1872
    %v1874 = vmul.f32 %v1871, 1.442695
    %v1875 = vpow.pop %v1874
    %v1876 = vadd.f32 %v1873, 1.0
    %v1877 = vadd.f32 %v1875, 1.0
    %v1878 = vrcp.pop %v1876
    %v1879 = vmul.f32 1.0, %v1878
    %v1880 = vrcp.pop %v1877
    %v1881 = vmul.f32 1.0, %v1880
    %v1882 = vtanh.pop %v1854
    %v1883 = vtanh.pop %v1855
    %v1884 = vxor.u32 %v1856, 2147483648
    %v1885 = vxor.u32 %v1857, 2147483648
    %v1886 = vmul.f32 %v1884, 1.442695
    %v1887 = vpow.pop %v1886
    %v1888 = vmul.f32 %v1885, 1.442695
    %v1889 = vpow.pop %v1888
    %v1890 = vadd.f32 %v1887, 1.0
    %v1891 = vadd.f32 %v1889, 1.0
    %v1892 = vrcp.pop %v1890
    %v1893 = vmul.f32 1.0, %v1892
    %v1894 = vrcp.pop %v1891
    %v1895 = vmul.f32 1.0, %v1894
    %v1896 = vmul.f32 %v1879, %v1678
    %v1897 = vmul.f32 %v1881, %v1679
    %v1898 = vmul.f32 %v1867, %v1882
    %v1899 = vmul.f32 %v1869, %v1883
    %v1900 = vadd.f32 %v1896, %v1898
    %v1901 = vadd.f32 %v1897, %v1899
    %v1902 = vtanh.pop %v1900
    %v1903 = vtanh.pop %v1901
    %v1904 = vmul.f32 %v1893, %v1902
    %v1905 = vmul.f32 %v1895, %v1903
    %v1906 = vpack.c.bf16 %v1904, %v1904
    %v1907 = vpack.c.bf16 %v1905, %v1905
    %1908 = vmatprep.subr.bf16.mxu0 %v1043
    %1909 = vmatpush1.bf16.msra.mxu0 %v1042
    %1910 = vmatprep.subr.bf16.mxu0 %v1035
    %1911 = vmatpush1.bf16.msra.mxu0 %v1034
    %1912 = vmatprep.subr.bf16.mxu0 %v1027
    %1913 = vmatpush1.bf16.msra.mxu0 %v1026
    %1914 = vmatprep.subr.bf16.mxu0 %v1019
    %1915 = vmatpush1.bf16.msra.mxu0 %v1018
    %1916 = vmatprep.subr.bf16.mxu0 %v1011
    %1917 = vmatpush1.bf16.msra.mxu0 %v1010
    %1918 = vmatprep.subr.bf16.mxu0 %v1003
    %1919 = vmatpush1.bf16.msra.mxu0 %v1002
    %1920 = vmatprep.subr.bf16.mxu0 %v995
    %1921 = vmatpush1.bf16.msra.mxu0 %v994
    %1922 = vmatprep.subr.bf16.mxu0 %v987
    %1923 = vmatpush1.bf16.msra.mxu0 %v986
    %1924 = vmatprep.subr.bf16.mxu0 %v1107
    %1925 = vmatpush2.bf16.msra.mxu0 %v1106
    %1926 = vmatprep.subr.bf16.mxu0 %v1099
    %1927 = vmatpush2.bf16.msra.mxu0 %v1098
    %1928 = vmatprep.subr.bf16.mxu0 %v1091
    %1929 = vmatpush2.bf16.msra.mxu0 %v1090
    %1930 = vmatprep.subr.bf16.mxu0 %v1083
    %1931 = vmatpush2.bf16.msra.mxu0 %v1082
    %1932 = vmatprep.subr.bf16.mxu0 %v1075
    %1933 = vmatpush2.bf16.msra.mxu0 %v1074
    %1934 = vmatprep.subr.bf16.mxu0 %v1067
    %1935 = vmatpush2.bf16.msra.mxu0 %v1066
    %1936 = vmatprep.subr.bf16.mxu0 %v1059
    %1937 = vmatpush2.bf16.msra.mxu0 %v1058
    %1938 = vmatprep.subr.bf16.mxu0 %v1051
    %1939 = vmatpush2.bf16.msra.mxu0 %v1050
    %1940 = vmatprep.mubr.bf16.mxu0 %v1907
    %1941 = vmatmul.mubr.bf16.gmra.mxu0 %v1906
    %v1942 = vpop.f32.mrf.mxu0
    %v1943 = vadd.f32 0.0, %v1942
    %v1944 = vpop.f32.mrf.mxu0
    %v1945 = vadd.f32 0.0, %v1944
    %v1946 = vpop.f32.mrf.mxu0
    %v1947 = vpop.f32.mrf.mxu0
    %1948 = vdwg.mxu0
    %1949 = vmatprep.subr.bf16.mxu0 %v1045
    %1950 = vmatpush1.bf16.msra.mxu0 %v1044
    %1951 = vmatprep.subr.bf16.mxu0 %v1037
    %1952 = vmatpush1.bf16.msra.mxu0 %v1036
    %1953 = vmatprep.subr.bf16.mxu0 %v1029
    %1954 = vmatpush1.bf16.msra.mxu0 %v1028
    %1955 = vmatprep.subr.bf16.mxu0 %v1021
    %1956 = vmatpush1.bf16.msra.mxu0 %v1020
    %1957 = vmatprep.subr.bf16.mxu0 %v1013
    %1958 = vmatpush1.bf16.msra.mxu0 %v1012
    %1959 = vmatprep.subr.bf16.mxu0 %v1005
    %1960 = vmatpush1.bf16.msra.mxu0 %v1004
    %1961 = vmatprep.subr.bf16.mxu0 %v997
    %1962 = vmatpush1.bf16.msra.mxu0 %v996
    %1963 = vmatprep.subr.bf16.mxu0 %v989
    %1964 = vmatpush1.bf16.msra.mxu0 %v988
    %1965 = vmatprep.subr.bf16.mxu0 %v1109
    %1966 = vmatpush2.bf16.msra.mxu0 %v1108
    %1967 = vmatprep.subr.bf16.mxu0 %v1101
    %1968 = vmatpush2.bf16.msra.mxu0 %v1100
    %1969 = vmatprep.subr.bf16.mxu0 %v1093
    %1970 = vmatpush2.bf16.msra.mxu0 %v1092
    %1971 = vmatprep.subr.bf16.mxu0 %v1085
    %1972 = vmatpush2.bf16.msra.mxu0 %v1084
    %1973 = vmatprep.subr.bf16.mxu0 %v1077
    %1974 = vmatpush2.bf16.msra.mxu0 %v1076
    %1975 = vmatprep.subr.bf16.mxu0 %v1069
    %1976 = vmatpush2.bf16.msra.mxu0 %v1068
    %1977 = vmatprep.subr.bf16.mxu0 %v1061
    %1978 = vmatpush2.bf16.msra.mxu0 %v1060
    %1979 = vmatprep.subr.bf16.mxu0 %v1053
    %1980 = vmatpush2.bf16.msra.mxu0 %v1052
    %1981 = vmatprep.mubr.bf16.mxu0 %v1907
    %1982 = vmatmul.mubr.bf16.gmra.mxu0 %v1906
    %v1983 = vpop.f32.mrf.mxu0
    %v1984 = vadd.f32 0.0, %v1983
    %v1985 = vpop.f32.mrf.mxu0
    %v1986 = vadd.f32 0.0, %v1985
    %v1987 = vpop.f32.mrf.mxu0
    %v1988 = vpop.f32.mrf.mxu0
    %1989 = vdwg.mxu0
    %1990 = vmatprep.subr.bf16.mxu0 %v1047
    %1991 = vmatpush1.bf16.msra.mxu0 %v1046
    %1992 = vmatprep.subr.bf16.mxu0 %v1039
    %1993 = vmatpush1.bf16.msra.mxu0 %v1038
    %1994 = vmatprep.subr.bf16.mxu0 %v1031
    %1995 = vmatpush1.bf16.msra.mxu0 %v1030
    %1996 = vmatprep.subr.bf16.mxu0 %v1023
    %1997 = vmatpush1.bf16.msra.mxu0 %v1022
    %1998 = vmatprep.subr.bf16.mxu0 %v1015
    %1999 = vmatpush1.bf16.msra.mxu0 %v1014
    %2000 = vmatprep.subr.bf16.mxu0 %v1007
    %2001 = vmatpush1.bf16.msra.mxu0 %v1006
    %2002 = vmatprep.subr.bf16.mxu0 %v999
    %2003 = vmatpush1.bf16.msra.mxu0 %v998
    %2004 = vmatprep.subr.bf16.mxu0 %v991
    %2005 = vmatpush1.bf16.msra.mxu0 %v990
    %2006 = vmatprep.subr.bf16.mxu0 %v1111
    %2007 = vmatpush2.bf16.msra.mxu0 %v1110
    %2008 = vmatprep.subr.bf16.mxu0 %v1103
    %2009 = vmatpush2.bf16.msra.mxu0 %v1102
    %2010 = vmatprep.subr.bf16.mxu0 %v1095
    %2011 = vmatpush2.bf16.msra.mxu0 %v1094
    %2012 = vmatprep.subr.bf16.mxu0 %v1087
    %2013 = vmatpush2.bf16.msra.mxu0 %v1086
    %2014 = vmatprep.subr.bf16.mxu0 %v1079
    %2015 = vmatpush2.bf16.msra.mxu0 %v1078
    %2016 = vmatprep.subr.bf16.mxu0 %v1071
    %2017 = vmatpush2.bf16.msra.mxu0 %v1070
    %2018 = vmatprep.subr.bf16.mxu0 %v1063
    %2019 = vmatpush2.bf16.msra.mxu0 %v1062
    %2020 = vmatprep.subr.bf16.mxu0 %v1055
    %2021 = vmatpush2.bf16.msra.mxu0 %v1054
    %2022 = vmatprep.mubr.bf16.mxu0 %v1907
    %2023 = vmatmul.mubr.bf16.gmra.mxu0 %v1906
    %v2024 = vpop.f32.mrf.mxu0
    %v2025 = vadd.f32 0.0, %v2024
    %v2026 = vpop.f32.mrf.mxu0
    %v2027 = vadd.f32 0.0, %v2026
    %v2028 = vpop.f32.mrf.mxu0
    %v2029 = vpop.f32.mrf.mxu0
    %2030 = vdwg.mxu0
    %2031 = vmatprep.subr.bf16.mxu0 %v1049
    %2032 = vmatpush1.bf16.msra.mxu0 %v1048
    %2033 = vmatprep.subr.bf16.mxu0 %v1041
    %2034 = vmatpush1.bf16.msra.mxu0 %v1040
    %2035 = vmatprep.subr.bf16.mxu0 %v1033
    %2036 = vmatpush1.bf16.msra.mxu0 %v1032
    %2037 = vmatprep.subr.bf16.mxu0 %v1025
    %2038 = vmatpush1.bf16.msra.mxu0 %v1024
    %2039 = vmatprep.subr.bf16.mxu0 %v1017
    %2040 = vmatpush1.bf16.msra.mxu0 %v1016
    %2041 = vmatprep.subr.bf16.mxu0 %v1009
    %2042 = vmatpush1.bf16.msra.mxu0 %v1008
    %2043 = vmatprep.subr.bf16.mxu0 %v1001
    %2044 = vmatpush1.bf16.msra.mxu0 %v1000
    %2045 = vmatprep.subr.bf16.mxu0 %v993
    %2046 = vmatpush1.bf16.msra.mxu0 %v992
    %2047 = vmatprep.subr.bf16.mxu0 %v1113
    %2048 = vmatpush2.bf16.msra.mxu0 %v1112
    %2049 = vmatprep.subr.bf16.mxu0 %v1105
    %2050 = vmatpush2.bf16.msra.mxu0 %v1104
    %2051 = vmatprep.subr.bf16.mxu0 %v1097
    %2052 = vmatpush2.bf16.msra.mxu0 %v1096
    %2053 = vmatprep.subr.bf16.mxu0 %v1089
    %2054 = vmatpush2.bf16.msra.mxu0 %v1088
    %2055 = vmatprep.subr.bf16.mxu0 %v1081
    %2056 = vmatpush2.bf16.msra.mxu0 %v1080
    %2057 = vmatprep.subr.bf16.mxu0 %v1073
    %2058 = vmatpush2.bf16.msra.mxu0 %v1072
    %2059 = vmatprep.subr.bf16.mxu0 %v1065
    %2060 = vmatpush2.bf16.msra.mxu0 %v1064
    %2061 = vmatprep.subr.bf16.mxu0 %v1057
    %2062 = vmatpush2.bf16.msra.mxu0 %v1056
    %2063 = vmatprep.mubr.bf16.mxu0 %v1907
    %2064 = vmatmul.mubr.bf16.gmra.mxu0 %v1906
    %v2065 = vpop.f32.mrf.mxu0
    %v2066 = vadd.f32 0.0, %v2065
    %v2067 = vpop.f32.mrf.mxu0
    %v2068 = vadd.f32 0.0, %v2067
    %v2069 = vpop.f32.mrf.mxu0
    %v2070 = vpop.f32.mrf.mxu0
    %2071 = vdwg.mxu0
    %v2072 = vadd.f32 %v225, %v1943
    %v2073 = vadd.f32 %v227, %v1945
    %v2074 = vadd.f32 %v298, %v1984
    %v2075 = vadd.f32 %v300, %v1986
    %v2076 = vadd.f32 %v371, %v2025
    %v2077 = vadd.f32 %v373, %v2027
    %v2078 = vadd.f32 %v444, %v2066
    %v2079 = vadd.f32 %v446, %v2068
    %v2080 = vxor.u32 %v2072, 2147483648
    %v2081 = vxor.u32 %v2073, 2147483648
    %v2082 = vmul.f32 %v2080, 1.442695
    %v2083 = vpow.pop %v2082
    %v2084 = vmul.f32 %v2081, 1.442695
    %v2085 = vpow.pop %v2084
    %v2086 = vadd.f32 %v2083, 1.0
    %v2087 = vadd.f32 %v2085, 1.0
    %v2088 = vrcp.pop %v2086
    %v2089 = vmul.f32 1.0, %v2088
    %v2090 = vrcp.pop %v2087
    %v2091 = vmul.f32 1.0, %v2090
    %v2092 = vxor.u32 %v2074, 2147483648
    %v2093 = vxor.u32 %v2075, 2147483648
    %v2094 = vmul.f32 %v2092, 1.442695
    %v2095 = vpow.pop %v2094
    %v2096 = vmul.f32 %v2093, 1.442695
    %v2097 = vpow.pop %v2096
    %v2098 = vadd.f32 %v2095, 1.0
    %v2099 = vadd.f32 %v2097, 1.0
    %v2100 = vrcp.pop %v2098
    %v2101 = vmul.f32 1.0, %v2100
    %v2102 = vrcp.pop %v2099
    %v2103 = vmul.f32 1.0, %v2102
    %v2104 = vtanh.pop %v2076
    %v2105 = vtanh.pop %v2077
    %v2106 = vxor.u32 %v2078, 2147483648
    %v2107 = vxor.u32 %v2079, 2147483648
    %v2108 = vmul.f32 %v2106, 1.442695
    %v2109 = vpow.pop %v2108
    %v2110 = vmul.f32 %v2107, 1.442695
    %v2111 = vpow.pop %v2110
    %v2112 = vadd.f32 %v2109, 1.0
    %v2113 = vadd.f32 %v2111, 1.0
    %v2114 = vrcp.pop %v2112
    %v2115 = vmul.f32 1.0, %v2114
    %v2116 = vrcp.pop %v2113
    %v2117 = vmul.f32 1.0, %v2116
    %v2118 = vmul.f32 %v2101, %v1900
    %v2119 = vmul.f32 %v2103, %v1901
    %v2120 = vmul.f32 %v2089, %v2104
    %v2121 = vmul.f32 %v2091, %v2105
    %v2122 = vadd.f32 %v2118, %v2120
    %v2123 = vadd.f32 %v2119, %v2121
    %v2124 = vtanh.pop %v2122
    %v2125 = vtanh.pop %v2123
    %v2126 = vmul.f32 %v2115, %v2124
    %v2127 = vmul.f32 %v2117, %v2125
    %v2128 = vpack.c.bf16 %v2126, %v2126
    %v2129 = vpack.c.bf16 %v2127, %v2127
    %2130 = vmatprep.subr.bf16.mxu0 %v1043
    %2131 = vmatpush1.bf16.msra.mxu0 %v1042
    %2132 = vmatprep.subr.bf16.mxu0 %v1035
    %2133 = vmatpush1.bf16.msra.mxu0 %v1034
    %2134 = vmatprep.subr.bf16.mxu0 %v1027
    %2135 = vmatpush1.bf16.msra.mxu0 %v1026
    %2136 = vmatprep.subr.bf16.mxu0 %v1019
    %2137 = vmatpush1.bf16.msra.mxu0 %v1018
    %2138 = vmatprep.subr.bf16.mxu0 %v1011
    %2139 = vmatpush1.bf16.msra.mxu0 %v1010
    %2140 = vmatprep.subr.bf16.mxu0 %v1003
    %2141 = vmatpush1.bf16.msra.mxu0 %v1002
    %2142 = vmatprep.subr.bf16.mxu0 %v995
    %2143 = vmatpush1.bf16.msra.mxu0 %v994
    %2144 = vmatprep.subr.bf16.mxu0 %v987
    %2145 = vmatpush1.bf16.msra.mxu0 %v986
    %2146 = vmatprep.subr.bf16.mxu0 %v1107
    %2147 = vmatpush2.bf16.msra.mxu0 %v1106
    %2148 = vmatprep.subr.bf16.mxu0 %v1099
    %2149 = vmatpush2.bf16.msra.mxu0 %v1098
    %2150 = vmatprep.subr.bf16.mxu0 %v1091
    %2151 = vmatpush2.bf16.msra.mxu0 %v1090
    %2152 = vmatprep.subr.bf16.mxu0 %v1083
    %2153 = vmatpush2.bf16.msra.mxu0 %v1082
    %2154 = vmatprep.subr.bf16.mxu0 %v1075
    %2155 = vmatpush2.bf16.msra.mxu0 %v1074
    %2156 = vmatprep.subr.bf16.mxu0 %v1067
    %2157 = vmatpush2.bf16.msra.mxu0 %v1066
    %2158 = vmatprep.subr.bf16.mxu0 %v1059
    %2159 = vmatpush2.bf16.msra.mxu0 %v1058
    %2160 = vmatprep.subr.bf16.mxu0 %v1051
    %2161 = vmatpush2.bf16.msra.mxu0 %v1050
    %2162 = vmatprep.mubr.bf16.mxu0 %v2129
    %2163 = vmatmul.mubr.bf16.gmra.mxu0 %v2128
    %v2164 = vpop.f32.mrf.mxu0
    %v2165 = vadd.f32 0.0, %v2164
    %v2166 = vpop.f32.mrf.mxu0
    %v2167 = vadd.f32 0.0, %v2166
    %v2168 = vpop.f32.mrf.mxu0
    %v2169 = vpop.f32.mrf.mxu0
    %2170 = vdwg.mxu0
    %2171 = vmatprep.subr.bf16.mxu0 %v1045
    %2172 = vmatpush1.bf16.msra.mxu0 %v1044
    %2173 = vmatprep.subr.bf16.mxu0 %v1037
    %2174 = vmatpush1.bf16.msra.mxu0 %v1036
    %2175 = vmatprep.subr.bf16.mxu0 %v1029
    %2176 = vmatpush1.bf16.msra.mxu0 %v1028
    %2177 = vmatprep.subr.bf16.mxu0 %v1021
    %2178 = vmatpush1.bf16.msra.mxu0 %v1020
    %2179 = vmatprep.subr.bf16.mxu0 %v1013
    %2180 = vmatpush1.bf16.msra.mxu0 %v1012
    %2181 = vmatprep.subr.bf16.mxu0 %v1005
    %2182 = vmatpush1.bf16.msra.mxu0 %v1004
    %2183 = vmatprep.subr.bf16.mxu0 %v997
    %2184 = vmatpush1.bf16.msra.mxu0 %v996
    %2185 = vmatprep.subr.bf16.mxu0 %v989
    %2186 = vmatpush1.bf16.msra.mxu0 %v988
    %2187 = vmatprep.subr.bf16.mxu0 %v1109
    %2188 = vmatpush2.bf16.msra.mxu0 %v1108
    %2189 = vmatprep.subr.bf16.mxu0 %v1101
    %2190 = vmatpush2.bf16.msra.mxu0 %v1100
    %2191 = vmatprep.subr.bf16.mxu0 %v1093
    %2192 = vmatpush2.bf16.msra.mxu0 %v1092
    %2193 = vmatprep.subr.bf16.mxu0 %v1085
    %2194 = vmatpush2.bf16.msra.mxu0 %v1084
    %2195 = vmatprep.subr.bf16.mxu0 %v1077
    %2196 = vmatpush2.bf16.msra.mxu0 %v1076
    %2197 = vmatprep.subr.bf16.mxu0 %v1069
    %2198 = vmatpush2.bf16.msra.mxu0 %v1068
    %2199 = vmatprep.subr.bf16.mxu0 %v1061
    %2200 = vmatpush2.bf16.msra.mxu0 %v1060
    %2201 = vmatprep.subr.bf16.mxu0 %v1053
    %2202 = vmatpush2.bf16.msra.mxu0 %v1052
    %2203 = vmatprep.mubr.bf16.mxu0 %v2129
    %2204 = vmatmul.mubr.bf16.gmra.mxu0 %v2128
    %v2205 = vpop.f32.mrf.mxu0
    %v2206 = vadd.f32 0.0, %v2205
    %v2207 = vpop.f32.mrf.mxu0
    %v2208 = vadd.f32 0.0, %v2207
    %v2209 = vpop.f32.mrf.mxu0
    %v2210 = vpop.f32.mrf.mxu0
    %2211 = vdwg.mxu0
    %2212 = vmatprep.subr.bf16.mxu0 %v1047
    %2213 = vmatpush1.bf16.msra.mxu0 %v1046
    %2214 = vmatprep.subr.bf16.mxu0 %v1039
    %2215 = vmatpush1.bf16.msra.mxu0 %v1038
    %2216 = vmatprep.subr.bf16.mxu0 %v1031
    %2217 = vmatpush1.bf16.msra.mxu0 %v1030
    %2218 = vmatprep.subr.bf16.mxu0 %v1023
    %2219 = vmatpush1.bf16.msra.mxu0 %v1022
    %2220 = vmatprep.subr.bf16.mxu0 %v1015
    %2221 = vmatpush1.bf16.msra.mxu0 %v1014
    %2222 = vmatprep.subr.bf16.mxu0 %v1007
    %2223 = vmatpush1.bf16.msra.mxu0 %v1006
    %2224 = vmatprep.subr.bf16.mxu0 %v999
    %2225 = vmatpush1.bf16.msra.mxu0 %v998
    %2226 = vmatprep.subr.bf16.mxu0 %v991
    %2227 = vmatpush1.bf16.msra.mxu0 %v990
    %2228 = vmatprep.subr.bf16.mxu0 %v1111
    %2229 = vmatpush2.bf16.msra.mxu0 %v1110
    %2230 = vmatprep.subr.bf16.mxu0 %v1103
    %2231 = vmatpush2.bf16.msra.mxu0 %v1102
    %2232 = vmatprep.subr.bf16.mxu0 %v1095
    %2233 = vmatpush2.bf16.msra.mxu0 %v1094
    %2234 = vmatprep.subr.bf16.mxu0 %v1087
    %2235 = vmatpush2.bf16.msra.mxu0 %v1086
    %2236 = vmatprep.subr.bf16.mxu0 %v1079
    %2237 = vmatpush2.bf16.msra.mxu0 %v1078
    %2238 = vmatprep.subr.bf16.mxu0 %v1071
    %2239 = vmatpush2.bf16.msra.mxu0 %v1070
    %2240 = vmatprep.subr.bf16.mxu0 %v1063
    %2241 = vmatpush2.bf16.msra.mxu0 %v1062
    %2242 = vmatprep.subr.bf16.mxu0 %v1055
    %2243 = vmatpush2.bf16.msra.mxu0 %v1054
    %2244 = vmatprep.mubr.bf16.mxu0 %v2129
    %2245 = vmatmul.mubr.bf16.gmra.mxu0 %v2128
    %v2246 = vpop.f32.mrf.mxu0
    %v2247 = vadd.f32 0.0, %v2246
    %v2248 = vpop.f32.mrf.mxu0
    %v2249 = vadd.f32 0.0, %v2248
    %v2250 = vpop.f32.mrf.mxu0
    %v2251 = vpop.f32.mrf.mxu0
    %2252 = vdwg.mxu0
    %2253 = vmatprep.subr.bf16.mxu0 %v1049
    %2254 = vmatpush1.bf16.msra.mxu0 %v1048
    %2255 = vmatprep.subr.bf16.mxu0 %v1041
    %2256 = vmatpush1.bf16.msra.mxu0 %v1040
    %2257 = vmatprep.subr.bf16.mxu0 %v1033
    %2258 = vmatpush1.bf16.msra.mxu0 %v1032
    %2259 = vmatprep.subr.bf16.mxu0 %v1025
    %2260 = vmatpush1.bf16.msra.mxu0 %v1024
    %2261 = vmatprep.subr.bf16.mxu0 %v1017
    %2262 = vmatpush1.bf16.msra.mxu0 %v1016
    %2263 = vmatprep.subr.bf16.mxu0 %v1009
    %2264 = vmatpush1.bf16.msra.mxu0 %v1008
    %2265 = vmatprep.subr.bf16.mxu0 %v1001
    %2266 = vmatpush1.bf16.msra.mxu0 %v1000
    %2267 = vmatprep.subr.bf16.mxu0 %v993
    %2268 = vmatpush1.bf16.msra.mxu0 %v992
    %2269 = vmatprep.subr.bf16.mxu0 %v1113
    %2270 = vmatpush2.bf16.msra.mxu0 %v1112
    %2271 = vmatprep.subr.bf16.mxu0 %v1105
    %2272 = vmatpush2.bf16.msra.mxu0 %v1104
    %2273 = vmatprep.subr.bf16.mxu0 %v1097
    %2274 = vmatpush2.bf16.msra.mxu0 %v1096
    %2275 = vmatprep.subr.bf16.mxu0 %v1089
    %2276 = vmatpush2.bf16.msra.mxu0 %v1088
    %2277 = vmatprep.subr.bf16.mxu0 %v1081
    %2278 = vmatpush2.bf16.msra.mxu0 %v1080
    %2279 = vmatprep.subr.bf16.mxu0 %v1073
    %2280 = vmatpush2.bf16.msra.mxu0 %v1072
    %2281 = vmatprep.subr.bf16.mxu0 %v1065
    %2282 = vmatpush2.bf16.msra.mxu0 %v1064
    %2283 = vmatprep.subr.bf16.mxu0 %v1057
    %2284 = vmatpush2.bf16.msra.mxu0 %v1056
    %2285 = vmatprep.mubr.bf16.mxu0 %v2129
    %2286 = vmatmul.mubr.bf16.gmra.mxu0 %v2128
    %v2287 = vpop.f32.mrf.mxu0
    %v2288 = vadd.f32 0.0, %v2287
    %v2289 = vpop.f32.mrf.mxu0
    %v2290 = vadd.f32 0.0, %v2289
    %v2291 = vpop.f32.mrf.mxu0
    %v2292 = vpop.f32.mrf.mxu0
    %2293 = vdwg.mxu0
    %v2294 = vadd.f32 %v231, %v2165
    %v2295 = vadd.f32 %v233, %v2167
    %v2296 = vadd.f32 %v304, %v2206
    %v2297 = vadd.f32 %v306, %v2208
    %v2298 = vadd.f32 %v377, %v2247
    %v2299 = vadd.f32 %v379, %v2249
    %v2300 = vadd.f32 %v450, %v2288
    %v2301 = vadd.f32 %v452, %v2290
    %v2302 = vxor.u32 %v2294, 2147483648
    %v2303 = vxor.u32 %v2295, 2147483648
    %v2304 = vmul.f32 %v2302, 1.442695
    %v2305 = vpow.pop %v2304
    %v2306 = vmul.f32 %v2303, 1.442695
    %v2307 = vpow.pop %v2306
    %v2308 = vadd.f32 %v2305, 1.0
    %v2309 = vadd.f32 %v2307, 1.0
    %v2310 = vrcp.pop %v2308
    %v2311 = vmul.f32 1.0, %v2310
    %v2312 = vrcp.pop %v2309
    %v2313 = vmul.f32 1.0, %v2312
    %v2314 = vxor.u32 %v2296, 2147483648
    %v2315 = vxor.u32 %v2297, 2147483648
    %v2316 = vmul.f32 %v2314, 1.442695
    %v2317 = vpow.pop %v2316
    %v2318 = vmul.f32 %v2315, 1.442695
    %v2319 = vpow.pop %v2318
    %v2320 = vadd.f32 %v2317, 1.0
    %v2321 = vadd.f32 %v2319, 1.0
    %v2322 = vrcp.pop %v2320
    %v2323 = vmul.f32 1.0, %v2322
    %v2324 = vrcp.pop %v2321
    %v2325 = vmul.f32 1.0, %v2324
    %v2326 = vtanh.pop %v2298
    %v2327 = vtanh.pop %v2299
    %v2328 = vxor.u32 %v2300, 2147483648
    %v2329 = vxor.u32 %v2301, 2147483648
    %v2330 = vmul.f32 %v2328, 1.442695
    %v2331 = vpow.pop %v2330
    %v2332 = vmul.f32 %v2329, 1.442695
    %v2333 = vpow.pop %v2332
    %v2334 = vadd.f32 %v2331, 1.0
    %v2335 = vadd.f32 %v2333, 1.0
    %v2336 = vrcp.pop %v2334
    %v2337 = vmul.f32 1.0, %v2336
    %v2338 = vrcp.pop %v2335
    %v2339 = vmul.f32 1.0, %v2338
    %v2340 = vmul.f32 %v2323, %v2122
    %v2341 = vmul.f32 %v2325, %v2123
    %v2342 = vmul.f32 %v2311, %v2326
    %v2343 = vmul.f32 %v2313, %v2327
    %v2344 = vadd.f32 %v2340, %v2342
    %v2345 = vadd.f32 %v2341, %v2343
    %v2346 = vtanh.pop %v2344
    %v2347 = vtanh.pop %v2345
    %v2348 = vmul.f32 %v2337, %v2346
    %v2349 = vmul.f32 %v2339, %v2347
    %v2350 = vpack.c.bf16 %v2348, %v2348
    %v2351 = vpack.c.bf16 %v2349, %v2349
    %2352 = vmatprep.subr.bf16.mxu0 %v1043
    %2353 = vmatpush1.bf16.msra.mxu0 %v1042
    %2354 = vmatprep.subr.bf16.mxu0 %v1035
    %2355 = vmatpush1.bf16.msra.mxu0 %v1034
    %2356 = vmatprep.subr.bf16.mxu0 %v1027
    %2357 = vmatpush1.bf16.msra.mxu0 %v1026
    %2358 = vmatprep.subr.bf16.mxu0 %v1019
    %2359 = vmatpush1.bf16.msra.mxu0 %v1018
    %2360 = vmatprep.subr.bf16.mxu0 %v1011
    %2361 = vmatpush1.bf16.msra.mxu0 %v1010
    %2362 = vmatprep.subr.bf16.mxu0 %v1003
    %2363 = vmatpush1.bf16.msra.mxu0 %v1002
    %2364 = vmatprep.subr.bf16.mxu0 %v995
    %2365 = vmatpush1.bf16.msra.mxu0 %v994
    %2366 = vmatprep.subr.bf16.mxu0 %v987
    %2367 = vmatpush1.bf16.msra.mxu0 %v986
    %2368 = vmatprep.subr.bf16.mxu0 %v1107
    %2369 = vmatpush2.bf16.msra.mxu0 %v1106
    %2370 = vmatprep.subr.bf16.mxu0 %v1099
    %2371 = vmatpush2.bf16.msra.mxu0 %v1098
    %2372 = vmatprep.subr.bf16.mxu0 %v1091
    %2373 = vmatpush2.bf16.msra.mxu0 %v1090
    %2374 = vmatprep.subr.bf16.mxu0 %v1083
    %2375 = vmatpush2.bf16.msra.mxu0 %v1082
    %2376 = vmatprep.subr.bf16.mxu0 %v1075
    %2377 = vmatpush2.bf16.msra.mxu0 %v1074
    %2378 = vmatprep.subr.bf16.mxu0 %v1067
    %2379 = vmatpush2.bf16.msra.mxu0 %v1066
    %2380 = vmatprep.subr.bf16.mxu0 %v1059
    %2381 = vmatpush2.bf16.msra.mxu0 %v1058
    %2382 = vmatprep.subr.bf16.mxu0 %v1051
    %2383 = vmatpush2.bf16.msra.mxu0 %v1050
    %2384 = vmatprep.mubr.bf16.mxu0 %v2351
    %2385 = vmatmul.mubr.bf16.gmra.mxu0 %v2350
    %v2386 = vpop.f32.mrf.mxu0
    %v2387 = vadd.f32 0.0, %v2386
    %v2388 = vpop.f32.mrf.mxu0
    %v2389 = vadd.f32 0.0, %v2388
    %v2390 = vpop.f32.mrf.mxu0
    %v2391 = vpop.f32.mrf.mxu0
    %2392 = vdwg.mxu0
    %2393 = vmatprep.subr.bf16.mxu0 %v1045
    %2394 = vmatpush1.bf16.msra.mxu0 %v1044
    %2395 = vmatprep.subr.bf16.mxu0 %v1037
    %2396 = vmatpush1.bf16.msra.mxu0 %v1036
    %2397 = vmatprep.subr.bf16.mxu0 %v1029
    %2398 = vmatpush1.bf16.msra.mxu0 %v1028
    %2399 = vmatprep.subr.bf16.mxu0 %v1021
    %2400 = vmatpush1.bf16.msra.mxu0 %v1020
    %2401 = vmatprep.subr.bf16.mxu0 %v1013
    %2402 = vmatpush1.bf16.msra.mxu0 %v1012
    %2403 = vmatprep.subr.bf16.mxu0 %v1005
    %2404 = vmatpush1.bf16.msra.mxu0 %v1004
    %2405 = vmatprep.subr.bf16.mxu0 %v997
    %2406 = vmatpush1.bf16.msra.mxu0 %v996
    %2407 = vmatprep.subr.bf16.mxu0 %v989
    %2408 = vmatpush1.bf16.msra.mxu0 %v988
    %2409 = vmatprep.subr.bf16.mxu0 %v1109
    %2410 = vmatpush2.bf16.msra.mxu0 %v1108
    %2411 = vmatprep.subr.bf16.mxu0 %v1101
    %2412 = vmatpush2.bf16.msra.mxu0 %v1100
    %2413 = vmatprep.subr.bf16.mxu0 %v1093
    %2414 = vmatpush2.bf16.msra.mxu0 %v1092
    %2415 = vmatprep.subr.bf16.mxu0 %v1085
    %2416 = vmatpush2.bf16.msra.mxu0 %v1084
    %2417 = vmatprep.subr.bf16.mxu0 %v1077
    %2418 = vmatpush2.bf16.msra.mxu0 %v1076
    %2419 = vmatprep.subr.bf16.mxu0 %v1069
    %2420 = vmatpush2.bf16.msra.mxu0 %v1068
    %2421 = vmatprep.subr.bf16.mxu0 %v1061
    %2422 = vmatpush2.bf16.msra.mxu0 %v1060
    %2423 = vmatprep.subr.bf16.mxu0 %v1053
    %2424 = vmatpush2.bf16.msra.mxu0 %v1052
    %2425 = vmatprep.mubr.bf16.mxu0 %v2351
    %2426 = vmatmul.mubr.bf16.gmra.mxu0 %v2350
    %v2427 = vpop.f32.mrf.mxu0
    %v2428 = vadd.f32 0.0, %v2427
    %v2429 = vpop.f32.mrf.mxu0
    %v2430 = vadd.f32 0.0, %v2429
    %v2431 = vpop.f32.mrf.mxu0
    %v2432 = vpop.f32.mrf.mxu0
    %2433 = vdwg.mxu0
    %2434 = vmatprep.subr.bf16.mxu0 %v1047
    %2435 = vmatpush1.bf16.msra.mxu0 %v1046
    %2436 = vmatprep.subr.bf16.mxu0 %v1039
    %2437 = vmatpush1.bf16.msra.mxu0 %v1038
    %2438 = vmatprep.subr.bf16.mxu0 %v1031
    %2439 = vmatpush1.bf16.msra.mxu0 %v1030
    %2440 = vmatprep.subr.bf16.mxu0 %v1023
    %2441 = vmatpush1.bf16.msra.mxu0 %v1022
    %2442 = vmatprep.subr.bf16.mxu0 %v1015
    %2443 = vmatpush1.bf16.msra.mxu0 %v1014
    %2444 = vmatprep.subr.bf16.mxu0 %v1007
    %2445 = vmatpush1.bf16.msra.mxu0 %v1006
    %2446 = vmatprep.subr.bf16.mxu0 %v999
    %2447 = vmatpush1.bf16.msra.mxu0 %v998
    %2448 = vmatprep.subr.bf16.mxu0 %v991
    %2449 = vmatpush1.bf16.msra.mxu0 %v990
    %2450 = vmatprep.subr.bf16.mxu0 %v1111
    %2451 = vmatpush2.bf16.msra.mxu0 %v1110
    %2452 = vmatprep.subr.bf16.mxu0 %v1103
    %2453 = vmatpush2.bf16.msra.mxu0 %v1102
    %2454 = vmatprep.subr.bf16.mxu0 %v1095
    %2455 = vmatpush2.bf16.msra.mxu0 %v1094
    %2456 = vmatprep.subr.bf16.mxu0 %v1087
    %2457 = vmatpush2.bf16.msra.mxu0 %v1086
    %2458 = vmatprep.subr.bf16.mxu0 %v1079
    %2459 = vmatpush2.bf16.msra.mxu0 %v1078
    %2460 = vmatprep.subr.bf16.mxu0 %v1071
    %2461 = vmatpush2.bf16.msra.mxu0 %v1070
    %2462 = vmatprep.subr.bf16.mxu0 %v1063
    %2463 = vmatpush2.bf16.msra.mxu0 %v1062
    %2464 = vmatprep.subr.bf16.mxu0 %v1055
    %2465 = vmatpush2.bf16.msra.mxu0 %v1054
    %2466 = vmatprep.mubr.bf16.mxu0 %v2351
    %2467 = vmatmul.mubr.bf16.gmra.mxu0 %v2350
    %v2468 = vpop.f32.mrf.mxu0
    %v2469 = vadd.f32 0.0, %v2468
    %v2470 = vpop.f32.mrf.mxu0
    %v2471 = vadd.f32 0.0, %v2470
    %v2472 = vpop.f32.mrf.mxu0
    %v2473 = vpop.f32.mrf.mxu0
    %2474 = vdwg.mxu0
    %2475 = vmatprep.subr.bf16.mxu0 %v1049
    %2476 = vmatpush1.bf16.msra.mxu0 %v1048
    %2477 = vmatprep.subr.bf16.mxu0 %v1041
    %2478 = vmatpush1.bf16.msra.mxu0 %v1040
    %2479 = vmatprep.subr.bf16.mxu0 %v1033
    %2480 = vmatpush1.bf16.msra.mxu0 %v1032
    %2481 = vmatprep.subr.bf16.mxu0 %v1025
    %2482 = vmatpush1.bf16.msra.mxu0 %v1024
    %2483 = vmatprep.subr.bf16.mxu0 %v1017
    %2484 = vmatpush1.bf16.msra.mxu0 %v1016
    %2485 = vmatprep.subr.bf16.mxu0 %v1009
    %2486 = vmatpush1.bf16.msra.mxu0 %v1008
    %2487 = vmatprep.subr.bf16.mxu0 %v1001
    %2488 = vmatpush1.bf16.msra.mxu0 %v1000
    %2489 = vmatprep.subr.bf16.mxu0 %v993
    %2490 = vmatpush1.bf16.msra.mxu0 %v992
    %2491 = vmatprep.subr.bf16.mxu0 %v1113
    %2492 = vmatpush2.bf16.msra.mxu0 %v1112
    %2493 = vmatprep.subr.bf16.mxu0 %v1105
    %2494 = vmatpush2.bf16.msra.mxu0 %v1104
    %2495 = vmatprep.subr.bf16.mxu0 %v1097
    %2496 = vmatpush2.bf16.msra.mxu0 %v1096
    %2497 = vmatprep.subr.bf16.mxu0 %v1089
    %2498 = vmatpush2.bf16.msra.mxu0 %v1088
    %2499 = vmatprep.subr.bf16.mxu0 %v1081
    %2500 = vmatpush2.bf16.msra.mxu0 %v1080
    %2501 = vmatprep.subr.bf16.mxu0 %v1073
    %2502 = vmatpush2.bf16.msra.mxu0 %v1072
    %2503 = vmatprep.subr.bf16.mxu0 %v1065
    %2504 = vmatpush2.bf16.msra.mxu0 %v1064
    %2505 = vmatprep.subr.bf16.mxu0 %v1057
    %2506 = vmatpush2.bf16.msra.mxu0 %v1056
    %2507 = vmatprep.mubr.bf16.mxu0 %v2351
    %2508 = vmatmul.mubr.bf16.gmra.mxu0 %v2350
    %v2509 = vpop.f32.mrf.mxu0
    %v2510 = vadd.f32 0.0, %v2509
    %v2511 = vpop.f32.mrf.mxu0
    %v2512 = vadd.f32 0.0, %v2511
    %v2513 = vpop.f32.mrf.mxu0
    %v2514 = vpop.f32.mrf.mxu0
    %2515 = vdwg.mxu0
    %v2516 = vadd.f32 %v235, %v2387
    %v2517 = vadd.f32 %v237, %v2389
    %v2518 = vadd.f32 %v308, %v2428
    %v2519 = vadd.f32 %v310, %v2430
    %v2520 = vadd.f32 %v381, %v2469
    %v2521 = vadd.f32 %v383, %v2471
    %v2522 = vadd.f32 %v454, %v2510
    %v2523 = vadd.f32 %v456, %v2512
    %v2524 = vxor.u32 %v2516, 2147483648
    %v2525 = vxor.u32 %v2517, 2147483648
    %v2526 = vmul.f32 %v2524, 1.442695
    %v2527 = vpow.pop %v2526
    %v2528 = vmul.f32 %v2525, 1.442695
    %v2529 = vpow.pop %v2528
    %v2530 = vadd.f32 %v2527, 1.0
    %v2531 = vadd.f32 %v2529, 1.0
    %v2532 = vrcp.pop %v2530
    %v2533 = vmul.f32 1.0, %v2532
    %v2534 = vrcp.pop %v2531
    %v2535 = vmul.f32 1.0, %v2534
    %v2536 = vxor.u32 %v2518, 2147483648
    %v2537 = vxor.u32 %v2519, 2147483648
    %v2538 = vmul.f32 %v2536, 1.442695
    %v2539 = vpow.pop %v2538
    %v2540 = vmul.f32 %v2537, 1.442695
    %v2541 = vpow.pop %v2540
    %v2542 = vadd.f32 %v2539, 1.0
    %v2543 = vadd.f32 %v2541, 1.0
    %v2544 = vrcp.pop %v2542
    %v2545 = vmul.f32 1.0, %v2544
    %v2546 = vrcp.pop %v2543
    %v2547 = vmul.f32 1.0, %v2546
    %v2548 = vtanh.pop %v2520
    %v2549 = vtanh.pop %v2521
    %v2550 = vxor.u32 %v2522, 2147483648
    %v2551 = vxor.u32 %v2523, 2147483648
    %v2552 = vmul.f32 %v2550, 1.442695
    %v2553 = vpow.pop %v2552
    %v2554 = vmul.f32 %v2551, 1.442695
    %v2555 = vpow.pop %v2554
    %v2556 = vadd.f32 %v2553, 1.0
    %v2557 = vadd.f32 %v2555, 1.0
    %v2558 = vrcp.pop %v2556
    %v2559 = vmul.f32 1.0, %v2558
    %v2560 = vrcp.pop %v2557
    %v2561 = vmul.f32 1.0, %v2560
    %v2562 = vmul.f32 %v2545, %v2344
    %v2563 = vmul.f32 %v2547, %v2345
    %v2564 = vmul.f32 %v2533, %v2548
    %v2565 = vmul.f32 %v2535, %v2549
    %v2566 = vadd.f32 %v2562, %v2564
    %v2567 = vadd.f32 %v2563, %v2565
    %v2568 = vtanh.pop %v2566
    %v2569 = vtanh.pop %v2567
    %v2570 = vmul.f32 %v2559, %v2568
    %v2571 = vmul.f32 %v2561, %v2569
    %v2572 = vpack.c.bf16 %v2570, %v2570
    %v2573 = vpack.c.bf16 %v2571, %v2571
    %2574 = vmatprep.subr.bf16.mxu0 %v1043
    %2575 = vmatpush1.bf16.msra.mxu0 %v1042
    %2576 = vmatprep.subr.bf16.mxu0 %v1035
    %2577 = vmatpush1.bf16.msra.mxu0 %v1034
    %2578 = vmatprep.subr.bf16.mxu0 %v1027
    %2579 = vmatpush1.bf16.msra.mxu0 %v1026
    %2580 = vmatprep.subr.bf16.mxu0 %v1019
    %2581 = vmatpush1.bf16.msra.mxu0 %v1018
    %2582 = vmatprep.subr.bf16.mxu0 %v1011
    %2583 = vmatpush1.bf16.msra.mxu0 %v1010
    %2584 = vmatprep.subr.bf16.mxu0 %v1003
    %2585 = vmatpush1.bf16.msra.mxu0 %v1002
    %2586 = vmatprep.subr.bf16.mxu0 %v995
    %2587 = vmatpush1.bf16.msra.mxu0 %v994
    %2588 = vmatprep.subr.bf16.mxu0 %v987
    %2589 = vmatpush1.bf16.msra.mxu0 %v986
    %2590 = vmatprep.subr.bf16.mxu0 %v1107
    %2591 = vmatpush2.bf16.msra.mxu0 %v1106
    %2592 = vmatprep.subr.bf16.mxu0 %v1099
    %2593 = vmatpush2.bf16.msra.mxu0 %v1098
    %2594 = vmatprep.subr.bf16.mxu0 %v1091
    %2595 = vmatpush2.bf16.msra.mxu0 %v1090
    %2596 = vmatprep.subr.bf16.mxu0 %v1083
    %2597 = vmatpush2.bf16.msra.mxu0 %v1082
    %2598 = vmatprep.subr.bf16.mxu0 %v1075
    %2599 = vmatpush2.bf16.msra.mxu0 %v1074
    %2600 = vmatprep.subr.bf16.mxu0 %v1067
    %2601 = vmatpush2.bf16.msra.mxu0 %v1066
    %2602 = vmatprep.subr.bf16.mxu0 %v1059
    %2603 = vmatpush2.bf16.msra.mxu0 %v1058
    %2604 = vmatprep.subr.bf16.mxu0 %v1051
    %2605 = vmatpush2.bf16.msra.mxu0 %v1050
    %2606 = vmatprep.mubr.bf16.mxu0 %v2573
    %2607 = vmatmul.mubr.bf16.gmra.mxu0 %v2572
    %v2608 = vpop.f32.mrf.mxu0
    %v2609 = vadd.f32 0.0, %v2608
    %v2610 = vpop.f32.mrf.mxu0
    %v2611 = vadd.f32 0.0, %v2610
    %v2612 = vpop.f32.mrf.mxu0
    %v2613 = vpop.f32.mrf.mxu0
    %2614 = vdwg.mxu0
    %2615 = vmatprep.subr.bf16.mxu0 %v1045
    %2616 = vmatpush1.bf16.msra.mxu0 %v1044
    %2617 = vmatprep.subr.bf16.mxu0 %v1037
    %2618 = vmatpush1.bf16.msra.mxu0 %v1036
    %2619 = vmatprep.subr.bf16.mxu0 %v1029
    %2620 = vmatpush1.bf16.msra.mxu0 %v1028
    %2621 = vmatprep.subr.bf16.mxu0 %v1021
    %2622 = vmatpush1.bf16.msra.mxu0 %v1020
    %2623 = vmatprep.subr.bf16.mxu0 %v1013
    %2624 = vmatpush1.bf16.msra.mxu0 %v1012
    %2625 = vmatprep.subr.bf16.mxu0 %v1005
    %2626 = vmatpush1.bf16.msra.mxu0 %v1004
    %2627 = vmatprep.subr.bf16.mxu0 %v997
    %2628 = vmatpush1.bf16.msra.mxu0 %v996
    %2629 = vmatprep.subr.bf16.mxu0 %v989
    %2630 = vmatpush1.bf16.msra.mxu0 %v988
    %2631 = vmatprep.subr.bf16.mxu0 %v1109
    %2632 = vmatpush2.bf16.msra.mxu0 %v1108
    %2633 = vmatprep.subr.bf16.mxu0 %v1101
    %2634 = vmatpush2.bf16.msra.mxu0 %v1100
    %2635 = vmatprep.subr.bf16.mxu0 %v1093
    %2636 = vmatpush2.bf16.msra.mxu0 %v1092
    %2637 = vmatprep.subr.bf16.mxu0 %v1085
    %2638 = vmatpush2.bf16.msra.mxu0 %v1084
    %2639 = vmatprep.subr.bf16.mxu0 %v1077
    %2640 = vmatpush2.bf16.msra.mxu0 %v1076
    %2641 = vmatprep.subr.bf16.mxu0 %v1069
    %2642 = vmatpush2.bf16.msra.mxu0 %v1068
    %2643 = vmatprep.subr.bf16.mxu0 %v1061
    %2644 = vmatpush2.bf16.msra.mxu0 %v1060
    %2645 = vmatprep.subr.bf16.mxu0 %v1053
    %2646 = vmatpush2.bf16.msra.mxu0 %v1052
    %2647 = vmatprep.mubr.bf16.mxu0 %v2573
    %2648 = vmatmul.mubr.bf16.gmra.mxu0 %v2572
    %v2649 = vpop.f32.mrf.mxu0
    %v2650 = vadd.f32 0.0, %v2649
    %v2651 = vpop.f32.mrf.mxu0
    %v2652 = vadd.f32 0.0, %v2651
    %v2653 = vpop.f32.mrf.mxu0
    %v2654 = vpop.f32.mrf.mxu0
    %2655 = vdwg.mxu0
    %2656 = vmatprep.subr.bf16.mxu0 %v1047
    %2657 = vmatpush1.bf16.msra.mxu0 %v1046
    %2658 = vmatprep.subr.bf16.mxu0 %v1039
    %2659 = vmatpush1.bf16.msra.mxu0 %v1038
    %2660 = vmatprep.subr.bf16.mxu0 %v1031
    %2661 = vmatpush1.bf16.msra.mxu0 %v1030
    %2662 = vmatprep.subr.bf16.mxu0 %v1023
    %2663 = vmatpush1.bf16.msra.mxu0 %v1022
    %2664 = vmatprep.subr.bf16.mxu0 %v1015
    %2665 = vmatpush1.bf16.msra.mxu0 %v1014
    %2666 = vmatprep.subr.bf16.mxu0 %v1007
    %2667 = vmatpush1.bf16.msra.mxu0 %v1006
    %2668 = vmatprep.subr.bf16.mxu0 %v999
    %2669 = vmatpush1.bf16.msra.mxu0 %v998
    %2670 = vmatprep.subr.bf16.mxu0 %v991
    %2671 = vmatpush1.bf16.msra.mxu0 %v990
    %2672 = vmatprep.subr.bf16.mxu0 %v1111
    %2673 = vmatpush2.bf16.msra.mxu0 %v1110
    %2674 = vmatprep.subr.bf16.mxu0 %v1103
    %2675 = vmatpush2.bf16.msra.mxu0 %v1102
    %2676 = vmatprep.subr.bf16.mxu0 %v1095
    %2677 = vmatpush2.bf16.msra.mxu0 %v1094
    %2678 = vmatprep.subr.bf16.mxu0 %v1087
    %2679 = vmatpush2.bf16.msra.mxu0 %v1086
    %2680 = vmatprep.subr.bf16.mxu0 %v1079
    %2681 = vmatpush2.bf16.msra.mxu0 %v1078
    %2682 = vmatprep.subr.bf16.mxu0 %v1071
    %2683 = vmatpush2.bf16.msra.mxu0 %v1070
    %2684 = vmatprep.subr.bf16.mxu0 %v1063
    %2685 = vmatpush2.bf16.msra.mxu0 %v1062
    %2686 = vmatprep.subr.bf16.mxu0 %v1055
    %2687 = vmatpush2.bf16.msra.mxu0 %v1054
    %2688 = vmatprep.mubr.bf16.mxu0 %v2573
    %2689 = vmatmul.mubr.bf16.gmra.mxu0 %v2572
    %v2690 = vpop.f32.mrf.mxu0
    %v2691 = vadd.f32 0.0, %v2690
    %v2692 = vpop.f32.mrf.mxu0
    %v2693 = vadd.f32 0.0, %v2692
    %v2694 = vpop.f32.mrf.mxu0
    %v2695 = vpop.f32.mrf.mxu0
    %2696 = vdwg.mxu0
    %2697 = vmatprep.subr.bf16.mxu0 %v1049
    %2698 = vmatpush1.bf16.msra.mxu0 %v1048
    %2699 = vmatprep.subr.bf16.mxu0 %v1041
    %2700 = vmatpush1.bf16.msra.mxu0 %v1040
    %2701 = vmatprep.subr.bf16.mxu0 %v1033
    %2702 = vmatpush1.bf16.msra.mxu0 %v1032
    %2703 = vmatprep.subr.bf16.mxu0 %v1025
    %2704 = vmatpush1.bf16.msra.mxu0 %v1024
    %2705 = vmatprep.subr.bf16.mxu0 %v1017
    %2706 = vmatpush1.bf16.msra.mxu0 %v1016
    %2707 = vmatprep.subr.bf16.mxu0 %v1009
    %2708 = vmatpush1.bf16.msra.mxu0 %v1008
    %2709 = vmatprep.subr.bf16.mxu0 %v1001
    %2710 = vmatpush1.bf16.msra.mxu0 %v1000
    %2711 = vmatprep.subr.bf16.mxu0 %v993
    %2712 = vmatpush1.bf16.msra.mxu0 %v992
    %2713 = vmatprep.subr.bf16.mxu0 %v1113
    %2714 = vmatpush2.bf16.msra.mxu0 %v1112
    %2715 = vmatprep.subr.bf16.mxu0 %v1105
    %2716 = vmatpush2.bf16.msra.mxu0 %v1104
    %2717 = vmatprep.subr.bf16.mxu0 %v1097
    %2718 = vmatpush2.bf16.msra.mxu0 %v1096
    %2719 = vmatprep.subr.bf16.mxu0 %v1089
    %2720 = vmatpush2.bf16.msra.mxu0 %v1088
    %2721 = vmatprep.subr.bf16.mxu0 %v1081
    %2722 = vmatpush2.bf16.msra.mxu0 %v1080
    %2723 = vmatprep.subr.bf16.mxu0 %v1073
    %2724 = vmatpush2.bf16.msra.mxu0 %v1072
    %2725 = vmatprep.subr.bf16.mxu0 %v1065
    %2726 = vmatpush2.bf16.msra.mxu0 %v1064
    %2727 = vmatprep.subr.bf16.mxu0 %v1057
    %2728 = vmatpush2.bf16.msra.mxu0 %v1056
    %2729 = vmatprep.mubr.bf16.mxu0 %v2573
    %2730 = vmatmul.mubr.bf16.gmra.mxu0 %v2572
    %v2731 = vpop.f32.mrf.mxu0
    %v2732 = vadd.f32 0.0, %v2731
    %v2733 = vpop.f32.mrf.mxu0
    %v2734 = vadd.f32 0.0, %v2733
    %v2735 = vpop.f32.mrf.mxu0
    %v2736 = vpop.f32.mrf.mxu0
    %2737 = vdwg.mxu0
    %v2738 = vadd.f32 %v241, %v2609
    %v2739 = vadd.f32 %v243, %v2611
    %v2740 = vadd.f32 %v314, %v2650
    %v2741 = vadd.f32 %v316, %v2652
    %v2742 = vadd.f32 %v387, %v2691
    %v2743 = vadd.f32 %v389, %v2693
    %v2744 = vadd.f32 %v460, %v2732
    %v2745 = vadd.f32 %v462, %v2734
    %v2746 = vxor.u32 %v2738, 2147483648
    %v2747 = vxor.u32 %v2739, 2147483648
    %v2748 = vmul.f32 %v2746, 1.442695
    %v2749 = vpow.pop %v2748
    %v2750 = vmul.f32 %v2747, 1.442695
    %v2751 = vpow.pop %v2750
    %v2752 = vadd.f32 %v2749, 1.0
    %v2753 = vadd.f32 %v2751, 1.0
    %v2754 = vrcp.pop %v2752
    %v2755 = vmul.f32 1.0, %v2754
    %v2756 = vrcp.pop %v2753
    %v2757 = vmul.f32 1.0, %v2756
    %v2758 = vxor.u32 %v2740, 2147483648
    %v2759 = vxor.u32 %v2741, 2147483648
    %v2760 = vmul.f32 %v2758, 1.442695
    %v2761 = vpow.pop %v2760
    %v2762 = vmul.f32 %v2759, 1.442695
    %v2763 = vpow.pop %v2762
    %v2764 = vadd.f32 %v2761, 1.0
    %v2765 = vadd.f32 %v2763, 1.0
    %v2766 = vrcp.pop %v2764
    %v2767 = vmul.f32 1.0, %v2766
    %v2768 = vrcp.pop %v2765
    %v2769 = vmul.f32 1.0, %v2768
    %v2770 = vtanh.pop %v2742
    %v2771 = vtanh.pop %v2743
    %v2772 = vxor.u32 %v2744, 2147483648
    %v2773 = vxor.u32 %v2745, 2147483648
    %v2774 = vmul.f32 %v2772, 1.442695
    %v2775 = vpow.pop %v2774
    %v2776 = vmul.f32 %v2773, 1.442695
    %v2777 = vpow.pop %v2776
    %v2778 = vadd.f32 %v2775, 1.0
    %v2779 = vadd.f32 %v2777, 1.0
    %v2780 = vrcp.pop %v2778
    %v2781 = vmul.f32 1.0, %v2780
    %v2782 = vrcp.pop %v2779
    %v2783 = vmul.f32 1.0, %v2782
    %v2784 = vmul.f32 %v2767, %v2566
    %v2785 = vmul.f32 %v2769, %v2567
    %v2786 = vmul.f32 %v2755, %v2770
    %v2787 = vmul.f32 %v2757, %v2771
    %v2788 = vadd.f32 %v2784, %v2786
    %v2789 = vadd.f32 %v2785, %v2787
    %v2790 = vtanh.pop %v2788
    %v2791 = vtanh.pop %v2789
    %v2792 = vmul.f32 %v2781, %v2790
    %v2793 = vmul.f32 %v2783, %v2791
    %v2794 = vpack.c.bf16 %v2792, %v2792
    %v2795 = vpack.c.bf16 %v2793, %v2793
    %2796 = vmatprep.subr.bf16.mxu0 %v1043
    %2797 = vmatpush1.bf16.msra.mxu0 %v1042
    %2798 = vmatprep.subr.bf16.mxu0 %v1035
    %2799 = vmatpush1.bf16.msra.mxu0 %v1034
    %2800 = vmatprep.subr.bf16.mxu0 %v1027
    %2801 = vmatpush1.bf16.msra.mxu0 %v1026
    %2802 = vmatprep.subr.bf16.mxu0 %v1019
    %2803 = vmatpush1.bf16.msra.mxu0 %v1018
    %2804 = vmatprep.subr.bf16.mxu0 %v1011
    %2805 = vmatpush1.bf16.msra.mxu0 %v1010
    %2806 = vmatprep.subr.bf16.mxu0 %v1003
    %2807 = vmatpush1.bf16.msra.mxu0 %v1002
    %2808 = vmatprep.subr.bf16.mxu0 %v995
    %2809 = vmatpush1.bf16.msra.mxu0 %v994
    %2810 = vmatprep.subr.bf16.mxu0 %v987
    %2811 = vmatpush1.bf16.msra.mxu0 %v986
    %2812 = vmatprep.subr.bf16.mxu0 %v1107
    %2813 = vmatpush2.bf16.msra.mxu0 %v1106
    %2814 = vmatprep.subr.bf16.mxu0 %v1099
    %2815 = vmatpush2.bf16.msra.mxu0 %v1098
    %2816 = vmatprep.subr.bf16.mxu0 %v1091
    %2817 = vmatpush2.bf16.msra.mxu0 %v1090
    %2818 = vmatprep.subr.bf16.mxu0 %v1083
    %2819 = vmatpush2.bf16.msra.mxu0 %v1082
    %2820 = vmatprep.subr.bf16.mxu0 %v1075
    %2821 = vmatpush2.bf16.msra.mxu0 %v1074
    %2822 = vmatprep.subr.bf16.mxu0 %v1067
    %2823 = vmatpush2.bf16.msra.mxu0 %v1066
    %2824 = vmatprep.subr.bf16.mxu0 %v1059
    %2825 = vmatpush2.bf16.msra.mxu0 %v1058
    %2826 = vmatprep.subr.bf16.mxu0 %v1051
    %2827 = vmatpush2.bf16.msra.mxu0 %v1050
    %2828 = vmatprep.mubr.bf16.mxu0 %v2795
    %2829 = vmatmul.mubr.bf16.gmra.mxu0 %v2794
    %v2830 = vpop.f32.mrf.mxu0
    %v2831 = vadd.f32 0.0, %v2830
    %v2832 = vpop.f32.mrf.mxu0
    %v2833 = vadd.f32 0.0, %v2832
    %v2834 = vpop.f32.mrf.mxu0
    %v2835 = vpop.f32.mrf.mxu0
    %2836 = vdwg.mxu0
    %2837 = vmatprep.subr.bf16.mxu0 %v1045
    %2838 = vmatpush1.bf16.msra.mxu0 %v1044
    %2839 = vmatprep.subr.bf16.mxu0 %v1037
    %2840 = vmatpush1.bf16.msra.mxu0 %v1036
    %2841 = vmatprep.subr.bf16.mxu0 %v1029
    %2842 = vmatpush1.bf16.msra.mxu0 %v1028
    %2843 = vmatprep.subr.bf16.mxu0 %v1021
    %2844 = vmatpush1.bf16.msra.mxu0 %v1020
    %2845 = vmatprep.subr.bf16.mxu0 %v1013
    %2846 = vmatpush1.bf16.msra.mxu0 %v1012
    %2847 = vmatprep.subr.bf16.mxu0 %v1005
    %2848 = vmatpush1.bf16.msra.mxu0 %v1004
    %2849 = vmatprep.subr.bf16.mxu0 %v997
    %2850 = vmatpush1.bf16.msra.mxu0 %v996
    %2851 = vmatprep.subr.bf16.mxu0 %v989
    %2852 = vmatpush1.bf16.msra.mxu0 %v988
    %2853 = vmatprep.subr.bf16.mxu0 %v1109
    %2854 = vmatpush2.bf16.msra.mxu0 %v1108
    %2855 = vmatprep.subr.bf16.mxu0 %v1101
    %2856 = vmatpush2.bf16.msra.mxu0 %v1100
    %2857 = vmatprep.subr.bf16.mxu0 %v1093
    %2858 = vmatpush2.bf16.msra.mxu0 %v1092
    %2859 = vmatprep.subr.bf16.mxu0 %v1085
    %2860 = vmatpush2.bf16.msra.mxu0 %v1084
    %2861 = vmatprep.subr.bf16.mxu0 %v1077
    %2862 = vmatpush2.bf16.msra.mxu0 %v1076
    %2863 = vmatprep.subr.bf16.mxu0 %v1069
    %2864 = vmatpush2.bf16.msra.mxu0 %v1068
    %2865 = vmatprep.subr.bf16.mxu0 %v1061
    %2866 = vmatpush2.bf16.msra.mxu0 %v1060
    %2867 = vmatprep.subr.bf16.mxu0 %v1053
    %2868 = vmatpush2.bf16.msra.mxu0 %v1052
    %2869 = vmatprep.mubr.bf16.mxu0 %v2795
    %2870 = vmatmul.mubr.bf16.gmra.mxu0 %v2794
    %v2871 = vpop.f32.mrf.mxu0
    %v2872 = vadd.f32 0.0, %v2871
    %v2873 = vpop.f32.mrf.mxu0
    %v2874 = vadd.f32 0.0, %v2873
    %v2875 = vpop.f32.mrf.mxu0
    %v2876 = vpop.f32.mrf.mxu0
    %2877 = vdwg.mxu0
    %2878 = vmatprep.subr.bf16.mxu0 %v1047
    %2879 = vmatpush1.bf16.msra.mxu0 %v1046
    %2880 = vmatprep.subr.bf16.mxu0 %v1039
    %2881 = vmatpush1.bf16.msra.mxu0 %v1038
    %2882 = vmatprep.subr.bf16.mxu0 %v1031
    %2883 = vmatpush1.bf16.msra.mxu0 %v1030
    %2884 = vmatprep.subr.bf16.mxu0 %v1023
    %2885 = vmatpush1.bf16.msra.mxu0 %v1022
    %2886 = vmatprep.subr.bf16.mxu0 %v1015
    %2887 = vmatpush1.bf16.msra.mxu0 %v1014
    %2888 = vmatprep.subr.bf16.mxu0 %v1007
    %2889 = vmatpush1.bf16.msra.mxu0 %v1006
    %2890 = vmatprep.subr.bf16.mxu0 %v999
    %2891 = vmatpush1.bf16.msra.mxu0 %v998
    %2892 = vmatprep.subr.bf16.mxu0 %v991
    %2893 = vmatpush1.bf16.msra.mxu0 %v990
    %2894 = vmatprep.subr.bf16.mxu0 %v1111
    %2895 = vmatpush2.bf16.msra.mxu0 %v1110
    %2896 = vmatprep.subr.bf16.mxu0 %v1103
    %2897 = vmatpush2.bf16.msra.mxu0 %v1102
    %2898 = vmatprep.subr.bf16.mxu0 %v1095
    %2899 = vmatpush2.bf16.msra.mxu0 %v1094
    %2900 = vmatprep.subr.bf16.mxu0 %v1087
    %2901 = vmatpush2.bf16.msra.mxu0 %v1086
    %2902 = vmatprep.subr.bf16.mxu0 %v1079
    %2903 = vmatpush2.bf16.msra.mxu0 %v1078
    %2904 = vmatprep.subr.bf16.mxu0 %v1071
    %2905 = vmatpush2.bf16.msra.mxu0 %v1070
    %2906 = vmatprep.subr.bf16.mxu0 %v1063
    %2907 = vmatpush2.bf16.msra.mxu0 %v1062
    %2908 = vmatprep.subr.bf16.mxu0 %v1055
    %2909 = vmatpush2.bf16.msra.mxu0 %v1054
    %2910 = vmatprep.mubr.bf16.mxu0 %v2795
    %2911 = vmatmul.mubr.bf16.gmra.mxu0 %v2794
    %v2912 = vpop.f32.mrf.mxu0
    %v2913 = vadd.f32 0.0, %v2912
    %v2914 = vpop.f32.mrf.mxu0
    %v2915 = vadd.f32 0.0, %v2914
    %v2916 = vpop.f32.mrf.mxu0
    %v2917 = vpop.f32.mrf.mxu0
    %2918 = vdwg.mxu0
    %2919 = vmatprep.subr.bf16.mxu0 %v1049
    %2920 = vmatpush1.bf16.msra.mxu0 %v1048
    %2921 = vmatprep.subr.bf16.mxu0 %v1041
    %2922 = vmatpush1.bf16.msra.mxu0 %v1040
    %2923 = vmatprep.subr.bf16.mxu0 %v1033
    %2924 = vmatpush1.bf16.msra.mxu0 %v1032
    %2925 = vmatprep.subr.bf16.mxu0 %v1025
    %2926 = vmatpush1.bf16.msra.mxu0 %v1024
    %2927 = vmatprep.subr.bf16.mxu0 %v1017
    %2928 = vmatpush1.bf16.msra.mxu0 %v1016
    %2929 = vmatprep.subr.bf16.mxu0 %v1009
    %2930 = vmatpush1.bf16.msra.mxu0 %v1008
    %2931 = vmatprep.subr.bf16.mxu0 %v1001
    %2932 = vmatpush1.bf16.msra.mxu0 %v1000
    %2933 = vmatprep.subr.bf16.mxu0 %v993
    %2934 = vmatpush1.bf16.msra.mxu0 %v992
    %2935 = vmatprep.subr.bf16.mxu0 %v1113
    %2936 = vmatpush2.bf16.msra.mxu0 %v1112
    %2937 = vmatprep.subr.bf16.mxu0 %v1105
    %2938 = vmatpush2.bf16.msra.mxu0 %v1104
    %2939 = vmatprep.subr.bf16.mxu0 %v1097
    %2940 = vmatpush2.bf16.msra.mxu0 %v1096
    %2941 = vmatprep.subr.bf16.mxu0 %v1089
    %2942 = vmatpush2.bf16.msra.mxu0 %v1088
    %2943 = vmatprep.subr.bf16.mxu0 %v1081
    %2944 = vmatpush2.bf16.msra.mxu0 %v1080
    %2945 = vmatprep.subr.bf16.mxu0 %v1073
    %2946 = vmatpush2.bf16.msra.mxu0 %v1072
    %2947 = vmatprep.subr.bf16.mxu0 %v1065
    %2948 = vmatpush2.bf16.msra.mxu0 %v1064
    %2949 = vmatprep.subr.bf16.mxu0 %v1057
    %2950 = vmatpush2.bf16.msra.mxu0 %v1056
    %2951 = vmatprep.mubr.bf16.mxu0 %v2795
    %2952 = vmatmul.mubr.bf16.gmra.mxu0 %v2794
    %v2953 = vpop.f32.mrf.mxu0
    %v2954 = vadd.f32 0.0, %v2953
    %v2955 = vpop.f32.mrf.mxu0
    %v2956 = vadd.f32 0.0, %v2955
    %v2957 = vpop.f32.mrf.mxu0
    %v2958 = vpop.f32.mrf.mxu0
    %2959 = vdwg.mxu0
    %v2960 = vadd.f32 %v245, %v2831
    %v2961 = vadd.f32 %v247, %v2833
    %v2962 = vadd.f32 %v318, %v2872
    %v2963 = vadd.f32 %v320, %v2874
    %v2964 = vadd.f32 %v391, %v2913
    %v2965 = vadd.f32 %v393, %v2915
    %v2966 = vadd.f32 %v464, %v2954
    %v2967 = vadd.f32 %v466, %v2956
    %v2968 = vxor.u32 %v2960, 2147483648
    %v2969 = vxor.u32 %v2961, 2147483648
    %v2970 = vmul.f32 %v2968, 1.442695
    %v2971 = vpow.pop %v2970
    %v2972 = vmul.f32 %v2969, 1.442695
    %v2973 = vpow.pop %v2972
    %v2974 = vadd.f32 %v2971, 1.0
    %v2975 = vadd.f32 %v2973, 1.0
    %v2976 = vrcp.pop %v2974
    %v2977 = vmul.f32 1.0, %v2976
    %v2978 = vrcp.pop %v2975
    %v2979 = vmul.f32 1.0, %v2978
    %v2980 = vxor.u32 %v2962, 2147483648
    %v2981 = vxor.u32 %v2963, 2147483648
    %v2982 = vmul.f32 %v2980, 1.442695
    %v2983 = vpow.pop %v2982
    %v2984 = vmul.f32 %v2981, 1.442695
    %v2985 = vpow.pop %v2984
    %v2986 = vadd.f32 %v2983, 1.0
    %v2987 = vadd.f32 %v2985, 1.0
    %v2988 = vrcp.pop %v2986
    %v2989 = vmul.f32 1.0, %v2988
    %v2990 = vrcp.pop %v2987
    %v2991 = vmul.f32 1.0, %v2990
    %v2992 = vtanh.pop %v2964
    %v2993 = vtanh.pop %v2965
    %v2994 = vxor.u32 %v2966, 2147483648
    %v2995 = vxor.u32 %v2967, 2147483648
    %v2996 = vmul.f32 %v2994, 1.442695
    %v2997 = vpow.pop %v2996
    %v2998 = vmul.f32 %v2995, 1.442695
    %v2999 = vpow.pop %v2998
    %v3000 = vadd.f32 %v2997, 1.0
    %v3001 = vadd.f32 %v2999, 1.0
    %v3002 = vrcp.pop %v3000
    %v3003 = vmul.f32 1.0, %v3002
    %v3004 = vrcp.pop %v3001
    %v3005 = vmul.f32 1.0, %v3004
    %v3006 = vmul.f32 %v2989, %v2788
    %v3007 = vmul.f32 %v2991, %v2789
    %v3008 = vmul.f32 %v2977, %v2992
    %v3009 = vmul.f32 %v2979, %v2993
    %v3010 = vadd.f32 %v3006, %v3008
    %v3011 = vadd.f32 %v3007, %v3009
    %v3012 = vtanh.pop %v3010
    %v3013 = vtanh.pop %v3011
    %v3014 = vmul.f32 %v3003, %v3012
    %v3015 = vmul.f32 %v3005, %v3013
    %v3016 = vpack.c.bf16 %v3014, %v3014
    %v3017 = vpack.c.bf16 %v3015, %v3015
    %v3018 = vld [vmem:[%s6] sm:$0xf]
    %v3019 = vld [vmem:[%s6 + $0x4] sm:$0xf]
    %v3020 = vld [vmem:[%s6 + $0x8] sm:$0xf]
    %v3021 = vld [vmem:[%s6 + $0xc] sm:$0xf]
    %v3022 = vld [vmem:[%s6 + $0x10] sm:$0xf]
    %v3023 = vld [vmem:[%s6 + $0x14] sm:$0xf]
    %v3024 = vld [vmem:[%s6 + $0x18] sm:$0xf]
    %v3025 = vld [vmem:[%s6 + $0x1c] sm:$0xf]
    %v3026 = vld [vmem:[%s6 + $0x20] sm:$0xf]
    %v3027 = vld [vmem:[%s6 + $0x24] sm:$0xf]
    %v3028 = vld [vmem:[%s6 + $0x28] sm:$0xf]
    %v3029 = vld [vmem:[%s6 + $0x2c] sm:$0xf]
    %v3030 = vld [vmem:[%s6 + $0x30] sm:$0xf]
    %v3031 = vld [vmem:[%s6 + $0x34] sm:$0xf]
    %v3032 = vld [vmem:[%s6 + $0x38] sm:$0xf]
    %v3033 = vld [vmem:[%s6 + $0x3c] sm:$0xf]
    %v3034 = vld [vmem:[%s6 + $0x40] sm:$0xf]
    %v3035 = vld [vmem:[%s6 + $0x44] sm:$0xf]
    %v3036 = vld [vmem:[%s6 + $0x48] sm:$0xf]
    %v3037 = vld [vmem:[%s6 + $0x4c] sm:$0xf]
    %v3038 = vld [vmem:[%s6 + $0x50] sm:$0xf]
    %v3039 = vld [vmem:[%s6 + $0x54] sm:$0xf]
    %v3040 = vld [vmem:[%s6 + $0x58] sm:$0xf]
    %v3041 = vld [vmem:[%s6 + $0x5c] sm:$0xf]
    %v3042 = vld [vmem:[%s6 + $0x60] sm:$0xf]
    %v3043 = vld [vmem:[%s6 + $0x64] sm:$0xf]
    %v3044 = vld [vmem:[%s6 + $0x68] sm:$0xf]
    %v3045 = vld [vmem:[%s6 + $0x6c] sm:$0xf]
    %v3046 = vld [vmem:[%s6 + $0x70] sm:$0xf]
    %v3047 = vld [vmem:[%s6 + $0x74] sm:$0xf]
    %v3048 = vld [vmem:[%s6 + $0x78] sm:$0xf]
    %v3049 = vld [vmem:[%s6 + $0x7c] sm:$0xf]
    %v3050 = vld [vmem:[%s7] sm:$0x1]
    %v3052 = vlaneseq
    %v3053 = vshrl.u32 %v3052, 7
    %v3054 = vsub.s32 0, %v3053
    %v3055 = vrot.slane %v3050, %v3054
    %v3089 = vunpack.c.l.b16 %v3018
    %v3090 = vunpack.c.l.b16 %v3019
    %v3091 = vunpack.c.l.b16 %v3020
    %v3092 = vunpack.c.l.b16 %v3021
    %v3093 = vunpack.c.l.b16 %v3022
    %v3094 = vunpack.c.l.b16 %v3023
    %v3095 = vunpack.c.l.b16 %v3024
    %v3096 = vunpack.c.l.b16 %v3025
    %v3097 = vunpack.c.l.b16 %v3026
    %v3098 = vunpack.c.l.b16 %v3027
    %v3099 = vunpack.c.l.b16 %v3028
    %v3100 = vunpack.c.l.b16 %v3029
    %v3101 = vunpack.c.l.b16 %v3030
    %v3102 = vunpack.c.l.b16 %v3031
    %v3103 = vunpack.c.l.b16 %v3032
    %v3104 = vunpack.c.l.b16 %v3033
    %v3105 = vunpack.c.l.b16 %v3034
    %v3106 = vunpack.c.l.b16 %v3035
    %v3107 = vunpack.c.l.b16 %v3036
    %v3108 = vunpack.c.l.b16 %v3037
    %v3109 = vunpack.c.l.b16 %v3038
    %v3110 = vunpack.c.l.b16 %v3039
    %v3111 = vunpack.c.l.b16 %v3040
    %v3112 = vunpack.c.l.b16 %v3041
    %v3113 = vunpack.c.l.b16 %v3042
    %v3114 = vunpack.c.l.b16 %v3043
    %v3115 = vunpack.c.l.b16 %v3044
    %v3116 = vunpack.c.l.b16 %v3045
    %v3117 = vunpack.c.l.b16 %v3046
    %v3118 = vunpack.c.l.b16 %v3047
    %v3119 = vunpack.c.l.b16 %v3048
    %v3120 = vunpack.c.l.b16 %v3049
    %v3121 = vpack.c.b16 %v3090, %v3089
    %v3122 = vpack.c.b16 %v3092, %v3091
    %v3123 = vpack.c.b16 %v3094, %v3093
    %v3124 = vpack.c.b16 %v3096, %v3095
    %v3125 = vpack.c.b16 %v3098, %v3097
    %v3126 = vpack.c.b16 %v3100, %v3099
    %v3127 = vpack.c.b16 %v3102, %v3101
    %v3128 = vpack.c.b16 %v3104, %v3103
    %v3129 = vpack.c.b16 %v3106, %v3105
    %v3130 = vpack.c.b16 %v3108, %v3107
    %v3131 = vpack.c.b16 %v3110, %v3109
    %v3132 = vpack.c.b16 %v3112, %v3111
    %v3133 = vpack.c.b16 %v3114, %v3113
    %v3134 = vpack.c.b16 %v3116, %v3115
    %v3135 = vpack.c.b16 %v3118, %v3117
    %v3136 = vpack.c.b16 %v3120, %v3119
    %3153 = vmatprep.subr.bf16.mxu0 0
    %3154 = vmatpush1.bf16.msra.mxu0 %v3128
    %3155 = vmatprep.subr.bf16.mxu0 0
    %3156 = vmatpush1.bf16.msra.mxu0 %v3127
    %3157 = vmatprep.subr.bf16.mxu0 0
    %3158 = vmatpush1.bf16.msra.mxu0 %v3126
    %3159 = vmatprep.subr.bf16.mxu0 0
    %3160 = vmatpush1.bf16.msra.mxu0 %v3125
    %3161 = vmatprep.subr.bf16.mxu0 0
    %3162 = vmatpush1.bf16.msra.mxu0 %v3124
    %3163 = vmatprep.subr.bf16.mxu0 0
    %3164 = vmatpush1.bf16.msra.mxu0 %v3123
    %3165 = vmatprep.subr.bf16.mxu0 0
    %3166 = vmatpush1.bf16.msra.mxu0 %v3122
    %3167 = vmatprep.subr.bf16.mxu0 0
    %3168 = vmatpush1.bf16.msra.mxu0 %v3121
    %3169 = vmatprep.subr.bf16.mxu0 0
    %3170 = vmatpush2.bf16.msra.mxu0 %v3136
    %3171 = vmatprep.subr.bf16.mxu0 0
    %3172 = vmatpush2.bf16.msra.mxu0 %v3135
    %3173 = vmatprep.subr.bf16.mxu0 0
    %3174 = vmatpush2.bf16.msra.mxu0 %v3134
    %3175 = vmatprep.subr.bf16.mxu0 0
    %3176 = vmatpush2.bf16.msra.mxu0 %v3133
    %3177 = vmatprep.subr.bf16.mxu0 0
    %3178 = vmatpush2.bf16.msra.mxu0 %v3132
    %3179 = vmatprep.subr.bf16.mxu0 0
    %3180 = vmatpush2.bf16.msra.mxu0 %v3131
    %3181 = vmatprep.subr.bf16.mxu0 0
    %3182 = vmatpush2.bf16.msra.mxu0 %v3130
    %3183 = vmatprep.subr.bf16.mxu0 0
    %3184 = vmatpush2.bf16.msra.mxu0 %v3129
    %3185 = vmatprep.mubr.bf16.mxu0 %v3017
    %3186 = vmatmul.mubr.bf16.gmra.mxu0 %v3016
    %v3187 = vpop.f32.mrf.mxu0
    %v3188 = vadd.f32 %v3055, %v3187
    %v3189 = vpop.f32.mrf.mxu0
    %v3190 = vpop.f32.mrf.mxu0
    %v3191 = vpop.f32.mrf.mxu0
    %3192 = vdwg.mxu0
    %vm3193 = vcmask 64512
    %3194 = vst.msk [vmem:[#allocation5] sm:$0xff] %vm3193, %v3188
    // Predicated region
    $region38: #{tpu_custom_call.1} parent=1 // pred_check
      _
    $region39: #{tpu_custom_call.1} parent=1 // pred_check_branch
      %3196 = sbr.rel (0) target = $region41
    $region40: #{tpu_custom_call.1} parent=1 // pred_region
      %s3198 = ssub.s32 128, 128
      %3199 = vsyncadd [#allocation4], %s3198
      %s3201 = sshll.u32 [#allocation5], 4
      %s3202 = int_to_ptr.vmem [resolvable:$true] %s3201
      %3204 = dma.vmem_to_hbm [thread:$0]  %s3202, 128, %s8, [#allocation4]
    $region41: #{tpu_custom_call.1} parent=1 // pred_fallthru
      _
    // Predicated region
    $region42: #{tpu_custom_call.1} parent=1 // pred_check
      _
    $region43: #{tpu_custom_call.1} parent=1 // pred_check_branch
      %3206 = sbr.rel (0) target = $region45
    $region44: #{tpu_custom_call.1} parent=1 // pred_region
      %3207 = dma.done [#allocation4], 128
    $region45: #{tpu_custom_call.1} parent=1 // pred_fallthru
      _
    %3208 = vsyncpa [#allocation3], 1
    %3209 = vsyncpa [#allocation4], 1

</llo_original>
